<compile_context>
chip_gen: v5e
topology: v5e:2x2
jax: 0.10.0
libtpu: 0.0.40
codegen_flags: <defaults>
</compile_context>

<pallas_src>
import math

import jax
import jax.numpy as jnp
from jax.experimental import pallas as pl
from jax.experimental.pallas import tpu as pltpu

# ------------------------- model dimensions (small) -------------------------
B = 2          # batch
C = 3          # channels
IMG = 16       # image height == width
PATCH = 4      # patch size
P = (IMG // PATCH) ** 2          # num patches per image = 16
S = P + 1                        # sequence length (CLS + patches) = 17
HD = 32        # hidden size
NH = 4         # attention heads
DH = HD // NH  # head dim = 8
MLP = 64       # mlp hidden
LAYERS = 2
LN_EPS = 1e-12
DT = jnp.float32
DP = C * PATCH * PATCH           # flattened patch dim = 48
NEG_INF = -1e30

LANES = 128                      # lane padding for the packed operands
DP_PAD = 128                     # patches padded 48 -> 128 lanes
PADB = 8                         # CLS/pad row block (B CLS rows + 6 pad rows)
R = 2 * P + PADB                 # 40 padded, permuted sequence rows
HM = NH * R                      # 160 head-major rows

IMAGENET_MEAN = jnp.array([0.485, 0.456, 0.406], DT)
IMAGENET_STD = jnp.array([0.229, 0.224, 0.225], DT)

# NT (q @ k^T) dot_general dims — avoids an explicit XLU transpose.
TRANS_B_DIMS = (((1,), (1,)), ((), ()))

# ----------------------- packed weight-slab row layout ----------------------
ROW_PW = 0                              # 128 rows : patch-embed weight (48 real)
ROW_GVEC = ROW_PW + DP_PAD              # 8 rows   : [patch_b, final_ln_g, final_ln_b]
ROW_POS = ROW_GVEC + 8                  # 32 rows  : pos[1:] tiled for both images
ROW_CLS = ROW_POS + 2 * P               # 8 rows   : [cls+pos0 (img0), cls+pos0 (img1), 0..]
ROW_L0 = ROW_CLS + PADB                 # per-layer blocks start here
LV, LWQKV, LWO, LW1, LW2 = 0, 8, 40, 72, 104
LSTRIDE = LW2 + MLP                     # 168 rows per layer
N_SLAB_ROWS = ROW_L0 + LAYERS * LSTRIDE  # 512


# ----------------------------- kernel helpers -------------------------------
def _layer_norm(x, gamma, beta):
    # x: (rows, HD), gamma/beta: (1, HD)
    mu = jnp.mean(x, axis=-1, keepdims=True)
    var = jnp.mean((x - mu) ** 2, axis=-1, keepdims=True)
    inv = jax.lax.rsqrt(var + LN_EPS)
    return (x - mu) * inv * gamma + beta


# ----------------------------- fused ViT kernel -----------------------------
def fused_vit_kernel(patches_ref, slab_ref, o_ref):
    f32 = jnp.float32

    # ---- patch embedding (ImageNet mean/std pre-folded into pw/pb) ----
    pw = slab_ref[ROW_PW:ROW_PW + DP_PAD, 0:HD]                       # (128, 32)
    emb = jnp.dot(patches_ref[...], pw, preferred_element_type=f32)   # (2P, HD)
    emb = emb + slab_ref[ROW_GVEC:ROW_GVEC + 1, 0:HD]                 # + patch bias
    emb = emb + slab_ref[ROW_POS:ROW_POS + 2 * P, 0:HD]               # + pos[1:] (tiled)

    # Sublane-aligned, permuted token layout (no scratch, single aligned concat):
    #   rows 0..31  = patches (img0: 0..15, img1: 16..31)
    #   rows 32..33 = CLS tokens (img0, img1); rows 34..39 = zero pad
    x = jnp.concatenate([emb, slab_ref[ROW_CLS:ROW_CLS + PADB, 0:HD]], axis=0)

    # ---- combined (head x batch) block-diagonal bias, generated in-kernel ----
    def group_id(idx):
        # head index without integer division (R = 40 is not a power of two)
        head = ((idx >= R).astype(jnp.int32) + (idx >= 2 * R).astype(jnp.int32)
                + (idx >= 3 * R).astype(jnp.int32))
        r = idx - head * R
        bid = jnp.where(r < 2 * P, (r >= P).astype(jnp.int32),         # patch rows
                        jnp.where(r < 2 * P + B, r - 2 * P, 7))        # CLS rows / pad
        return head * 8 + bid

    rows_i = jax.lax.broadcasted_iota(jnp.int32, (HM, HM), 0)
    cols_i = jax.lax.broadcasted_iota(jnp.int32, (HM, HM), 1)
    att_bias = jnp.where(group_id(rows_i) == group_id(cols_i),
                         jnp.float32(0.0), jnp.float32(NEG_INF))       # (HM, HM)

    # ---- transformer encoder layers (statically unrolled) ----
    for l in range(LAYERS):
        base = ROW_L0 + l * LSTRIDE
        vrow = base + LV
        ln1_g = slab_ref[vrow + 0:vrow + 1, 0:HD]
        ln1_b = slab_ref[vrow + 1:vrow + 2, 0:HD]
        bqkv = slab_ref[vrow + 2:vrow + 3, 0:3 * HD]
        bo = slab_ref[vrow + 3:vrow + 4, 0:HD]
        ln2_g = slab_ref[vrow + 4:vrow + 5, 0:HD]
        ln2_b = slab_ref[vrow + 5:vrow + 6, 0:HD]
        b1 = slab_ref[vrow + 6:vrow + 7, 0:MLP]
        b2 = slab_ref[vrow + 7:vrow + 8, 0:HD]

        # --- multi-head self-attention: all heads folded into one score/PV ---
        h = _layer_norm(x, ln1_g, ln1_b)
        qkv = jnp.dot(h, slab_ref[base + LWQKV:base + LWQKV + HD, 0:3 * HD],
                      preferred_element_type=f32) + bqkv               # (R, 96), q pre-scaled

        q_hm = jnp.concatenate(
            [qkv[:, i * DH:(i + 1) * DH] for i in range(NH)], axis=0)            # (HM, DH)
        k_hm = jnp.concatenate(
            [qkv[:, HD + i * DH:HD + (i + 1) * DH] for i in range(NH)], axis=0)
        v_hm = jnp.concatenate(
            [qkv[:, 2 * HD + i * DH:2 * HD + (i + 1) * DH] for i in range(NH)], axis=0)

        s = jax.lax.dot_general(q_hm, k_hm, TRANS_B_DIMS,
                                preferred_element_type=f32) + att_bias  # (HM, HM)
        m = jnp.max(s, axis=-1, keepdims=True)
        e = jnp.exp(s - m)
        p = e * pl.reciprocal(jnp.sum(e, axis=-1, keepdims=True), approx=True)
        ctx = jnp.dot(p, v_hm, preferred_element_type=f32)              # (HM, DH)

        # out-projection with the head re-merge folded in (no lane concat)
        attn = bo
        for i in range(NH):
            wo_h = slab_ref[base + LWO + i * DH:base + LWO + (i + 1) * DH, 0:HD]
            attn = attn + jnp.dot(ctx[i * R:(i + 1) * R, :], wo_h,
                                  preferred_element_type=f32)
        x = x + attn

        # --- MLP ---
        h2 = _layer_norm(x, ln2_g, ln2_b)
        mlp = jnp.dot(h2, slab_ref[base + LW1:base + LW1 + HD, 0:MLP],
                      preferred_element_type=f32) + b1
        # TODO(synk): HF ViTMAE uses exact (erf) GELU; tanh approximation used here.
        mlp = jax.nn.gelu(mlp, approximate=True)
        x = x + jnp.dot(mlp, slab_ref[base + LW2:base + LW2 + MLP, 0:HD],
                        preferred_element_type=f32) + b2

    # ---- final LayerNorm -> one lane-contiguous (R, HD) slab ----
    o_ref[...] = _layer_norm(x, slab_ref[ROW_GVEC + 1:ROW_GVEC + 2, 0:HD],
                             slab_ref[ROW_GVEC + 2:ROW_GVEC + 3, 0:HD])


# ------------------------------- parameters ---------------------------------
def init_params(key):
    ks = jax.random.split(key, 32)
    ki = iter(ks)

    def nrm(k, shape, scale=0.02):
        return (scale * jax.random.normal(k, shape)).astype(DT)

    params = {
        "patch_w": nrm(next(ki), (DP, HD)),
        "patch_b": jnp.zeros((1, HD), DT),
        "cls": nrm(next(ki), (1, 1, HD)),
        "pos": nrm(next(ki), (1, S, HD)),
        "final_ln_g": jnp.ones((1, HD), DT),
        "final_ln_b": jnp.zeros((1, HD), DT),
        "layers": [],
    }
    for _ in range(LAYERS):
        layer = {
            "ln1_g": jnp.ones((1, HD), DT), "ln1_b": jnp.zeros((1, HD), DT),
            "wq": nrm(next(ki), (HD, HD)), "bq": jnp.zeros((1, HD), DT),
            "wk": nrm(next(ki), (HD, HD)), "bk": jnp.zeros((1, HD), DT),
            "wv": nrm(next(ki), (HD, HD)), "bv": jnp.zeros((1, HD), DT),
            "wo": nrm(next(ki), (HD, HD)), "bo": jnp.zeros((1, HD), DT),
            "ln2_g": jnp.ones((1, HD), DT), "ln2_b": jnp.zeros((1, HD), DT),
            "w1": nrm(next(ki), (HD, MLP)), "b1": jnp.zeros((1, MLP), DT),
            "w2": nrm(next(ki), (MLP, HD)), "b2": jnp.zeros((1, HD), DT),
        }
        params["layers"].append(layer)
    return params


def _pad_block(a, nrows):
    """Place a (r, c) array into a zero (nrows, 128) lane-dense block."""
    a = a.astype(DT)
    r, c = a.shape
    return jnp.zeros((nrows, LANES), DT).at[:r, :c].set(a)


def _pack_params(params):
    """Trace-time folding + packing into ONE lane-dense (512, 128) weight slab."""
    # fold per-channel ImageNet normalization into the patch-embed weight/bias
    inv_std = (1.0 / jnp.repeat(IMAGENET_STD, PATCH * PATCH)).astype(DT)    # (DP,)
    mean = jnp.repeat(IMAGENET_MEAN, PATCH * PATCH).astype(DT)              # (DP,)
    pw = params["patch_w"] * inv_std[:, None]                               # (DP, HD)
    pb = params["patch_b"] - (mean * inv_std)[None, :] @ params["patch_w"]  # (1, HD)

    clspos = params["cls"][0] + params["pos"][0, 0:1, :]                    # (1, HD)
    pos2 = jnp.tile(params["pos"][0, 1:, :], (B, 1))                        # (2P, HD)

    scale = 1.0 / math.sqrt(DH)

    blocks = [
        _pad_block(pw, DP_PAD),                                                  # ROW_PW
        _pad_block(jnp.concatenate([pb, params["final_ln_g"],
                                    params["final_ln_b"]], axis=0), 8),          # ROW_GVEC
        _pad_block(pos2, 2 * P),                                                 # ROW_POS
        _pad_block(jnp.tile(clspos, (B, 1)), PADB),                              # ROW_CLS
    ]
    for lp in params["layers"]:
        # fused QKV with the 1/sqrt(DH) scale folded into the Q slice
        wqkv = jnp.concatenate([lp["wq"] * scale, lp["wk"], lp["wv"]], axis=1)   # (HD, 3HD)
        bqkv = jnp.concatenate([lp["bq"] * scale, lp["bk"], lp["bv"]], axis=1)   # (1, 3HD)
        lvec = jnp.zeros((8, LANES), DT)
        lvec = lvec.at[0, :HD].set(lp["ln1_g"][0])
        lvec = lvec.at[1, :HD].set(lp["ln1_b"][0])
        lvec = lvec.at[2, :3 * HD].set(bqkv[0])
        lvec = lvec.at[3, :HD].set(lp["bo"][0])
        lvec = lvec.at[4, :HD].set(lp["ln2_g"][0])
        lvec = lvec.at[5, :HD].set(lp["ln2_b"][0])
        lvec = lvec.at[6, :MLP].set(lp["b1"][0])
        lvec = lvec.at[7, :HD].set(lp["b2"][0])
        blocks += [lvec,
                   _pad_block(wqkv, HD),
                   _pad_block(lp["wo"], HD),
                   _pad_block(lp["w1"], HD),
                   _pad_block(lp["w2"], MLP)]
    slab = jnp.concatenate(blocks, axis=0)
    assert slab.shape == (N_SLAB_ROWS, LANES), slab.shape
    return slab


# ------------------------------- forward pass -------------------------------
def frame_embedder_forward(images, params):
    # images: (B, C, IMG, IMG) NCHW float32 in [0, 1]
    bsz = images.shape[0]
    assert bsz == B, (bsz, B)

    # host-side glue: non-overlapping patches, (C, ph, pw) flattened row-major
    # (matches torch Conv2d weight flattening); resize/center-crop is host-side
    # preprocessing and assumed already applied.
    x = images.reshape(bsz, C, IMG // PATCH, PATCH, IMG // PATCH, PATCH)
    x = x.transpose(0, 2, 4, 1, 3, 5)                    # (B, Hp, Wp, C, ph, pw)
    patches = x.reshape(bsz * P, DP)                     # (2P, 48)
    patches = jnp.pad(patches, ((0, 0), (0, DP_PAD - DP)))   # lane-dense (2P, 128)

    slab = _pack_params(params)                          # (512, 128) single DMA

    # one fused kernel (no grid): 2 lane-dense operands in, 1 slab out.
    # Note: jnp.dot at default precision uses bf16 MXU passes; pass
    # precision=jax.lax.Precision.HIGHEST in-kernel if bit-parity with the
    # f32 PyTorch reference is required.
    out = pl.pallas_call(
        fused_vit_kernel,
        out_shape=jax.ShapeDtypeStruct((R, HD), DT),
    )(patches, slab)                                     # (40, 32) permuted slab

    # un-permute on the host: [CLS, patch_0..patch_15] per image, drop pad rows
    patch_tok = out[:2 * P].reshape(bsz, P, HD)
    cls_tok = out[2 * P:2 * P + B].reshape(bsz, 1, HD)
    return jnp.concatenate([cls_tok, patch_tok], axis=1)  # (B, S, HD)


if __name__ == "__main__":
    key = jax.random.PRNGKey(0)
    k_img, k_par = jax.random.split(key)
    images = jax.random.uniform(k_img, (B, C, IMG, IMG), dtype=DT)
    params = init_params(k_par)

    out = frame_embedder_forward(images, params)
    out = jax.block_until_ready(out)
    assert out.shape == (B, S, HD), out.shape
    assert jnp.all(jnp.isfinite(out))
    print("KERNEL_OK")
</pallas_src>

<mosaic_0001>
module attributes {stable_mosaic.version = 11 : i64} {
  func.func @fused_vit_kernel(%arg0: memref<32x128xf32, #tpu.memory_space<vmem>>, %arg1: memref<512x128xf32, #tpu.memory_space<vmem>>, %arg2: memref<40x32xf32, #tpu.memory_space<vmem>>) attributes {dimension_semantics = [], scalar_prefetch = 0 : i64, scratch_operands = 0 : i64, tpu.core_type = #tpu.core_type<tc>} {
    %c0 = arith.constant 0 : index
    %c0_0 = arith.constant 0 : index
    %0 = vector.load %arg1[%c0, %c0_0] : memref<512x128xf32, #tpu.memory_space<vmem>>, vector<128x32xf32>
    %c0_1 = arith.constant 0 : index
    %c0_2 = arith.constant 0 : index
    %1 = vector.load %arg0[%c0_1, %c0_2] : memref<32x128xf32, #tpu.memory_space<vmem>>, vector<32x128xf32>
    %cst = arith.constant dense<0.000000e+00> : vector<32x32xf32>
    %2 = tpu.matmul %1, %0, %cst {dimension_numbers = #tpu.dot_dimension_numbers<[1], [0], [0], [1], [0, 0, 1, 1], [], []>} : vector<32x128xf32>, vector<128x32xf32>, vector<32x32xf32> -> vector<32x32xf32>
    %c128 = arith.constant 128 : index
    %c0_3 = arith.constant 0 : index
    %3 = vector.load %arg1[%c128, %c0_3] : memref<512x128xf32, #tpu.memory_space<vmem>>, vector<1x32xf32>
    %4 = vector.broadcast %3 : vector<1x32xf32> to vector<32x32xf32>
    %5 = arith.addf %2, %4 : vector<32x32xf32>
    %c136 = arith.constant 136 : index
    %c0_4 = arith.constant 0 : index
    %6 = vector.load %arg1[%c136, %c0_4] : memref<512x128xf32, #tpu.memory_space<vmem>>, vector<32x32xf32>
    %7 = arith.addf %5, %6 : vector<32x32xf32>
    %c168 = arith.constant 168 : index
    %c0_5 = arith.constant 0 : index
    %8 = vector.load %arg1[%c168, %c0_5] : memref<512x128xf32, #tpu.memory_space<vmem>>, vector<8x32xf32>
    %9 = tpu.concatenate %7, %8 in 0 : vector<32x32xf32>, vector<8x32xf32> -> vector<40x32xf32>
    %10 = tpu.iota {dimensions = array<i32: 0>} : vector<160x160xi32>
    %11 = tpu.iota {dimensions = array<i32: 1>} : vector<160x160xi32>
    %c40_i32 = arith.constant 40 : i32
    %12 = vector.broadcast %c40_i32 : i32 to vector<160x160xi32>
    %13 = arith.cmpi sge, %10, %12 : vector<160x160xi32>
    %14 = arith.extui %13 : vector<160x160xi1> to vector<160x160xi32>
    %c80_i32 = arith.constant 80 : i32
    %15 = vector.broadcast %c80_i32 : i32 to vector<160x160xi32>
    %16 = arith.cmpi sge, %10, %15 : vector<160x160xi32>
    %17 = arith.extui %16 : vector<160x160xi1> to vector<160x160xi32>
    %18 = arith.addi %14, %17 : vector<160x160xi32>
    %c120_i32 = arith.constant 120 : i32
    %19 = vector.broadcast %c120_i32 : i32 to vector<160x160xi32>
    %20 = arith.cmpi sge, %10, %19 : vector<160x160xi32>
    %21 = arith.extui %20 : vector<160x160xi1> to vector<160x160xi32>
    %22 = arith.addi %18, %21 : vector<160x160xi32>
    %c40_i32_6 = arith.constant 40 : i32
    %23 = vector.broadcast %c40_i32_6 : i32 to vector<160x160xi32>
    %24 = arith.muli %22, %23 : vector<160x160xi32>
    %25 = arith.subi %10, %24 : vector<160x160xi32>
    %c32_i32 = arith.constant 32 : i32
    %26 = vector.broadcast %c32_i32 : i32 to vector<160x160xi32>
    %27 = arith.cmpi slt, %25, %26 : vector<160x160xi32>
    %c16_i32 = arith.constant 16 : i32
    %28 = vector.broadcast %c16_i32 : i32 to vector<160x160xi32>
    %29 = arith.cmpi sge, %25, %28 : vector<160x160xi32>
    %30 = arith.extui %29 : vector<160x160xi1> to vector<160x160xi32>
    %c34_i32 = arith.constant 34 : i32
    %31 = vector.broadcast %c34_i32 : i32 to vector<160x160xi32>
    %32 = arith.cmpi slt, %25, %31 : vector<160x160xi32>
    %c32_i32_7 = arith.constant 32 : i32
    %33 = vector.broadcast %c32_i32_7 : i32 to vector<160x160xi32>
    %34 = arith.subi %25, %33 : vector<160x160xi32>
    %c7_i32 = arith.constant 7 : i32
    %35 = vector.broadcast %c7_i32 : i32 to vector<160x160xi32>
    %36 = arith.select %32, %34, %35 : vector<160x160xi1>, vector<160x160xi32>
    %37 = arith.select %27, %30, %36 : vector<160x160xi1>, vector<160x160xi32>
    %c8_i32 = arith.constant 8 : i32
    %38 = vector.broadcast %c8_i32 : i32 to vector<160x160xi32>
    %39 = arith.muli %22, %38 : vector<160x160xi32>
    %40 = arith.addi %39, %37 : vector<160x160xi32>
    %c40_i32_8 = arith.constant 40 : i32
    %41 = vector.broadcast %c40_i32_8 : i32 to vector<160x160xi32>
    %42 = arith.cmpi sge, %11, %41 : vector<160x160xi32>
    %43 = arith.extui %42 : vector<160x160xi1> to vector<160x160xi32>
    %c80_i32_9 = arith.constant 80 : i32
    %44 = vector.broadcast %c80_i32_9 : i32 to vector<160x160xi32>
    %45 = arith.cmpi sge, %11, %44 : vector<160x160xi32>
    %46 = arith.extui %45 : vector<160x160xi1> to vector<160x160xi32>
    %47 = arith.addi %43, %46 : vector<160x160xi32>
    %c120_i32_10 = arith.constant 120 : i32
    %48 = vector.broadcast %c120_i32_10 : i32 to vector<160x160xi32>
    %49 = arith.cmpi sge, %11, %48 : vector<160x160xi32>
    %50 = arith.extui %49 : vector<160x160xi1> to vector<160x160xi32>
    %51 = arith.addi %47, %50 : vector<160x160xi32>
    %c40_i32_11 = arith.constant 40 : i32
    %52 = vector.broadcast %c40_i32_11 : i32 to vector<160x160xi32>
    %53 = arith.muli %51, %52 : vector<160x160xi32>
    %54 = arith.subi %11, %53 : vector<160x160xi32>
    %c32_i32_12 = arith.constant 32 : i32
    %55 = vector.broadcast %c32_i32_12 : i32 to vector<160x160xi32>
    %56 = arith.cmpi slt, %54, %55 : vector<160x160xi32>
    %c16_i32_13 = arith.constant 16 : i32
    %57 = vector.broadcast %c16_i32_13 : i32 to vector<160x160xi32>
    %58 = arith.cmpi sge, %54, %57 : vector<160x160xi32>
    %59 = arith.extui %58 : vector<160x160xi1> to vector<160x160xi32>
    %c34_i32_14 = arith.constant 34 : i32
    %60 = vector.broadcast %c34_i32_14 : i32 to vector<160x160xi32>
    %61 = arith.cmpi slt, %54, %60 : vector<160x160xi32>
    %c32_i32_15 = arith.constant 32 : i32
    %62 = vector.broadcast %c32_i32_15 : i32 to vector<160x160xi32>
    %63 = arith.subi %54, %62 : vector<160x160xi32>
    %c7_i32_16 = arith.constant 7 : i32
    %64 = vector.broadcast %c7_i32_16 : i32 to vector<160x160xi32>
    %65 = arith.select %61, %63, %64 : vector<160x160xi1>, vector<160x160xi32>
    %66 = arith.select %56, %59, %65 : vector<160x160xi1>, vector<160x160xi32>
    %c8_i32_17 = arith.constant 8 : i32
    %67 = vector.broadcast %c8_i32_17 : i32 to vector<160x160xi32>
    %68 = arith.muli %51, %67 : vector<160x160xi32>
    %69 = arith.addi %68, %66 : vector<160x160xi32>
    %70 = arith.cmpi eq, %40, %69 : vector<160x160xi32>
    %cst_18 = arith.constant 0.000000e+00 : f32
    %cst_19 = arith.constant -1.000000e+30 : f32
    %71 = vector.broadcast %cst_18 : f32 to vector<160x160xf32>
    %72 = vector.broadcast %cst_19 : f32 to vector<160x160xf32>
    %73 = arith.select %70, %71, %72 : vector<160x160xi1>, vector<160x160xf32>
    %c176 = arith.constant 176 : index
    %c0_20 = arith.constant 0 : index
    %74 = vector.load %arg1[%c176, %c0_20] : memref<512x128xf32, #tpu.memory_space<vmem>>, vector<1x32xf32>
    %c177 = arith.constant 177 : index
    %c0_21 = arith.constant 0 : index
    %75 = vector.load %arg1[%c177, %c0_21] : memref<512x128xf32, #tpu.memory_space<vmem>>, vector<1x32xf32>
    %c178 = arith.constant 178 : index
    %c0_22 = arith.constant 0 : index
    %76 = vector.load %arg1[%c178, %c0_22] : memref<512x128xf32, #tpu.memory_space<vmem>>, vector<1x96xf32>
    %c179 = arith.constant 179 : index
    %c0_23 = arith.constant 0 : index
    %77 = vector.load %arg1[%c179, %c0_23] : memref<512x128xf32, #tpu.memory_space<vmem>>, vector<1x32xf32>
    %c180 = arith.constant 180 : index
    %c0_24 = arith.constant 0 : index
    %78 = vector.load %arg1[%c180, %c0_24] : memref<512x128xf32, #tpu.memory_space<vmem>>, vector<1x32xf32>
    %c181 = arith.constant 181 : index
    %c0_25 = arith.constant 0 : index
    %79 = vector.load %arg1[%c181, %c0_25] : memref<512x128xf32, #tpu.memory_space<vmem>>, vector<1x32xf32>
    %c182 = arith.constant 182 : index
    %c0_26 = arith.constant 0 : index
    %80 = vector.load %arg1[%c182, %c0_26] : memref<512x128xf32, #tpu.memory_space<vmem>>, vector<1x64xf32>
    %c183 = arith.constant 183 : index
    %c0_27 = arith.constant 0 : index
    %81 = vector.load %arg1[%c183, %c0_27] : memref<512x128xf32, #tpu.memory_space<vmem>>, vector<1x32xf32>
    %cst_28 = arith.constant dense<0.000000e+00> : vector<40xf32>
    %82 = vector.multi_reduction <add>, %9, %cst_28 [1] : vector<40x32xf32> to vector<40xf32>
    %83 = vector.shape_cast %82 : vector<40xf32> to vector<40x1xf32>
    %cst_29 = arith.constant 3.200000e+01 : f32
    %84 = vector.broadcast %cst_29 : f32 to vector<40x1xf32>
    %85 = arith.divf %83, %84 : vector<40x1xf32>
    %86 = vector.broadcast %85 : vector<40x1xf32> to vector<40x32xf32>
    %87 = arith.subf %9, %86 : vector<40x32xf32>
    %88 = arith.mulf %87, %87 : vector<40x32xf32>
    %cst_30 = arith.constant dense<0.000000e+00> : vector<40xf32>
    %89 = vector.multi_reduction <add>, %88, %cst_30 [1] : vector<40x32xf32> to vector<40xf32>
    %90 = vector.shape_cast %89 : vector<40xf32> to vector<40x1xf32>
    %cst_31 = arith.constant 3.200000e+01 : f32
    %91 = vector.broadcast %cst_31 : f32 to vector<40x1xf32>
    %92 = arith.divf %90, %91 : vector<40x1xf32>
    %cst_32 = arith.constant 9.99999996E-13 : f32
    %93 = vector.broadcast %cst_32 : f32 to vector<40x1xf32>
    %94 = arith.addf %92, %93 : vector<40x1xf32>
    %95 = math.rsqrt %94 : vector<40x1xf32>
    %96 = vector.broadcast %85 : vector<40x1xf32> to vector<40x32xf32>
    %97 = arith.subf %9, %96 : vector<40x32xf32>
    %98 = vector.broadcast %95 : vector<40x1xf32> to vector<40x32xf32>
    %99 = arith.mulf %97, %98 : vector<40x32xf32>
    %100 = vector.broadcast %74 : vector<1x32xf32> to vector<40x32xf32>
    %101 = arith.mulf %99, %100 : vector<40x32xf32>
    %102 = vector.broadcast %75 : vector<1x32xf32> to vector<40x32xf32>
    %103 = arith.addf %101, %102 : vector<40x32xf32>
    %c184 = arith.constant 184 : index
    %c0_33 = arith.constant 0 : index
    %104 = vector.load %arg1[%c184, %c0_33] : memref<512x128xf32, #tpu.memory_space<vmem>>, vector<32x96xf32>
    %cst_34 = arith.constant dense<0.000000e+00> : vector<40x96xf32>
    %105 = tpu.matmul %103, %104, %cst_34 {dimension_numbers = #tpu.dot_dimension_numbers<[1], [0], [0], [1], [0, 0, 1, 1], [], []>} : vector<40x32xf32>, vector<32x96xf32>, vector<40x96xf32> -> vector<40x96xf32>
    %106 = vector.broadcast %76 : vector<1x96xf32> to vector<40x96xf32>
    %107 = arith.addf %105, %106 : vector<40x96xf32>
    %108 = vector.extract_strided_slice %107 {offsets = [0, 0], sizes = [40, 8], strides = [1, 1]} : vector<40x96xf32> to vector<40x8xf32>
    %109 = vector.extract_strided_slice %107 {offsets = [0, 8], sizes = [40, 8], strides = [1, 1]} : vector<40x96xf32> to vector<40x8xf32>
    %110 = vector.extract_strided_slice %107 {offsets = [0, 16], sizes = [40, 8], strides = [1, 1]} : vector<40x96xf32> to vector<40x8xf32>
    %111 = vector.extract_strided_slice %107 {offsets = [0, 24], sizes = [40, 8], strides = [1, 1]} : vector<40x96xf32> to vector<40x8xf32>
    %112 = tpu.concatenate %108, %109, %110, %111 in 0 : vector<40x8xf32>, vector<40x8xf32>, vector<40x8xf32>, vector<40x8xf32> -> vector<160x8xf32>
    %113 = vector.extract_strided_slice %107 {offsets = [0, 32], sizes = [40, 8], strides = [1, 1]} : vector<40x96xf32> to vector<40x8xf32>
    %114 = vector.extract_strided_slice %107 {offsets = [0, 40], sizes = [40, 8], strides = [1, 1]} : vector<40x96xf32> to vector<40x8xf32>
    %115 = vector.extract_strided_slice %107 {offsets = [0, 48], sizes = [40, 8], strides = [1, 1]} : vector<40x96xf32> to vector<40x8xf32>
    %116 = vector.extract_strided_slice %107 {offsets = [0, 56], sizes = [40, 8], strides = [1, 1]} : vector<40x96xf32> to vector<40x8xf32>
    %117 = tpu.concatenate %113, %114, %115, %116 in 0 : vector<40x8xf32>, vector<40x8xf32>, vector<40x8xf32>, vector<40x8xf32> -> vector<160x8xf32>
    %118 = vector.extract_strided_slice %107 {offsets = [0, 64], sizes = [40, 8], strides = [1, 1]} : vector<40x96xf32> to vector<40x8xf32>
    %119 = vector.extract_strided_slice %107 {offsets = [0, 72], sizes = [40, 8], strides = [1, 1]} : vector<40x96xf32> to vector<40x8xf32>
    %120 = vector.extract_strided_slice %107 {offsets = [0, 80], sizes = [40, 8], strides = [1, 1]} : vector<40x96xf32> to vector<40x8xf32>
    %121 = vector.extract_strided_slice %107 {offsets = [0, 88], sizes = [40, 8], strides = [1, 1]} : vector<40x96xf32> to vector<40x8xf32>
    %122 = tpu.concatenate %118, %119, %120, %121 in 0 : vector<40x8xf32>, vector<40x8xf32>, vector<40x8xf32>, vector<40x8xf32> -> vector<160x8xf32>
    %cst_35 = arith.constant dense<0.000000e+00> : vector<160x160xf32>
    %123 = tpu.matmul %112, %117, %cst_35 {dimension_numbers = #tpu.dot_dimension_numbers<[1], [1], [0], [0], [0, 0, 1, 0], [], []>} : vector<160x8xf32>, vector<160x8xf32>, vector<160x160xf32> -> vector<160x160xf32>
    %124 = arith.addf %123, %73 : vector<160x160xf32>
    %cst_36 = arith.constant dense<0xFF800000> : vector<160xf32>
    %125 = vector.multi_reduction <maximumf>, %124, %cst_36 [1] : vector<160x160xf32> to vector<160xf32>
    %126 = vector.shape_cast %125 : vector<160xf32> to vector<160x1xf32>
    %127 = vector.broadcast %126 : vector<160x1xf32> to vector<160x160xf32>
    %128 = arith.subf %124, %127 : vector<160x160xf32>
    %129 = math.exp %128 : vector<160x160xf32>
    %cst_37 = arith.constant dense<0.000000e+00> : vector<160xf32>
    %130 = vector.multi_reduction <add>, %129, %cst_37 [1] : vector<160x160xf32> to vector<160xf32>
    %131 = vector.shape_cast %130 : vector<160xf32> to vector<160x1xf32>
    %132 = tpu.reciprocal %131 {approx = true} : vector<160x1xf32> -> vector<160x1xf32>
    %133 = vector.broadcast %132 : vector<160x1xf32> to vector<160x160xf32>
    %134 = arith.mulf %129, %133 : vector<160x160xf32>
    %cst_38 = arith.constant dense<0.000000e+00> : vector<160x8xf32>
    %135 = tpu.matmul %134, %122, %cst_38 {dimension_numbers = #tpu.dot_dimension_numbers<[1], [0], [0], [1], [0, 0, 1, 1], [], []>} : vector<160x160xf32>, vector<160x8xf32>, vector<160x8xf32> -> vector<160x8xf32>
    %c216 = arith.constant 216 : index
    %c0_39 = arith.constant 0 : index
    %136 = vector.load %arg1[%c216, %c0_39] : memref<512x128xf32, #tpu.memory_space<vmem>>, vector<8x32xf32>
    %137 = vector.extract_strided_slice %135 {offsets = [0, 0], sizes = [40, 8], strides = [1, 1]} : vector<160x8xf32> to vector<40x8xf32>
    %cst_40 = arith.constant dense<0.000000e+00> : vector<40x32xf32>
    %138 = tpu.matmul %137, %136, %cst_40 {dimension_numbers = #tpu.dot_dimension_numbers<[1], [0], [0], [1], [0, 0, 1, 1], [], []>} : vector<40x8xf32>, vector<8x32xf32>, vector<40x32xf32> -> vector<40x32xf32>
    %139 = vector.broadcast %77 : vector<1x32xf32> to vector<40x32xf32>
    %140 = arith.addf %139, %138 : vector<40x32xf32>
    %c224 = arith.constant 224 : index
    %c0_41 = arith.constant 0 : index
    %141 = vector.load %arg1[%c224, %c0_41] : memref<512x128xf32, #tpu.memory_space<vmem>>, vector<8x32xf32>
    %142 = vector.extract_strided_slice %135 {offsets = [40, 0], sizes = [40, 8], strides = [1, 1]} : vector<160x8xf32> to vector<40x8xf32>
    %cst_42 = arith.constant dense<0.000000e+00> : vector<40x32xf32>
    %143 = tpu.matmul %142, %141, %cst_42 {dimension_numbers = #tpu.dot_dimension_numbers<[1], [0], [0], [1], [0, 0, 1, 1], [], []>} : vector<40x8xf32>, vector<8x32xf32>, vector<40x32xf32> -> vector<40x32xf32>
    %144 = arith.addf %140, %143 : vector<40x32xf32>
    %c232 = arith.constant 232 : index
    %c0_43 = arith.constant 0 : index
    %145 = vector.load %arg1[%c232, %c0_43] : memref<512x128xf32, #tpu.memory_space<vmem>>, vector<8x32xf32>
    %146 = vector.extract_strided_slice %135 {offsets = [80, 0], sizes = [40, 8], strides = [1, 1]} : vector<160x8xf32> to vector<40x8xf32>
    %cst_44 = arith.constant dense<0.000000e+00> : vector<40x32xf32>
    %147 = tpu.matmul %146, %145, %cst_44 {dimension_numbers = #tpu.dot_dimension_numbers<[1], [0], [0], [1], [0, 0, 1, 1], [], []>} : vector<40x8xf32>, vector<8x32xf32>, vector<40x32xf32> -> vector<40x32xf32>
    %148 = arith.addf %144, %147 : vector<40x32xf32>
    %c240 = arith.constant 240 : index
    %c0_45 = arith.constant 0 : index
    %149 = vector.load %arg1[%c240, %c0_45] : memref<512x128xf32, #tpu.memory_space<vmem>>, vector<8x32xf32>
    %150 = vector.extract_strided_slice %135 {offsets = [120, 0], sizes = [40, 8], strides = [1, 1]} : vector<160x8xf32> to vector<40x8xf32>
    %cst_46 = arith.constant dense<0.000000e+00> : vector<40x32xf32>
    %151 = tpu.matmul %150, %149, %cst_46 {dimension_numbers = #tpu.dot_dimension_numbers<[1], [0], [0], [1], [0, 0, 1, 1], [], []>} : vector<40x8xf32>, vector<8x32xf32>, vector<40x32xf32> -> vector<40x32xf32>
    %152 = arith.addf %148, %151 : vector<40x32xf32>
    %153 = arith.addf %9, %152 : vector<40x32xf32>
    %cst_47 = arith.constant dense<0.000000e+00> : vector<40xf32>
    %154 = vector.multi_reduction <add>, %153, %cst_47 [1] : vector<40x32xf32> to vector<40xf32>
    %155 = vector.shape_cast %154 : vector<40xf32> to vector<40x1xf32>
    %cst_48 = arith.constant 3.200000e+01 : f32
    %156 = vector.broadcast %cst_48 : f32 to vector<40x1xf32>
    %157 = arith.divf %155, %156 : vector<40x1xf32>
    %158 = vector.broadcast %157 : vector<40x1xf32> to vector<40x32xf32>
    %159 = arith.subf %153, %158 : vector<40x32xf32>
    %160 = arith.mulf %159, %159 : vector<40x32xf32>
    %cst_49 = arith.constant dense<0.000000e+00> : vector<40xf32>
    %161 = vector.multi_reduction <add>, %160, %cst_49 [1] : vector<40x32xf32> to vector<40xf32>
    %162 = vector.shape_cast %161 : vector<40xf32> to vector<40x1xf32>
    %cst_50 = arith.constant 3.200000e+01 : f32
    %163 = vector.broadcast %cst_50 : f32 to vector<40x1xf32>
    %164 = arith.divf %162, %163 : vector<40x1xf32>
    %cst_51 = arith.constant 9.99999996E-13 : f32
    %165 = vector.broadcast %cst_51 : f32 to vector<40x1xf32>
    %166 = arith.addf %164, %165 : vector<40x1xf32>
    %167 = math.rsqrt %166 : vector<40x1xf32>
    %168 = vector.broadcast %157 : vector<40x1xf32> to vector<40x32xf32>
    %169 = arith.subf %153, %168 : vector<40x32xf32>
    %170 = vector.broadcast %167 : vector<40x1xf32> to vector<40x32xf32>
    %171 = arith.mulf %169, %170 : vector<40x32xf32>
    %172 = vector.broadcast %78 : vector<1x32xf32> to vector<40x32xf32>
    %173 = arith.mulf %171, %172 : vector<40x32xf32>
    %174 = vector.broadcast %79 : vector<1x32xf32> to vector<40x32xf32>
    %175 = arith.addf %173, %174 : vector<40x32xf32>
    %c248 = arith.constant 248 : index
    %c0_52 = arith.constant 0 : index
    %176 = vector.load %arg1[%c248, %c0_52] : memref<512x128xf32, #tpu.memory_space<vmem>>, vector<32x64xf32>
    %cst_53 = arith.constant dense<0.000000e+00> : vector<40x64xf32>
    %177 = tpu.matmul %175, %176, %cst_53 {dimension_numbers = #tpu.dot_dimension_numbers<[1], [0], [0], [1], [0, 0, 1, 1], [], []>} : vector<40x32xf32>, vector<32x64xf32>, vector<40x64xf32> -> vector<40x64xf32>
    %178 = vector.broadcast %80 : vector<1x64xf32> to vector<40x64xf32>
    %179 = arith.addf %177, %178 : vector<40x64xf32>
    %180 = arith.mulf %179, %179 : vector<40x64xf32>
    %181 = arith.mulf %179, %180 : vector<40x64xf32>
    %cst_54 = arith.constant 4.471500e-02 : f32
    %182 = vector.broadcast %cst_54 : f32 to vector<40x64xf32>
    %183 = arith.mulf %182, %181 : vector<40x64xf32>
    %184 = arith.addf %179, %183 : vector<40x64xf32>
    %cst_55 = arith.constant 0.797884583 : f32
    %185 = vector.broadcast %cst_55 : f32 to vector<40x64xf32>
    %186 = arith.mulf %185, %184 : vector<40x64xf32>
    %187 = math.tanh %186 : vector<40x64xf32>
    %cst_56 = arith.constant 1.000000e+00 : f32
    %188 = vector.broadcast %cst_56 : f32 to vector<40x64xf32>
    %189 = arith.addf %188, %187 : vector<40x64xf32>
    %cst_57 = arith.constant 5.000000e-01 : f32
    %190 = vector.broadcast %cst_57 : f32 to vector<40x64xf32>
    %191 = arith.mulf %190, %189 : vector<40x64xf32>
    %192 = arith.mulf %179, %191 : vector<40x64xf32>
    %c280 = arith.constant 280 : index
    %c0_58 = arith.constant 0 : index
    %193 = vector.load %arg1[%c280, %c0_58] : memref<512x128xf32, #tpu.memory_space<vmem>>, vector<64x32xf32>
    %cst_59 = arith.constant dense<0.000000e+00> : vector<40x32xf32>
    %194 = tpu.matmul %192, %193, %cst_59 {dimension_numbers = #tpu.dot_dimension_numbers<[1], [0], [0], [1], [0, 0, 1, 1], [], []>} : vector<40x64xf32>, vector<64x32xf32>, vector<40x32xf32> -> vector<40x32xf32>
    %195 = arith.addf %153, %194 : vector<40x32xf32>
    %196 = vector.broadcast %81 : vector<1x32xf32> to vector<40x32xf32>
    %197 = arith.addf %195, %196 : vector<40x32xf32>
    %c344 = arith.constant 344 : index
    %c0_60 = arith.constant 0 : index
    %198 = vector.load %arg1[%c344, %c0_60] : memref<512x128xf32, #tpu.memory_space<vmem>>, vector<1x32xf32>
    %c345 = arith.constant 345 : index
    %c0_61 = arith.constant 0 : index
    %199 = vector.load %arg1[%c345, %c0_61] : memref<512x128xf32, #tpu.memory_space<vmem>>, vector<1x32xf32>
    %c346 = arith.constant 346 : index
    %c0_62 = arith.constant 0 : index
    %200 = vector.load %arg1[%c346, %c0_62] : memref<512x128xf32, #tpu.memory_space<vmem>>, vector<1x96xf32>
    %c347 = arith.constant 347 : index
    %c0_63 = arith.constant 0 : index
    %201 = vector.load %arg1[%c347, %c0_63] : memref<512x128xf32, #tpu.memory_space<vmem>>, vector<1x32xf32>
    %c348 = arith.constant 348 : index
    %c0_64 = arith.constant 0 : index
    %202 = vector.load %arg1[%c348, %c0_64] : memref<512x128xf32, #tpu.memory_space<vmem>>, vector<1x32xf32>
    %c349 = arith.constant 349 : index
    %c0_65 = arith.constant 0 : index
    %203 = vector.load %arg1[%c349, %c0_65] : memref<512x128xf32, #tpu.memory_space<vmem>>, vector<1x32xf32>
    %c350 = arith.constant 350 : index
    %c0_66 = arith.constant 0 : index
    %204 = vector.load %arg1[%c350, %c0_66] : memref<512x128xf32, #tpu.memory_space<vmem>>, vector<1x64xf32>
    %c351 = arith.constant 351 : index
    %c0_67 = arith.constant 0 : index
    %205 = vector.load %arg1[%c351, %c0_67] : memref<512x128xf32, #tpu.memory_space<vmem>>, vector<1x32xf32>
    %cst_68 = arith.constant dense<0.000000e+00> : vector<40xf32>
    %206 = vector.multi_reduction <add>, %197, %cst_68 [1] : vector<40x32xf32> to vector<40xf32>
    %207 = vector.shape_cast %206 : vector<40xf32> to vector<40x1xf32>
    %cst_69 = arith.constant 3.200000e+01 : f32
    %208 = vector.broadcast %cst_69 : f32 to vector<40x1xf32>
    %209 = arith.divf %207, %208 : vector<40x1xf32>
    %210 = vector.broadcast %209 : vector<40x1xf32> to vector<40x32xf32>
    %211 = arith.subf %197, %210 : vector<40x32xf32>
    %212 = arith.mulf %211, %211 : vector<40x32xf32>
    %cst_70 = arith.constant dense<0.000000e+00> : vector<40xf32>
    %213 = vector.multi_reduction <add>, %212, %cst_70 [1] : vector<40x32xf32> to vector<40xf32>
    %214 = vector.shape_cast %213 : vector<40xf32> to vector<40x1xf32>
    %cst_71 = arith.constant 3.200000e+01 : f32
    %215 = vector.broadcast %cst_71 : f32 to vector<40x1xf32>
    %216 = arith.divf %214, %215 : vector<40x1xf32>
    %cst_72 = arith.constant 9.99999996E-13 : f32
    %217 = vector.broadcast %cst_72 : f32 to vector<40x1xf32>
    %218 = arith.addf %216, %217 : vector<40x1xf32>
    %219 = math.rsqrt %218 : vector<40x1xf32>
    %220 = vector.broadcast %209 : vector<40x1xf32> to vector<40x32xf32>
    %221 = arith.subf %197, %220 : vector<40x32xf32>
    %222 = vector.broadcast %219 : vector<40x1xf32> to vector<40x32xf32>
    %223 = arith.mulf %221, %222 : vector<40x32xf32>
    %224 = vector.broadcast %198 : vector<1x32xf32> to vector<40x32xf32>
    %225 = arith.mulf %223, %224 : vector<40x32xf32>
    %226 = vector.broadcast %199 : vector<1x32xf32> to vector<40x32xf32>
    %227 = arith.addf %225, %226 : vector<40x32xf32>
    %c352 = arith.constant 352 : index
    %c0_73 = arith.constant 0 : index
    %228 = vector.load %arg1[%c352, %c0_73] : memref<512x128xf32, #tpu.memory_space<vmem>>, vector<32x96xf32>
    %cst_74 = arith.constant dense<0.000000e+00> : vector<40x96xf32>
    %229 = tpu.matmul %227, %228, %cst_74 {dimension_numbers = #tpu.dot_dimension_numbers<[1], [0], [0], [1], [0, 0, 1, 1], [], []>} : vector<40x32xf32>, vector<32x96xf32>, vector<40x96xf32> -> vector<40x96xf32>
    %230 = vector.broadcast %200 : vector<1x96xf32> to vector<40x96xf32>
    %231 = arith.addf %229, %230 : vector<40x96xf32>
    %232 = vector.extract_strided_slice %231 {offsets = [0, 0], sizes = [40, 8], strides = [1, 1]} : vector<40x96xf32> to vector<40x8xf32>
    %233 = vector.extract_strided_slice %231 {offsets = [0, 8], sizes = [40, 8], strides = [1, 1]} : vector<40x96xf32> to vector<40x8xf32>
    %234 = vector.extract_strided_slice %231 {offsets = [0, 16], sizes = [40, 8], strides = [1, 1]} : vector<40x96xf32> to vector<40x8xf32>
    %235 = vector.extract_strided_slice %231 {offsets = [0, 24], sizes = [40, 8], strides = [1, 1]} : vector<40x96xf32> to vector<40x8xf32>
    %236 = tpu.concatenate %232, %233, %234, %235 in 0 : vector<40x8xf32>, vector<40x8xf32>, vector<40x8xf32>, vector<40x8xf32> -> vector<160x8xf32>
    %237 = vector.extract_strided_slice %231 {offsets = [0, 32], sizes = [40, 8], strides = [1, 1]} : vector<40x96xf32> to vector<40x8xf32>
    %238 = vector.extract_strided_slice %231 {offsets = [0, 40], sizes = [40, 8], strides = [1, 1]} : vector<40x96xf32> to vector<40x8xf32>
    %239 = vector.extract_strided_slice %231 {offsets = [0, 48], sizes = [40, 8], strides = [1, 1]} : vector<40x96xf32> to vector<40x8xf32>
    %240 = vector.extract_strided_slice %231 {offsets = [0, 56], sizes = [40, 8], strides = [1, 1]} : vector<40x96xf32> to vector<40x8xf32>
    %241 = tpu.concatenate %237, %238, %239, %240 in 0 : vector<40x8xf32>, vector<40x8xf32>, vector<40x8xf32>, vector<40x8xf32> -> vector<160x8xf32>
    %242 = vector.extract_strided_slice %231 {offsets = [0, 64], sizes = [40, 8], strides = [1, 1]} : vector<40x96xf32> to vector<40x8xf32>
    %243 = vector.extract_strided_slice %231 {offsets = [0, 72], sizes = [40, 8], strides = [1, 1]} : vector<40x96xf32> to vector<40x8xf32>
    %244 = vector.extract_strided_slice %231 {offsets = [0, 80], sizes = [40, 8], strides = [1, 1]} : vector<40x96xf32> to vector<40x8xf32>
    %245 = vector.extract_strided_slice %231 {offsets = [0, 88], sizes = [40, 8], strides = [1, 1]} : vector<40x96xf32> to vector<40x8xf32>
    %246 = tpu.concatenate %242, %243, %244, %245 in 0 : vector<40x8xf32>, vector<40x8xf32>, vector<40x8xf32>, vector<40x8xf32> -> vector<160x8xf32>
    %cst_75 = arith.constant dense<0.000000e+00> : vector<160x160xf32>
    %247 = tpu.matmul %236, %241, %cst_75 {dimension_numbers = #tpu.dot_dimension_numbers<[1], [1], [0], [0], [0, 0, 1, 0], [], []>} : vector<160x8xf32>, vector<160x8xf32>, vector<160x160xf32> -> vector<160x160xf32>
    %248 = arith.addf %247, %73 : vector<160x160xf32>
    %cst_76 = arith.constant dense<0xFF800000> : vector<160xf32>
    %249 = vector.multi_reduction <maximumf>, %248, %cst_76 [1] : vector<160x160xf32> to vector<160xf32>
    %250 = vector.shape_cast %249 : vector<160xf32> to vector<160x1xf32>
    %251 = vector.broadcast %250 : vector<160x1xf32> to vector<160x160xf32>
    %252 = arith.subf %248, %251 : vector<160x160xf32>
    %253 = math.exp %252 : vector<160x160xf32>
    %cst_77 = arith.constant dense<0.000000e+00> : vector<160xf32>
    %254 = vector.multi_reduction <add>, %253, %cst_77 [1] : vector<160x160xf32> to vector<160xf32>
    %255 = vector.shape_cast %254 : vector<160xf32> to vector<160x1xf32>
    %256 = tpu.reciprocal %255 {approx = true} : vector<160x1xf32> -> vector<160x1xf32>
    %257 = vector.broadcast %256 : vector<160x1xf32> to vector<160x160xf32>
    %258 = arith.mulf %253, %257 : vector<160x160xf32>
    %cst_78 = arith.constant dense<0.000000e+00> : vector<160x8xf32>
    %259 = tpu.matmul %258, %246, %cst_78 {dimension_numbers = #tpu.dot_dimension_numbers<[1], [0], [0], [1], [0, 0, 1, 1], [], []>} : vector<160x160xf32>, vector<160x8xf32>, vector<160x8xf32> -> vector<160x8xf32>
    %c384 = arith.constant 384 : index
    %c0_79 = arith.constant 0 : index
    %260 = vector.load %arg1[%c384, %c0_79] : memref<512x128xf32, #tpu.memory_space<vmem>>, vector<8x32xf32>
    %261 = vector.extract_strided_slice %259 {offsets = [0, 0], sizes = [40, 8], strides = [1, 1]} : vector<160x8xf32> to vector<40x8xf32>
    %cst_80 = arith.constant dense<0.000000e+00> : vector<40x32xf32>
    %262 = tpu.matmul %261, %260, %cst_80 {dimension_numbers = #tpu.dot_dimension_numbers<[1], [0], [0], [1], [0, 0, 1, 1], [], []>} : vector<40x8xf32>, vector<8x32xf32>, vector<40x32xf32> -> vector<40x32xf32>
    %263 = vector.broadcast %201 : vector<1x32xf32> to vector<40x32xf32>
    %264 = arith.addf %263, %262 : vector<40x32xf32>
    %c392 = arith.constant 392 : index
    %c0_81 = arith.constant 0 : index
    %265 = vector.load %arg1[%c392, %c0_81] : memref<512x128xf32, #tpu.memory_space<vmem>>, vector<8x32xf32>
    %266 = vector.extract_strided_slice %259 {offsets = [40, 0], sizes = [40, 8], strides = [1, 1]} : vector<160x8xf32> to vector<40x8xf32>
    %cst_82 = arith.constant dense<0.000000e+00> : vector<40x32xf32>
    %267 = tpu.matmul %266, %265, %cst_82 {dimension_numbers = #tpu.dot_dimension_numbers<[1], [0], [0], [1], [0, 0, 1, 1], [], []>} : vector<40x8xf32>, vector<8x32xf32>, vector<40x32xf32> -> vector<40x32xf32>
    %268 = arith.addf %264, %267 : vector<40x32xf32>
    %c400 = arith.constant 400 : index
    %c0_83 = arith.constant 0 : index
    %269 = vector.load %arg1[%c400, %c0_83] : memref<512x128xf32, #tpu.memory_space<vmem>>, vector<8x32xf32>
    %270 = vector.extract_strided_slice %259 {offsets = [80, 0], sizes = [40, 8], strides = [1, 1]} : vector<160x8xf32> to vector<40x8xf32>
    %cst_84 = arith.constant dense<0.000000e+00> : vector<40x32xf32>
    %271 = tpu.matmul %270, %269, %cst_84 {dimension_numbers = #tpu.dot_dimension_numbers<[1], [0], [0], [1], [0, 0, 1, 1], [], []>} : vector<40x8xf32>, vector<8x32xf32>, vector<40x32xf32> -> vector<40x32xf32>
    %272 = arith.addf %268, %271 : vector<40x32xf32>
    %c408 = arith.constant 408 : index
    %c0_85 = arith.constant 0 : index
    %273 = vector.load %arg1[%c408, %c0_85] : memref<512x128xf32, #tpu.memory_space<vmem>>, vector<8x32xf32>
    %274 = vector.extract_strided_slice %259 {offsets = [120, 0], sizes = [40, 8], strides = [1, 1]} : vector<160x8xf32> to vector<40x8xf32>
    %cst_86 = arith.constant dense<0.000000e+00> : vector<40x32xf32>
    %275 = tpu.matmul %274, %273, %cst_86 {dimension_numbers = #tpu.dot_dimension_numbers<[1], [0], [0], [1], [0, 0, 1, 1], [], []>} : vector<40x8xf32>, vector<8x32xf32>, vector<40x32xf32> -> vector<40x32xf32>
    %276 = arith.addf %272, %275 : vector<40x32xf32>
    %277 = arith.addf %197, %276 : vector<40x32xf32>
    %cst_87 = arith.constant dense<0.000000e+00> : vector<40xf32>
    %278 = vector.multi_reduction <add>, %277, %cst_87 [1] : vector<40x32xf32> to vector<40xf32>
    %279 = vector.shape_cast %278 : vector<40xf32> to vector<40x1xf32>
    %cst_88 = arith.constant 3.200000e+01 : f32
    %280 = vector.broadcast %cst_88 : f32 to vector<40x1xf32>
    %281 = arith.divf %279, %280 : vector<40x1xf32>
    %282 = vector.broadcast %281 : vector<40x1xf32> to vector<40x32xf32>
    %283 = arith.subf %277, %282 : vector<40x32xf32>
    %284 = arith.mulf %283, %283 : vector<40x32xf32>
    %cst_89 = arith.constant dense<0.000000e+00> : vector<40xf32>
    %285 = vector.multi_reduction <add>, %284, %cst_89 [1] : vector<40x32xf32> to vector<40xf32>
    %286 = vector.shape_cast %285 : vector<40xf32> to vector<40x1xf32>
    %cst_90 = arith.constant 3.200000e+01 : f32
    %287 = vector.broadcast %cst_90 : f32 to vector<40x1xf32>
    %288 = arith.divf %286, %287 : vector<40x1xf32>
    %cst_91 = arith.constant 9.99999996E-13 : f32
    %289 = vector.broadcast %cst_91 : f32 to vector<40x1xf32>
    %290 = arith.addf %288, %289 : vector<40x1xf32>
    %291 = math.rsqrt %290 : vector<40x1xf32>
    %292 = vector.broadcast %281 : vector<40x1xf32> to vector<40x32xf32>
    %293 = arith.subf %277, %292 : vector<40x32xf32>
    %294 = vector.broadcast %291 : vector<40x1xf32> to vector<40x32xf32>
    %295 = arith.mulf %293, %294 : vector<40x32xf32>
    %296 = vector.broadcast %202 : vector<1x32xf32> to vector<40x32xf32>
    %297 = arith.mulf %295, %296 : vector<40x32xf32>
    %298 = vector.broadcast %203 : vector<1x32xf32> to vector<40x32xf32>
    %299 = arith.addf %297, %298 : vector<40x32xf32>
    %c416 = arith.constant 416 : index
    %c0_92 = arith.constant 0 : index
    %300 = vector.load %arg1[%c416, %c0_92] : memref<512x128xf32, #tpu.memory_space<vmem>>, vector<32x64xf32>
    %cst_93 = arith.constant dense<0.000000e+00> : vector<40x64xf32>
    %301 = tpu.matmul %299, %300, %cst_93 {dimension_numbers = #tpu.dot_dimension_numbers<[1], [0], [0], [1], [0, 0, 1, 1], [], []>} : vector<40x32xf32>, vector<32x64xf32>, vector<40x64xf32> -> vector<40x64xf32>
    %302 = vector.broadcast %204 : vector<1x64xf32> to vector<40x64xf32>
    %303 = arith.addf %301, %302 : vector<40x64xf32>
    %304 = arith.mulf %303, %303 : vector<40x64xf32>
    %305 = arith.mulf %303, %304 : vector<40x64xf32>
    %cst_94 = arith.constant 4.471500e-02 : f32
    %306 = vector.broadcast %cst_94 : f32 to vector<40x64xf32>
    %307 = arith.mulf %306, %305 : vector<40x64xf32>
    %308 = arith.addf %303, %307 : vector<40x64xf32>
    %cst_95 = arith.constant 0.797884583 : f32
    %309 = vector.broadcast %cst_95 : f32 to vector<40x64xf32>
    %310 = arith.mulf %309, %308 : vector<40x64xf32>
    %311 = math.tanh %310 : vector<40x64xf32>
    %cst_96 = arith.constant 1.000000e+00 : f32
    %312 = vector.broadcast %cst_96 : f32 to vector<40x64xf32>
    %313 = arith.addf %312, %311 : vector<40x64xf32>
    %cst_97 = arith.constant 5.000000e-01 : f32
    %314 = vector.broadcast %cst_97 : f32 to vector<40x64xf32>
    %315 = arith.mulf %314, %313 : vector<40x64xf32>
    %316 = arith.mulf %303, %315 : vector<40x64xf32>
    %c448 = arith.constant 448 : index
    %c0_98 = arith.constant 0 : index
    %317 = vector.load %arg1[%c448, %c0_98] : memref<512x128xf32, #tpu.memory_space<vmem>>, vector<64x32xf32>
    %cst_99 = arith.constant dense<0.000000e+00> : vector<40x32xf32>
    %318 = tpu.matmul %316, %317, %cst_99 {dimension_numbers = #tpu.dot_dimension_numbers<[1], [0], [0], [1], [0, 0, 1, 1], [], []>} : vector<40x64xf32>, vector<64x32xf32>, vector<40x32xf32> -> vector<40x32xf32>
    %319 = arith.addf %277, %318 : vector<40x32xf32>
    %320 = vector.broadcast %205 : vector<1x32xf32> to vector<40x32xf32>
    %321 = arith.addf %319, %320 : vector<40x32xf32>
    %c129 = arith.constant 129 : index
    %c0_100 = arith.constant 0 : index
    %322 = vector.load %arg1[%c129, %c0_100] : memref<512x128xf32, #tpu.memory_space<vmem>>, vector<1x32xf32>
    %c130 = arith.constant 130 : index
    %c0_101 = arith.constant 0 : index
    %323 = vector.load %arg1[%c130, %c0_101] : memref<512x128xf32, #tpu.memory_space<vmem>>, vector<1x32xf32>
    %cst_102 = arith.constant dense<0.000000e+00> : vector<40xf32>
    %324 = vector.multi_reduction <add>, %321, %cst_102 [1] : vector<40x32xf32> to vector<40xf32>
    %325 = vector.shape_cast %324 : vector<40xf32> to vector<40x1xf32>
    %cst_103 = arith.constant 3.200000e+01 : f32
    %326 = vector.broadcast %cst_103 : f32 to vector<40x1xf32>
    %327 = arith.divf %325, %326 : vector<40x1xf32>
    %328 = vector.broadcast %327 : vector<40x1xf32> to vector<40x32xf32>
    %329 = arith.subf %321, %328 : vector<40x32xf32>
    %330 = arith.mulf %329, %329 : vector<40x32xf32>
    %cst_104 = arith.constant dense<0.000000e+00> : vector<40xf32>
    %331 = vector.multi_reduction <add>, %330, %cst_104 [1] : vector<40x32xf32> to vector<40xf32>
    %332 = vector.shape_cast %331 : vector<40xf32> to vector<40x1xf32>
    %cst_105 = arith.constant 3.200000e+01 : f32
    %333 = vector.broadcast %cst_105 : f32 to vector<40x1xf32>
    %334 = arith.divf %332, %333 : vector<40x1xf32>
    %cst_106 = arith.constant 9.99999996E-13 : f32
    %335 = vector.broadcast %cst_106 : f32 to vector<40x1xf32>
    %336 = arith.addf %334, %335 : vector<40x1xf32>
    %337 = math.rsqrt %336 : vector<40x1xf32>
    %338 = vector.broadcast %327 : vector<40x1xf32> to vector<40x32xf32>
    %339 = arith.subf %321, %338 : vector<40x32xf32>
    %340 = vector.broadcast %337 : vector<40x1xf32> to vector<40x32xf32>
    %341 = arith.mulf %339, %340 : vector<40x32xf32>
    %342 = vector.broadcast %322 : vector<1x32xf32> to vector<40x32xf32>
    %343 = arith.mulf %341, %342 : vector<40x32xf32>
    %344 = vector.broadcast %323 : vector<1x32xf32> to vector<40x32xf32>
    %345 = arith.addf %343, %344 : vector<40x32xf32>
    %c0_107 = arith.constant 0 : index
    %c0_108 = arith.constant 0 : index
    %346 = vector.load %arg2[%c0_107, %c0_108] : memref<40x32xf32, #tpu.memory_space<vmem>>, vector<40x32xf32>
    tpu.vector_store %arg2[%c0_107, %c0_108], %345 {strides = array<i32>} : memref<40x32xf32, #tpu.memory_space<vmem>>, vector<40x32xf32>,
    return
  }
}

</mosaic_0001>

<llo_original>
// kernel: tpu_custom_call.1
$region0: #{tpu_custom_call.1}
  #allocation0 [shape = 'u32[]', space=smem, size = 0x4, offset = 0x4, fixed_abs, tag = 'smem constant byte address 0x4 - core index']
  #allocation1 [shape = 'u32[72,128]{1,0:T(1,128)}', space=vmem, size = 0x9000, scoped, tag = 'internal scratch']
  %s0 = inlined_call_operand.hbm [shape: f32[32,128], index: 0, kind: input, shape index: {}]
  %s1 = inlined_call_operand.hbm [shape: f32[512,128], index: 1, kind: input, shape index: {}]
  %s2 = inlined_call_operand.vmem [shape: f32[40,32], index: 2, kind: output, shape index: {}]
  %s3 = sld [smem:[#allocation0]]
  $region26: #{tpu_custom_call.1} parent=0
    _
  %s5 = ssub.s32 1, %s3
  %s6 = scalar_select 0, %s5, %s3
  $region1: #{tpu_custom_call.1} parent=0
    #allocation2 [shape = 'u8[16384]{0}', space=vmem, size = 0x4000, scoped, tag = 'input window, operand 0, single buffered']
    #allocation3 [shape = 's32[1]{0}', space=sflag, size = 0x4, scoped, tag = 'scoped memory for tpu_custom_call.1']
    #allocation4 [shape = 'u8[262144]{0}', space=vmem, size = 0x40000, scoped, tag = 'input window, operand 1, single buffered']
    #allocation5 [shape = 's32[1]{0}', space=sflag, size = 0x4, scoped, tag = 'scoped memory for tpu_custom_call.1']
    %7 = vsyncpa [#allocation3], 0
    %8 = vsyncpa [#allocation5], 0
    // Predicated region
    $region2: #{tpu_custom_call.1} parent=1 // pred_check
      _
    $region3: #{tpu_custom_call.1} parent=1 // pred_check_branch
      %10 = sbr.rel (0) target = $region5
    $region4: #{tpu_custom_call.1} parent=1 // pred_region
      %12 = vsyncadd [#allocation3], 0
      %s13 = sshll.u32 %s0, 4
      %s14 = int_to_ptr.hbm [resolvable:$true] %s13
      %s15 = sshll.u32 [#allocation2], 4
      %s16 = int_to_ptr.vmem [resolvable:$true] %s15
      %21 = dma.hbm_to_vmem [thread:$0]  %s14, 512, %s16, [#allocation3], 128, 128, 8
    $region5: #{tpu_custom_call.1} parent=1 // pred_fallthru
      _
    // Predicated region
    $region6: #{tpu_custom_call.1} parent=1 // pred_check
      _
    $region7: #{tpu_custom_call.1} parent=1 // pred_check_branch
      %23 = sbr.rel (0) target = $region9
    $region8: #{tpu_custom_call.1} parent=1 // pred_region
      %25 = vsyncadd [#allocation5], 0
      %s26 = sshll.u32 %s1, 4
      %s27 = int_to_ptr.hbm [resolvable:$true] %s26
      %s28 = sshll.u32 [#allocation4], 4
      %s29 = int_to_ptr.vmem [resolvable:$true] %s28
      %34 = dma.hbm_to_vmem [thread:$0]  %s27, 8192, %s29, [#allocation5], 128, 128, 8
    $region9: #{tpu_custom_call.1} parent=1 // pred_fallthru
      _
    // Predicated region
    $region10: #{tpu_custom_call.1} parent=1 // pred_check
      _
    $region11: #{tpu_custom_call.1} parent=1 // pred_check_branch
      %36 = sbr.rel (0) target = $region13
    $region12: #{tpu_custom_call.1} parent=1 // pred_region
      %38 = dma.done [#allocation3], 512
    $region13: #{tpu_custom_call.1} parent=1 // pred_fallthru
      _
    // Predicated region
    $region14: #{tpu_custom_call.1} parent=1 // pred_check
      _
    $region15: #{tpu_custom_call.1} parent=1 // pred_check_branch
      %40 = sbr.rel (0) target = $region17
    $region16: #{tpu_custom_call.1} parent=1 // pred_region
      %42 = dma.done [#allocation5], 8192
    $region17: #{tpu_custom_call.1} parent=1 // pred_fallthru
      _
    %v43 = vld [vmem:[#allocation4] sm:$0xff]
    %v44 = vld [vmem:[#allocation4 + $0x8] sm:$0xff]
    %v45 = vld [vmem:[#allocation4 + $0x10] sm:$0xff]
    %v46 = vld [vmem:[#allocation4 + $0x18] sm:$0xff]
    %v47 = vld [vmem:[#allocation4 + $0x20] sm:$0xff]
    %v48 = vld [vmem:[#allocation4 + $0x28] sm:$0xff]
    %v49 = vld [vmem:[#allocation4 + $0x30] sm:$0xff]
    %v50 = vld [vmem:[#allocation4 + $0x38] sm:$0xff]
    %v51 = vld [vmem:[#allocation4 + $0x40] sm:$0xff]
    %v52 = vld [vmem:[#allocation4 + $0x48] sm:$0xff]
    %v53 = vld [vmem:[#allocation4 + $0x50] sm:$0xff]
    %v54 = vld [vmem:[#allocation4 + $0x58] sm:$0xff]
    %v55 = vld [vmem:[#allocation4 + $0x60] sm:$0xff]
    %v56 = vld [vmem:[#allocation4 + $0x68] sm:$0xff]
    %v57 = vld [vmem:[#allocation4 + $0x70] sm:$0xff]
    %v58 = vld [vmem:[#allocation4 + $0x78] sm:$0xff]
    %v59 = vld [vmem:[#allocation2] sm:$0xff]
    %v60 = vld [vmem:[#allocation2 + $0x8] sm:$0xff]
    %v61 = vld [vmem:[#allocation2 + $0x10] sm:$0xff]
    %v62 = vld [vmem:[#allocation2 + $0x18] sm:$0xff]
    %v63 = vld [vmem:[#allocation4 + $0x80] sm:$0x1]
    %v64 = vperm.slane %v63, 0
    %65 = vmatpush.msra.mxu0 %v58
    %66 = vmatpush.msra.mxu0 %v57
    %67 = vmatpush.msra.mxu0 %v56
    %68 = vmatpush.msra.mxu0 %v55
    %69 = vmatpush.msra.mxu0 %v54
    %70 = vmatpush.msra.mxu0 %v53
    %71 = vmatpush.msra.mxu0 %v52
    %72 = vmatpush.msra.mxu0 %v51
    %73 = vmatpush.msra.mxu0 %v50
    %74 = vmatpush.msra.mxu0 %v49
    %75 = vmatpush.msra.mxu0 %v48
    %76 = vmatpush.msra.mxu0 %v47
    %77 = vmatpush.msra.mxu0 %v46
    %78 = vmatpush.msra.mxu0 %v45
    %79 = vmatpush.msra.mxu0 %v44
    %80 = vmatpush.msra.mxu0 %v43
    %81 = vmatmul.f32.gmra.mxu0 %v59
    %v82 = vpop.f32.mrf.mxu0
    %v83 = vadd.f32 %v64, %v82
    %84 = vmatmul.f32.gmra.mxu0 %v60
    %v85 = vpop.f32.mrf.mxu0
    %v86 = vadd.f32 %v64, %v85
    %87 = vmatmul.f32.gmra.mxu0 %v61
    %v88 = vpop.f32.mrf.mxu0
    %v89 = vadd.f32 %v64, %v88
    %90 = vmatmul.f32.gmra.mxu0 %v62
    %v91 = vpop.f32.mrf.mxu0
    %v92 = vadd.f32 %v64, %v91
    %93 = vdwg.mxu0
    %v94 = vld [vmem:[#allocation4 + $0x88] sm:$0xff]
    %v95 = vld [vmem:[#allocation4 + $0x90] sm:$0xff]
    %v96 = vld [vmem:[#allocation4 + $0x98] sm:$0xff]
    %v97 = vld [vmem:[#allocation4 + $0xa0] sm:$0xff]
    %v98 = vadd.f32 %v83, %v94
    %v99 = vadd.f32 %v86, %v95
    %v100 = vadd.f32 %v89, %v96
    %v101 = vadd.f32 %v92, %v97
    %v102 = vld [vmem:[#allocation4 + $0xa8] sm:$0xff]
    %v103 = vlaneseq
    %v104 = vshrl.u32 %v103, 7
    %v105 = vadd.s32 %v104, 8
    %v106 = vadd.s32 %v104, 16
    %v107 = vadd.s32 %v104, 24
    %v108 = vadd.s32 %v104, 32
    %v109 = vadd.s32 %v104, 40
    %v110 = vadd.s32 %v104, 48
    %v111 = vadd.s32 %v104, 56
    %v112 = vadd.s32 %v104, 64
    %v113 = vadd.s32 %v104, 72
    %v114 = vadd.s32 %v104, 80
    %v115 = vadd.s32 %v104, 88
    %v116 = vadd.s32 %v104, 96
    %v117 = vadd.s32 %v104, 104
    %v118 = vadd.s32 %v104, 112
    %v119 = vadd.s32 %v104, 120
    %v120 = vadd.s32 %v104, 128
    %v121 = vadd.s32 %v104, 136
    %v122 = vadd.s32 %v104, 144
    %v123 = vadd.s32 %v104, 152
    %v124 = vlaneseq
    %v125 = vand.u32 %v124, 127
    %v126 = vadd.s32 %v125, 128
    %vm127 = vcmp.ge.s32.totalorder %v104, 40
    %vm128 = vcmp.ge.s32.totalorder %v105, 40
    %vm129 = vcmp.ge.s32.totalorder %v106, 40
    %vm130 = vcmp.ge.s32.totalorder %v107, 40
    %vm131 = vcmp.ge.s32.totalorder %v108, 40
    %vm132 = vcmp.ge.s32.totalorder %v109, 40
    %vm133 = vcmp.ge.s32.totalorder %v110, 40
    %vm134 = vcmp.ge.s32.totalorder %v111, 40
    %vm135 = vcmp.ge.s32.totalorder %v112, 40
    %vm136 = vcmp.ge.s32.totalorder %v113, 40
    %vm137 = vcmp.ge.s32.totalorder %v114, 40
    %vm138 = vcmp.ge.s32.totalorder %v115, 40
    %vm139 = vcmp.ge.s32.totalorder %v116, 40
    %vm140 = vcmp.ge.s32.totalorder %v117, 40
    %vm141 = vcmp.ge.s32.totalorder %v118, 40
    %vm142 = vcmp.ge.s32.totalorder %v119, 40
    %vm143 = vcmp.ge.s32.totalorder %v120, 40
    %vm144 = vcmp.ge.s32.totalorder %v121, 40
    %vm145 = vcmp.ge.s32.totalorder %v122, 40
    %vm146 = vcmp.ge.s32.totalorder %v123, 40
    %v147 = vsel %vm127, 1, 0
    %v148 = vsel %vm128, 1, 0
    %v149 = vsel %vm129, 1, 0
    %v150 = vsel %vm130, 1, 0
    %v151 = vsel %vm131, 1, 0
    %v152 = vsel %vm132, 1, 0
    %v153 = vsel %vm133, 1, 0
    %v154 = vsel %vm134, 1, 0
    %v155 = vsel %vm135, 1, 0
    %v156 = vsel %vm136, 1, 0
    %v157 = vsel %vm137, 1, 0
    %v158 = vsel %vm138, 1, 0
    %v159 = vsel %vm139, 1, 0
    %v160 = vsel %vm140, 1, 0
    %v161 = vsel %vm141, 1, 0
    %v162 = vsel %vm142, 1, 0
    %v163 = vsel %vm143, 1, 0
    %v164 = vsel %vm144, 1, 0
    %v165 = vsel %vm145, 1, 0
    %v166 = vsel %vm146, 1, 0
    %vm167 = vcmp.ge.s32.totalorder %v104, 80
    %vm168 = vcmp.ge.s32.totalorder %v105, 80
    %vm169 = vcmp.ge.s32.totalorder %v106, 80
    %vm170 = vcmp.ge.s32.totalorder %v107, 80
    %vm171 = vcmp.ge.s32.totalorder %v108, 80
    %vm172 = vcmp.ge.s32.totalorder %v109, 80
    %vm173 = vcmp.ge.s32.totalorder %v110, 80
    %vm174 = vcmp.ge.s32.totalorder %v111, 80
    %vm175 = vcmp.ge.s32.totalorder %v112, 80
    %vm176 = vcmp.ge.s32.totalorder %v113, 80
    %vm177 = vcmp.ge.s32.totalorder %v114, 80
    %vm178 = vcmp.ge.s32.totalorder %v115, 80
    %vm179 = vcmp.ge.s32.totalorder %v116, 80
    %vm180 = vcmp.ge.s32.totalorder %v117, 80
    %vm181 = vcmp.ge.s32.totalorder %v118, 80
    %vm182 = vcmp.ge.s32.totalorder %v119, 80
    %vm183 = vcmp.ge.s32.totalorder %v120, 80
    %vm184 = vcmp.ge.s32.totalorder %v121, 80
    %vm185 = vcmp.ge.s32.totalorder %v122, 80
    %vm186 = vcmp.ge.s32.totalorder %v123, 80
    %v187 = vsel %vm167, 1, 0
    %v188 = vsel %vm168, 1, 0
    %v189 = vsel %vm169, 1, 0
    %v190 = vsel %vm170, 1, 0
    %v191 = vsel %vm171, 1, 0
    %v192 = vsel %vm172, 1, 0
    %v193 = vsel %vm173, 1, 0
    %v194 = vsel %vm174, 1, 0
    %v195 = vsel %vm175, 1, 0
    %v196 = vsel %vm176, 1, 0
    %v197 = vsel %vm177, 1, 0
    %v198 = vsel %vm178, 1, 0
    %v199 = vsel %vm179, 1, 0
    %v200 = vsel %vm180, 1, 0
    %v201 = vsel %vm181, 1, 0
    %v202 = vsel %vm182, 1, 0
    %v203 = vsel %vm183, 1, 0
    %v204 = vsel %vm184, 1, 0
    %v205 = vsel %vm185, 1, 0
    %v206 = vsel %vm186, 1, 0
    %v207 = vadd.s32 %v147, %v187
    %v208 = vadd.s32 %v148, %v188
    %v209 = vadd.s32 %v149, %v189
    %v210 = vadd.s32 %v150, %v190
    %v211 = vadd.s32 %v151, %v191
    %v212 = vadd.s32 %v152, %v192
    %v213 = vadd.s32 %v153, %v193
    %v214 = vadd.s32 %v154, %v194
    %v215 = vadd.s32 %v155, %v195
    %v216 = vadd.s32 %v156, %v196
    %v217 = vadd.s32 %v157, %v197
    %v218 = vadd.s32 %v158, %v198
    %v219 = vadd.s32 %v159, %v199
    %v220 = vadd.s32 %v160, %v200
    %v221 = vadd.s32 %v161, %v201
    %v222 = vadd.s32 %v162, %v202
    %v223 = vadd.s32 %v163, %v203
    %v224 = vadd.s32 %v164, %v204
    %v225 = vadd.s32 %v165, %v205
    %v226 = vadd.s32 %v166, %v206
    %vm227 = vcmp.ge.s32.totalorder %v104, 120
    %vm228 = vcmp.ge.s32.totalorder %v105, 120
    %vm229 = vcmp.ge.s32.totalorder %v106, 120
    %vm230 = vcmp.ge.s32.totalorder %v107, 120
    %vm231 = vcmp.ge.s32.totalorder %v108, 120
    %vm232 = vcmp.ge.s32.totalorder %v109, 120
    %vm233 = vcmp.ge.s32.totalorder %v110, 120
    %vm234 = vcmp.ge.s32.totalorder %v111, 120
    %vm235 = vcmp.ge.s32.totalorder %v112, 120
    %vm236 = vcmp.ge.s32.totalorder %v113, 120
    %vm237 = vcmp.ge.s32.totalorder %v114, 120
    %vm238 = vcmp.ge.s32.totalorder %v115, 120
    %vm239 = vcmp.ge.s32.totalorder %v116, 120
    %vm240 = vcmp.ge.s32.totalorder %v117, 120
    %vm241 = vcmp.ge.s32.totalorder %v118, 120
    %vm242 = vcmp.ge.s32.totalorder %v119, 120
    %vm243 = vcmp.ge.s32.totalorder %v120, 120
    %vm244 = vcmp.ge.s32.totalorder %v121, 120
    %vm245 = vcmp.ge.s32.totalorder %v122, 120
    %vm246 = vcmp.ge.s32.totalorder %v123, 120
    %v247 = vsel %vm227, 1, 0
    %v248 = vsel %vm228, 1, 0
    %v249 = vsel %vm229, 1, 0
    %v250 = vsel %vm230, 1, 0
    %v251 = vsel %vm231, 1, 0
    %v252 = vsel %vm232, 1, 0
    %v253 = vsel %vm233, 1, 0
    %v254 = vsel %vm234, 1, 0
    %v255 = vsel %vm235, 1, 0
    %v256 = vsel %vm236, 1, 0
    %v257 = vsel %vm237, 1, 0
    %v258 = vsel %vm238, 1, 0
    %v259 = vsel %vm239, 1, 0
    %v260 = vsel %vm240, 1, 0
    %v261 = vsel %vm241, 1, 0
    %v262 = vsel %vm242, 1, 0
    %v263 = vsel %vm243, 1, 0
    %v264 = vsel %vm244, 1, 0
    %v265 = vsel %vm245, 1, 0
    %v266 = vsel %vm246, 1, 0
    %v267 = vadd.s32 %v207, %v247
    %v268 = vadd.s32 %v208, %v248
    %v269 = vadd.s32 %v209, %v249
    %v270 = vadd.s32 %v210, %v250
    %v271 = vadd.s32 %v211, %v251
    %v272 = vadd.s32 %v212, %v252
    %v273 = vadd.s32 %v213, %v253
    %v274 = vadd.s32 %v214, %v254
    %v275 = vadd.s32 %v215, %v255
    %v276 = vadd.s32 %v216, %v256
    %v277 = vadd.s32 %v217, %v257
    %v278 = vadd.s32 %v218, %v258
    %v279 = vadd.s32 %v219, %v259
    %v280 = vadd.s32 %v220, %v260
    %v281 = vadd.s32 %v221, %v261
    %v282 = vadd.s32 %v222, %v262
    %v283 = vadd.s32 %v223, %v263
    %v284 = vadd.s32 %v224, %v264
    %v285 = vadd.s32 %v225, %v265
    %v286 = vadd.s32 %v226, %v266
    %v287 = vmul.u32 %v267, 40
    %v288 = vmul.u32 %v268, 40
    %v289 = vmul.u32 %v269, 40
    %v290 = vmul.u32 %v270, 40
    %v291 = vmul.u32 %v271, 40
    %v292 = vmul.u32 %v272, 40
    %v293 = vmul.u32 %v273, 40
    %v294 = vmul.u32 %v274, 40
    %v295 = vmul.u32 %v275, 40
    %v296 = vmul.u32 %v276, 40
    %v297 = vmul.u32 %v277, 40
    %v298 = vmul.u32 %v278, 40
    %v299 = vmul.u32 %v279, 40
    %v300 = vmul.u32 %v280, 40
    %v301 = vmul.u32 %v281, 40
    %v302 = vmul.u32 %v282, 40
    %v303 = vmul.u32 %v283, 40
    %v304 = vmul.u32 %v284, 40
    %v305 = vmul.u32 %v285, 40
    %v306 = vmul.u32 %v286, 40
    %v307 = vsub.s32 %v104, %v287
    %v308 = vsub.s32 %v105, %v288
    %v309 = vsub.s32 %v106, %v289
    %v310 = vsub.s32 %v107, %v290
    %v311 = vsub.s32 %v108, %v291
    %v312 = vsub.s32 %v109, %v292
    %v313 = vsub.s32 %v110, %v293
    %v314 = vsub.s32 %v111, %v294
    %v315 = vsub.s32 %v112, %v295
    %v316 = vsub.s32 %v113, %v296
    %v317 = vsub.s32 %v114, %v297
    %v318 = vsub.s32 %v115, %v298
    %v319 = vsub.s32 %v116, %v299
    %v320 = vsub.s32 %v117, %v300
    %v321 = vsub.s32 %v118, %v301
    %v322 = vsub.s32 %v119, %v302
    %v323 = vsub.s32 %v120, %v303
    %v324 = vsub.s32 %v121, %v304
    %v325 = vsub.s32 %v122, %v305
    %v326 = vsub.s32 %v123, %v306
    %vm327 = vcmp.lt.s32.totalorder %v307, 32
    %vm328 = vcmp.lt.s32.totalorder %v308, 32
    %vm329 = vcmp.lt.s32.totalorder %v309, 32
    %vm330 = vcmp.lt.s32.totalorder %v310, 32
    %vm331 = vcmp.lt.s32.totalorder %v311, 32
    %vm332 = vcmp.lt.s32.totalorder %v312, 32
    %vm333 = vcmp.lt.s32.totalorder %v313, 32
    %vm334 = vcmp.lt.s32.totalorder %v314, 32
    %vm335 = vcmp.lt.s32.totalorder %v315, 32
    %vm336 = vcmp.lt.s32.totalorder %v316, 32
    %vm337 = vcmp.lt.s32.totalorder %v317, 32
    %vm338 = vcmp.lt.s32.totalorder %v318, 32
    %vm339 = vcmp.lt.s32.totalorder %v319, 32
    %vm340 = vcmp.lt.s32.totalorder %v320, 32
    %vm341 = vcmp.lt.s32.totalorder %v321, 32
    %vm342 = vcmp.lt.s32.totalorder %v322, 32
    %vm343 = vcmp.lt.s32.totalorder %v323, 32
    %vm344 = vcmp.lt.s32.totalorder %v324, 32
    %vm345 = vcmp.lt.s32.totalorder %v325, 32
    %vm346 = vcmp.lt.s32.totalorder %v326, 32
    %vm347 = vcmp.ge.s32.totalorder %v307, 16
    %vm348 = vcmp.ge.s32.totalorder %v308, 16
    %vm349 = vcmp.ge.s32.totalorder %v309, 16
    %vm350 = vcmp.ge.s32.totalorder %v310, 16
    %vm351 = vcmp.ge.s32.totalorder %v311, 16
    %vm352 = vcmp.ge.s32.totalorder %v312, 16
    %vm353 = vcmp.ge.s32.totalorder %v313, 16
    %vm354 = vcmp.ge.s32.totalorder %v314, 16
    %vm355 = vcmp.ge.s32.totalorder %v315, 16
    %vm356 = vcmp.ge.s32.totalorder %v316, 16
    %vm357 = vcmp.ge.s32.totalorder %v317, 16
    %vm358 = vcmp.ge.s32.totalorder %v318, 16
    %vm359 = vcmp.ge.s32.totalorder %v319, 16
    %vm360 = vcmp.ge.s32.totalorder %v320, 16
    %vm361 = vcmp.ge.s32.totalorder %v321, 16
    %vm362 = vcmp.ge.s32.totalorder %v322, 16
    %vm363 = vcmp.ge.s32.totalorder %v323, 16
    %vm364 = vcmp.ge.s32.totalorder %v324, 16
    %vm365 = vcmp.ge.s32.totalorder %v325, 16
    %vm366 = vcmp.ge.s32.totalorder %v326, 16
    %v367 = vsel %vm347, 1, 0
    %v368 = vsel %vm348, 1, 0
    %v369 = vsel %vm349, 1, 0
    %v370 = vsel %vm350, 1, 0
    %v371 = vsel %vm351, 1, 0
    %v372 = vsel %vm352, 1, 0
    %v373 = vsel %vm353, 1, 0
    %v374 = vsel %vm354, 1, 0
    %v375 = vsel %vm355, 1, 0
    %v376 = vsel %vm356, 1, 0
    %v377 = vsel %vm357, 1, 0
    %v378 = vsel %vm358, 1, 0
    %v379 = vsel %vm359, 1, 0
    %v380 = vsel %vm360, 1, 0
    %v381 = vsel %vm361, 1, 0
    %v382 = vsel %vm362, 1, 0
    %v383 = vsel %vm363, 1, 0
    %v384 = vsel %vm364, 1, 0
    %v385 = vsel %vm365, 1, 0
    %v386 = vsel %vm366, 1, 0
    %vm387 = vcmp.lt.s32.totalorder %v307, 34
    %vm388 = vcmp.lt.s32.totalorder %v308, 34
    %vm389 = vcmp.lt.s32.totalorder %v309, 34
    %vm390 = vcmp.lt.s32.totalorder %v310, 34
    %vm391 = vcmp.lt.s32.totalorder %v311, 34
    %vm392 = vcmp.lt.s32.totalorder %v312, 34
    %vm393 = vcmp.lt.s32.totalorder %v313, 34
    %vm394 = vcmp.lt.s32.totalorder %v314, 34
    %vm395 = vcmp.lt.s32.totalorder %v315, 34
    %vm396 = vcmp.lt.s32.totalorder %v316, 34
    %vm397 = vcmp.lt.s32.totalorder %v317, 34
    %vm398 = vcmp.lt.s32.totalorder %v318, 34
    %vm399 = vcmp.lt.s32.totalorder %v319, 34
    %vm400 = vcmp.lt.s32.totalorder %v320, 34
    %vm401 = vcmp.lt.s32.totalorder %v321, 34
    %vm402 = vcmp.lt.s32.totalorder %v322, 34
    %vm403 = vcmp.lt.s32.totalorder %v323, 34
    %vm404 = vcmp.lt.s32.totalorder %v324, 34
    %vm405 = vcmp.lt.s32.totalorder %v325, 34
    %vm406 = vcmp.lt.s32.totalorder %v326, 34
    %v407 = vsub.s32 %v307, 32
    %v408 = vsub.s32 %v308, 32
    %v409 = vsub.s32 %v309, 32
    %v410 = vsub.s32 %v310, 32
    %v411 = vsub.s32 %v311, 32
    %v412 = vsub.s32 %v312, 32
    %v413 = vsub.s32 %v313, 32
    %v414 = vsub.s32 %v314, 32
    %v415 = vsub.s32 %v315, 32
    %v416 = vsub.s32 %v316, 32
    %v417 = vsub.s32 %v317, 32
    %v418 = vsub.s32 %v318, 32
    %v419 = vsub.s32 %v319, 32
    %v420 = vsub.s32 %v320, 32
    %v421 = vsub.s32 %v321, 32
    %v422 = vsub.s32 %v322, 32
    %v423 = vsub.s32 %v323, 32
    %v424 = vsub.s32 %v324, 32
    %v425 = vsub.s32 %v325, 32
    %v426 = vsub.s32 %v326, 32
    %v427 = vsel %vm387, %v407, 7
    %v428 = vsel %vm388, %v408, 7
    %v429 = vsel %vm389, %v409, 7
    %v430 = vsel %vm390, %v410, 7
    %v431 = vsel %vm391, %v411, 7
    %v432 = vsel %vm392, %v412, 7
    %v433 = vsel %vm393, %v413, 7
    %v434 = vsel %vm394, %v414, 7
    %v435 = vsel %vm395, %v415, 7
    %v436 = vsel %vm396, %v416, 7
    %v437 = vsel %vm397, %v417, 7
    %v438 = vsel %vm398, %v418, 7
    %v439 = vsel %vm399, %v419, 7
    %v440 = vsel %vm400, %v420, 7
    %v441 = vsel %vm401, %v421, 7
    %v442 = vsel %vm402, %v422, 7
    %v443 = vsel %vm403, %v423, 7
    %v444 = vsel %vm404, %v424, 7
    %v445 = vsel %vm405, %v425, 7
    %v446 = vsel %vm406, %v426, 7
    %v447 = vsel %vm327, %v367, %v427
    %v448 = vsel %vm328, %v368, %v428
    %v449 = vsel %vm329, %v369, %v429
    %v450 = vsel %vm330, %v370, %v430
    %v451 = vsel %vm331, %v371, %v431
    %v452 = vsel %vm332, %v372, %v432
    %v453 = vsel %vm333, %v373, %v433
    %v454 = vsel %vm334, %v374, %v434
    %v455 = vsel %vm335, %v375, %v435
    %v456 = vsel %vm336, %v376, %v436
    %v457 = vsel %vm337, %v377, %v437
    %v458 = vsel %vm338, %v378, %v438
    %v459 = vsel %vm339, %v379, %v439
    %v460 = vsel %vm340, %v380, %v440
    %v461 = vsel %vm341, %v381, %v441
    %v462 = vsel %vm342, %v382, %v442
    %v463 = vsel %vm343, %v383, %v443
    %v464 = vsel %vm344, %v384, %v444
    %v465 = vsel %vm345, %v385, %v445
    %v466 = vsel %vm346, %v386, %v446
    %v467 = vmul.u32 %v267, 8
    %v468 = vmul.u32 %v268, 8
    %v469 = vmul.u32 %v269, 8
    %v470 = vmul.u32 %v270, 8
    %v471 = vmul.u32 %v271, 8
    %v472 = vmul.u32 %v272, 8
    %v473 = vmul.u32 %v273, 8
    %v474 = vmul.u32 %v274, 8
    %v475 = vmul.u32 %v275, 8
    %v476 = vmul.u32 %v276, 8
    %v477 = vmul.u32 %v277, 8
    %v478 = vmul.u32 %v278, 8
    %v479 = vmul.u32 %v279, 8
    %v480 = vmul.u32 %v280, 8
    %v481 = vmul.u32 %v281, 8
    %v482 = vmul.u32 %v282, 8
    %v483 = vmul.u32 %v283, 8
    %v484 = vmul.u32 %v284, 8
    %v485 = vmul.u32 %v285, 8
    %v486 = vmul.u32 %v286, 8
    %v487 = vadd.s32 %v467, %v447
    %v488 = vadd.s32 %v468, %v448
    %v489 = vadd.s32 %v469, %v449
    %v490 = vadd.s32 %v470, %v450
    %v491 = vadd.s32 %v471, %v451
    %v492 = vadd.s32 %v472, %v452
    %v493 = vadd.s32 %v473, %v453
    %v494 = vadd.s32 %v474, %v454
    %v495 = vadd.s32 %v475, %v455
    %v496 = vadd.s32 %v476, %v456
    %v497 = vadd.s32 %v477, %v457
    %v498 = vadd.s32 %v478, %v458
    %v499 = vadd.s32 %v479, %v459
    %v500 = vadd.s32 %v480, %v460
    %v501 = vadd.s32 %v481, %v461
    %v502 = vadd.s32 %v482, %v462
    %v503 = vadd.s32 %v483, %v463
    %v504 = vadd.s32 %v484, %v464
    %v505 = vadd.s32 %v485, %v465
    %v506 = vadd.s32 %v486, %v466
    %vm507 = vcmp.ge.s32.totalorder %v125, 40
    %vm508 = vcmp.ge.s32.totalorder %v126, 40
    %v509 = vsel %vm507, 1, 0
    %v510 = vsel %vm508, 1, 0
    %vm511 = vcmp.ge.s32.totalorder %v125, 80
    %vm512 = vcmp.ge.s32.totalorder %v126, 80
    %v513 = vsel %vm511, 1, 0
    %v514 = vsel %vm512, 1, 0
    %v515 = vadd.s32 %v509, %v513
    %v516 = vadd.s32 %v510, %v514
    %vm517 = vcmp.ge.s32.totalorder %v125, 120
    %vm518 = vcmp.ge.s32.totalorder %v126, 120
    %v519 = vsel %vm517, 1, 0
    %v520 = vsel %vm518, 1, 0
    %v521 = vadd.s32 %v515, %v519
    %v522 = vadd.s32 %v516, %v520
    %v523 = vmul.u32 %v521, 40
    %v524 = vmul.u32 %v522, 40
    %v525 = vsub.s32 %v125, %v523
    %v526 = vsub.s32 %v126, %v524
    %vm527 = vcmp.lt.s32.totalorder %v525, 32
    %vm528 = vcmp.lt.s32.totalorder %v526, 32
    %vm529 = vcmp.ge.s32.totalorder %v525, 16
    %vm530 = vcmp.ge.s32.totalorder %v526, 16
    %v531 = vsel %vm529, 1, 0
    %v532 = vsel %vm530, 1, 0
    %vm533 = vcmp.lt.s32.totalorder %v525, 34
    %vm534 = vcmp.lt.s32.totalorder %v526, 34
    %v535 = vsub.s32 %v525, 32
    %v536 = vsub.s32 %v526, 32
    %v537 = vsel %vm533, %v535, 7
    %v538 = vsel %vm534, %v536, 7
    %v539 = vsel %vm527, %v531, %v537
    %v540 = vsel %vm528, %v532, %v538
    %v541 = vmul.u32 %v521, 8
    %v542 = vmul.u32 %v522, 8
    %v543 = vadd.s32 %v541, %v539
    %v544 = vadd.s32 %v542, %v540
    %vm545 = vcmp.eq.s32.totalorder %v487, %v543
    %vm546 = vcmp.eq.s32.totalorder %v487, %v544
    %vm547 = vcmp.eq.s32.totalorder %v488, %v543
    %vm548 = vcmp.eq.s32.totalorder %v488, %v544
    %vm549 = vcmp.eq.s32.totalorder %v489, %v543
    %vm550 = vcmp.eq.s32.totalorder %v489, %v544
    %vm551 = vcmp.eq.s32.totalorder %v490, %v543
    %vm552 = vcmp.eq.s32.totalorder %v490, %v544
    %vm553 = vcmp.eq.s32.totalorder %v491, %v543
    %vm554 = vcmp.eq.s32.totalorder %v491, %v544
    %vm555 = vcmp.eq.s32.totalorder %v492, %v543
    %vm556 = vcmp.eq.s32.totalorder %v492, %v544
    %vm557 = vcmp.eq.s32.totalorder %v493, %v543
    %vm558 = vcmp.eq.s32.totalorder %v493, %v544
    %vm559 = vcmp.eq.s32.totalorder %v494, %v543
    %vm560 = vcmp.eq.s32.totalorder %v494, %v544
    %vm561 = vcmp.eq.s32.totalorder %v495, %v543
    %vm562 = vcmp.eq.s32.totalorder %v495, %v544
    %vm563 = vcmp.eq.s32.totalorder %v496, %v543
    %vm564 = vcmp.eq.s32.totalorder %v496, %v544
    %vm565 = vcmp.eq.s32.totalorder %v497, %v543
    %vm566 = vcmp.eq.s32.totalorder %v497, %v544
    %vm567 = vcmp.eq.s32.totalorder %v498, %v543
    %vm568 = vcmp.eq.s32.totalorder %v498, %v544
    %vm569 = vcmp.eq.s32.totalorder %v499, %v543
    %vm570 = vcmp.eq.s32.totalorder %v499, %v544
    %vm571 = vcmp.eq.s32.totalorder %v500, %v543
    %vm572 = vcmp.eq.s32.totalorder %v500, %v544
    %vm573 = vcmp.eq.s32.totalorder %v501, %v543
    %vm574 = vcmp.eq.s32.totalorder %v501, %v544
    %vm575 = vcmp.eq.s32.totalorder %v502, %v543
    %vm576 = vcmp.eq.s32.totalorder %v502, %v544
    %vm577 = vcmp.eq.s32.totalorder %v503, %v543
    %vm578 = vcmp.eq.s32.totalorder %v503, %v544
    %vm579 = vcmp.eq.s32.totalorder %v504, %v543
    %vm580 = vcmp.eq.s32.totalorder %v504, %v544
    %vm581 = vcmp.eq.s32.totalorder %v505, %v543
    %vm582 = vcmp.eq.s32.totalorder %v505, %v544
    %vm583 = vcmp.eq.s32.totalorder %v506, %v543
    %vm584 = vcmp.eq.s32.totalorder %v506, %v544
    %v585 = vsel %vm545, 0.0, -1e+30
    %v586 = vsel %vm546, 0.0, -1e+30
    %v587 = vsel %vm547, 0.0, -1e+30
    %v588 = vsel %vm548, 0.0, -1e+30
    %v589 = vsel %vm549, 0.0, -1e+30
    %v590 = vsel %vm550, 0.0, -1e+30
    %v591 = vsel %vm551, 0.0, -1e+30
    %v592 = vsel %vm552, 0.0, -1e+30
    %v593 = vsel %vm553, 0.0, -1e+30
    %v594 = vsel %vm554, 0.0, -1e+30
    %v595 = vsel %vm555, 0.0, -1e+30
    %v596 = vsel %vm556, 0.0, -1e+30
    %v597 = vsel %vm557, 0.0, -1e+30
    %v598 = vsel %vm558, 0.0, -1e+30
    %v599 = vsel %vm559, 0.0, -1e+30
    %v600 = vsel %vm560, 0.0, -1e+30
    %v601 = vsel %vm561, 0.0, -1e+30
    %v602 = vsel %vm562, 0.0, -1e+30
    %v603 = vsel %vm563, 0.0, -1e+30
    %v604 = vsel %vm564, 0.0, -1e+30
    %v605 = vsel %vm565, 0.0, -1e+30
    %v606 = vsel %vm566, 0.0, -1e+30
    %v607 = vsel %vm567, 0.0, -1e+30
    %v608 = vsel %vm568, 0.0, -1e+30
    %v609 = vsel %vm569, 0.0, -1e+30
    %v610 = vsel %vm570, 0.0, -1e+30
    %v611 = vsel %vm571, 0.0, -1e+30
    %v612 = vsel %vm572, 0.0, -1e+30
    %v613 = vsel %vm573, 0.0, -1e+30
    %v614 = vsel %vm574, 0.0, -1e+30
    %v615 = vsel %vm575, 0.0, -1e+30
    %v616 = vsel %vm576, 0.0, -1e+30
    %v617 = vsel %vm577, 0.0, -1e+30
    %v618 = vsel %vm578, 0.0, -1e+30
    %v619 = vsel %vm579, 0.0, -1e+30
    %v620 = vsel %vm580, 0.0, -1e+30
    %v621 = vsel %vm581, 0.0, -1e+30
    %v622 = vsel %vm582, 0.0, -1e+30
    %v623 = vsel %vm583, 0.0, -1e+30
    %v624 = vsel %vm584, 0.0, -1e+30
    %v625 = vld [vmem:[#allocation4 + $0xb0] sm:$0x1]
    %v626 = vld [vmem:[#allocation4 + $0xb1] sm:$0x1]
    %v627 = vld [vmem:[#allocation4 + $0xb2] sm:$0x1]
    %v628 = vld [vmem:[#allocation4 + $0xb3] sm:$0x1]
    %v629 = vld [vmem:[#allocation4 + $0xb4] sm:$0x1]
    %v630 = vld [vmem:[#allocation4 + $0xb5] sm:$0x1]
    %v631 = vld [vmem:[#allocation4 + $0xb6] sm:$0x1]
    %v632 = vld [vmem:[#allocation4 + $0xb7] sm:$0x1]
    %vm633 = vcmask 261120
    %v634 = vsel %vm633, %v98, 0.0
    %635 = vadd.xlane.f32.xlu0 %v634
    %v636 = vpop.xlane.xlu0 %635
    %v637 = vsel %vm633, %v99, 0.0
    %638 = vadd.xlane.f32.xlu0 %v637
    %v639 = vpop.xlane.xlu0 %638
    %v640 = vsel %vm633, %v100, 0.0
    %641 = vadd.xlane.f32.xlu0 %v640
    %v642 = vpop.xlane.xlu0 %641
    %v643 = vsel %vm633, %v101, 0.0
    %644 = vadd.xlane.f32.xlu0 %v643
    %v645 = vpop.xlane.xlu0 %644
    %v646 = vsel %vm633, %v102, 0.0
    %647 = vadd.xlane.f32.xlu0 %v646
    %v648 = vpop.xlane.xlu0 %647
    %v649 = vrcp.pop 32.0
    %v650 = vmul.f32 32.0, %v649
    %v651 = vsub.f32 1.0, %v650
    %v652 = vmul.f32 %v649, %v651
    %v653 = vadd.f32 %v649, %v652
    %vm654 = vweird.f32 %v649
    %v655 = vsel %vm654, %v649, %v653
    %v656 = vmul.f32 %v636, %v655
    %v657 = vmul.f32 %v639, %v655
    %v658 = vmul.f32 %v642, %v655
    %v659 = vmul.f32 %v645, %v655
    %v660 = vmul.f32 %v648, %v655
    %v661 = vsub.f32 %v98, %v656
    %v662 = vsub.f32 %v99, %v657
    %v663 = vsub.f32 %v100, %v658
    %v664 = vsub.f32 %v101, %v659
    %v665 = vsub.f32 %v102, %v660
    %v666 = vmul.f32 %v661, %v661
    %v667 = vmul.f32 %v662, %v662
    %v668 = vmul.f32 %v663, %v663
    %v669 = vmul.f32 %v664, %v664
    %v670 = vmul.f32 %v665, %v665
    %v671 = vsel %vm633, %v666, 0.0
    %672 = vadd.xlane.f32.xlu0 %v671
    %v673 = vpop.xlane.xlu0 %672
    %v674 = vsel %vm633, %v667, 0.0
    %675 = vadd.xlane.f32.xlu0 %v674
    %v676 = vpop.xlane.xlu0 %675
    %v677 = vsel %vm633, %v668, 0.0
    %678 = vadd.xlane.f32.xlu0 %v677
    %v679 = vpop.xlane.xlu0 %678
    %v680 = vsel %vm633, %v669, 0.0
    %681 = vadd.xlane.f32.xlu0 %v680
    %v682 = vpop.xlane.xlu0 %681
    %v683 = vsel %vm633, %v670, 0.0
    %684 = vadd.xlane.f32.xlu0 %v683
    %v685 = vpop.xlane.xlu0 %684
    %v686 = vmul.f32 %v673, %v655
    %v687 = vmul.f32 %v676, %v655
    %v688 = vmul.f32 %v679, %v655
    %v689 = vmul.f32 %v682, %v655
    %v690 = vmul.f32 %v685, %v655
    %v691 = vadd.f32 %v686, 1e-12
    %v692 = vadd.f32 %v687, 1e-12
    %v693 = vadd.f32 %v688, 1e-12
    %v694 = vadd.f32 %v689, 1e-12
    %v695 = vadd.f32 %v690, 1e-12
    %v696 = vrsqrt.pop %v691
    %v697 = vmul.f32 %v696, %v691
    %v698 = vmul.f32 %v697, %v696
    %v699 = vmul.f32 0.5, %v698
    %v700 = vsub.f32 1.5, %v699
    %v701 = vmul.f32 %v696, %v700
    %vm702 = vweird.f32 %v691
    %vm703 = vweird.f32 %v696
    %vm704 = vmor %vm702, %vm703
    %v705 = vsel %vm704, %v696, %v701
    %v706 = vrsqrt.pop %v692
    %v707 = vmul.f32 %v706, %v692
    %v708 = vmul.f32 %v707, %v706
    %v709 = vmul.f32 0.5, %v708
    %v710 = vsub.f32 1.5, %v709
    %v711 = vmul.f32 %v706, %v710
    %vm712 = vweird.f32 %v692
    %vm713 = vweird.f32 %v706
    %vm714 = vmor %vm712, %vm713
    %v715 = vsel %vm714, %v706, %v711
    %v716 = vrsqrt.pop %v693
    %v717 = vmul.f32 %v716, %v693
    %v718 = vmul.f32 %v717, %v716
    %v719 = vmul.f32 0.5, %v718
    %v720 = vsub.f32 1.5, %v719
    %v721 = vmul.f32 %v716, %v720
    %vm722 = vweird.f32 %v693
    %vm723 = vweird.f32 %v716
    %vm724 = vmor %vm722, %vm723
    %v725 = vsel %vm724, %v716, %v721
    %v726 = vrsqrt.pop %v694
    %v727 = vmul.f32 %v726, %v694
    %v728 = vmul.f32 %v727, %v726
    %v729 = vmul.f32 0.5, %v728
    %v730 = vsub.f32 1.5, %v729
    %v731 = vmul.f32 %v726, %v730
    %vm732 = vweird.f32 %v694
    %vm733 = vweird.f32 %v726
    %vm734 = vmor %vm732, %vm733
    %v735 = vsel %vm734, %v726, %v731
    %v736 = vrsqrt.pop %v695
    %v737 = vmul.f32 %v736, %v695
    %v738 = vmul.f32 %v737, %v736
    %v739 = vmul.f32 0.5, %v738
    %v740 = vsub.f32 1.5, %v739
    %v741 = vmul.f32 %v736, %v740
    %vm742 = vweird.f32 %v695
    %vm743 = vweird.f32 %v736
    %vm744 = vmor %vm742, %vm743
    %v745 = vsel %vm744, %v736, %v741
    %v746 = vmul.f32 %v661, %v705
    %v747 = vmul.f32 %v662, %v715
    %v748 = vmul.f32 %v663, %v725
    %v749 = vmul.f32 %v664, %v735
    %v750 = vmul.f32 %v665, %v745
    %v751 = vperm.slane %v625, 0
    %v752 = vmul.f32 %v746, %v751
    %v753 = vmul.f32 %v747, %v751
    %v754 = vmul.f32 %v748, %v751
    %v755 = vmul.f32 %v749, %v751
    %v756 = vmul.f32 %v750, %v751
    %v757 = vperm.slane %v626, 0
    %v758 = vadd.f32 %v752, %v757
    %v759 = vadd.f32 %v753, %v757
    %v760 = vadd.f32 %v754, %v757
    %v761 = vadd.f32 %v755, %v757
    %v762 = vadd.f32 %v756, %v757
    %v763 = vld [vmem:[#allocation4 + $0xb8] sm:$0xff]
    %v764 = vld [vmem:[#allocation4 + $0xc0] sm:$0xff]
    %v765 = vld [vmem:[#allocation4 + $0xc8] sm:$0xff]
    %v766 = vld [vmem:[#allocation4 + $0xd0] sm:$0xff]
    %v767 = vperm.slane %v627, 0
    %v769 = vsel %vm633, %v758, 0
    %v772 = vsel %vm633, %v759, 0
    %v775 = vsel %vm633, %v760, 0
    %v778 = vsel %vm633, %v761, 0
    %v781 = vsel %vm633, %v762, 0
    %783 = vmatpush.msra.mxu0 0.0
    %784 = vmatpush.msra.mxu0 0.0
    %785 = vmatpush.msra.mxu0 0.0
    %786 = vmatpush.msra.mxu0 0.0
    %787 = vmatpush.msra.mxu0 0.0
    %788 = vmatpush.msra.mxu0 0.0
    %789 = vmatpush.msra.mxu0 0.0
    %790 = vmatpush.msra.mxu0 0.0
    %791 = vmatpush.msra.mxu0 0.0
    %792 = vmatpush.msra.mxu0 0.0
    %793 = vmatpush.msra.mxu0 0.0
    %794 = vmatpush.msra.mxu0 0.0
    %795 = vmatpush.msra.mxu0 %v766
    %796 = vmatpush.msra.mxu0 %v765
    %797 = vmatpush.msra.mxu0 %v764
    %798 = vmatpush.msra.mxu0 %v763
    %799 = vmatmul.f32.gmra.mxu0 %v769
    %v800 = vpop.f32.mrf.mxu0
    %v801 = vadd.f32 %v767, %v800
    %802 = vmatmul.f32.gmra.mxu0 %v772
    %v803 = vpop.f32.mrf.mxu0
    %v804 = vadd.f32 %v767, %v803
    %805 = vmatmul.f32.gmra.mxu0 %v775
    %v806 = vpop.f32.mrf.mxu0
    %v807 = vadd.f32 %v767, %v806
    %808 = vmatmul.f32.gmra.mxu0 %v778
    %v809 = vpop.f32.mrf.mxu0
    %v810 = vadd.f32 %v767, %v809
    %811 = vmatmul.f32.gmra.mxu0 %v781
    %v812 = vpop.f32.mrf.mxu0
    %v813 = vadd.f32 %v767, %v812
    %814 = vdwg.mxu0
    %820 = vrot.lane.b32.xlu0 %v801, 120
    %v821 = vpop.permute.xlu0 %820
    %822 = vrot.lane.b32.xlu0 %v804, 120
    %v823 = vpop.permute.xlu0 %822
    %824 = vrot.lane.b32.xlu0 %v807, 120
    %v825 = vpop.permute.xlu0 %824
    %826 = vrot.lane.b32.xlu0 %v810, 120
    %v827 = vpop.permute.xlu0 %826
    %828 = vrot.lane.b32.xlu0 %v813, 120
    %v829 = vpop.permute.xlu0 %828
    %830 = vrot.lane.b32.xlu0 %v801, 112
    %v831 = vpop.permute.xlu0 %830
    %832 = vrot.lane.b32.xlu0 %v804, 112
    %v833 = vpop.permute.xlu0 %832
    %834 = vrot.lane.b32.xlu0 %v807, 112
    %v835 = vpop.permute.xlu0 %834
    %836 = vrot.lane.b32.xlu0 %v810, 112
    %v837 = vpop.permute.xlu0 %836
    %838 = vrot.lane.b32.xlu0 %v813, 112
    %v839 = vpop.permute.xlu0 %838
    %840 = vrot.lane.b32.xlu0 %v801, 104
    %v841 = vpop.permute.xlu0 %840
    %842 = vrot.lane.b32.xlu0 %v804, 104
    %v843 = vpop.permute.xlu0 %842
    %844 = vrot.lane.b32.xlu0 %v807, 104
    %v845 = vpop.permute.xlu0 %844
    %846 = vrot.lane.b32.xlu0 %v810, 104
    %v847 = vpop.permute.xlu0 %846
    %848 = vrot.lane.b32.xlu0 %v813, 104
    %v849 = vpop.permute.xlu0 %848
    %850 = vrot.lane.b32.xlu0 %v801, 96
    %v851 = vpop.permute.xlu0 %850
    %852 = vrot.lane.b32.xlu0 %v804, 96
    %v853 = vpop.permute.xlu0 %852
    %854 = vrot.lane.b32.xlu0 %v807, 96
    %v855 = vpop.permute.xlu0 %854
    %856 = vrot.lane.b32.xlu0 %v810, 96
    %v857 = vpop.permute.xlu0 %856
    %858 = vrot.lane.b32.xlu0 %v813, 96
    %v859 = vpop.permute.xlu0 %858
    %860 = vrot.lane.b32.xlu0 %v821, 96
    %v861 = vpop.permute.xlu0 %860
    %862 = vrot.lane.b32.xlu0 %v823, 96
    %v863 = vpop.permute.xlu0 %862
    %864 = vrot.lane.b32.xlu0 %v825, 96
    %v865 = vpop.permute.xlu0 %864
    %866 = vrot.lane.b32.xlu0 %v827, 96
    %v867 = vpop.permute.xlu0 %866
    %868 = vrot.lane.b32.xlu0 %v829, 96
    %v869 = vpop.permute.xlu0 %868
    %870 = vrot.lane.b32.xlu0 %v831, 96
    %v871 = vpop.permute.xlu0 %870
    %872 = vrot.lane.b32.xlu0 %v833, 96
    %v873 = vpop.permute.xlu0 %872
    %874 = vrot.lane.b32.xlu0 %v835, 96
    %v875 = vpop.permute.xlu0 %874
    %876 = vrot.lane.b32.xlu0 %v837, 96
    %v877 = vpop.permute.xlu0 %876
    %878 = vrot.lane.b32.xlu0 %v839, 96
    %v879 = vpop.permute.xlu0 %878
    %880 = vrot.lane.b32.xlu0 %v841, 96
    %v881 = vpop.permute.xlu0 %880
    %882 = vrot.lane.b32.xlu0 %v843, 96
    %v883 = vpop.permute.xlu0 %882
    %884 = vrot.lane.b32.xlu0 %v845, 96
    %v885 = vpop.permute.xlu0 %884
    %886 = vrot.lane.b32.xlu0 %v847, 96
    %v887 = vpop.permute.xlu0 %886
    %888 = vrot.lane.b32.xlu0 %v849, 96
    %v889 = vpop.permute.xlu0 %888
    %vm890 = vcmask 64512
    %v891 = vsel %vm890, %v801, 0
    %v893 = vsel %vm890, %v804, 0
    %v895 = vsel %vm890, %v807, 0
    %v897 = vsel %vm890, %v810, 0
    %v899 = vsel %vm890, %v813, 0
    %v901 = vsel %vm890, %v821, 0
    %v903 = vsel %vm890, %v823, 0
    %v905 = vsel %vm890, %v825, 0
    %v907 = vsel %vm890, %v827, 0
    %v909 = vsel %vm890, %v829, 0
    %v911 = vsel %vm890, %v831, 0
    %v913 = vsel %vm890, %v833, 0
    %v915 = vsel %vm890, %v835, 0
    %v917 = vsel %vm890, %v837, 0
    %v919 = vsel %vm890, %v839, 0
    %v921 = vsel %vm890, %v841, 0
    %v923 = vsel %vm890, %v843, 0
    %v925 = vsel %vm890, %v845, 0
    %v927 = vsel %vm890, %v847, 0
    %v929 = vsel %vm890, %v849, 0
    %v931 = vsel %vm890, %v851, 0
    %v933 = vsel %vm890, %v853, 0
    %v935 = vsel %vm890, %v855, 0
    %v937 = vsel %vm890, %v857, 0
    %v939 = vsel %vm890, %v859, 0
    %v941 = vsel %vm890, %v861, 0
    %v943 = vsel %vm890, %v863, 0
    %v945 = vsel %vm890, %v865, 0
    %v947 = vsel %vm890, %v867, 0
    %v949 = vsel %vm890, %v869, 0
    %v951 = vsel %vm890, %v871, 0
    %v953 = vsel %vm890, %v873, 0
    %v955 = vsel %vm890, %v875, 0
    %v957 = vsel %vm890, %v877, 0
    %v959 = vsel %vm890, %v879, 0
    %v961 = vsel %vm890, %v881, 0
    %v963 = vsel %vm890, %v883, 0
    %v965 = vsel %vm890, %v885, 0
    %v967 = vsel %vm890, %v887, 0
    %v969 = vsel %vm890, %v889, 0
    %971 = vmatpush.xpose.msra.mxu0 %v961
    %972 = vmatpush.xpose.msra.mxu0 %v959
    %973 = vmatpush.xpose.msra.mxu0 %v957
    %974 = vmatpush.xpose.msra.mxu0 %v955
    %975 = vmatpush.xpose.msra.mxu0 %v953
    %976 = vmatpush.xpose.msra.mxu0 %v951
    %977 = vmatpush.xpose.msra.mxu0 %v949
    %978 = vmatpush.xpose.msra.mxu0 %v947
    %979 = vmatpush.xpose.msra.mxu0 %v945
    %980 = vmatpush.xpose.msra.mxu0 %v943
    %981 = vmatpush.xpose.msra.mxu0 %v941
    %982 = vmatpush.xpose.msra.mxu0 %v939
    %983 = vmatpush.xpose.msra.mxu0 %v937
    %984 = vmatpush.xpose.msra.mxu0 %v935
    %985 = vmatpush.xpose.msra.mxu0 %v933
    %986 = vmatpush.xpose.msra.mxu0 %v931
    %987 = vmatmul.f32.gmra.mxu0 %v891
    %v988 = vpop.f32.mrf.mxu0
    %v989 = vadd.f32 %v585, %v988
    %990 = vmatmul.f32.gmra.mxu0 %v893
    %v991 = vpop.f32.mrf.mxu0
    %v992 = vadd.f32 %v587, %v991
    %993 = vmatmul.f32.gmra.mxu0 %v895
    %v994 = vpop.f32.mrf.mxu0
    %v995 = vadd.f32 %v589, %v994
    %996 = vmatmul.f32.gmra.mxu0 %v897
    %v997 = vpop.f32.mrf.mxu0
    %v998 = vadd.f32 %v591, %v997
    %999 = vmatmul.f32.gmra.mxu0 %v899
    %v1000 = vpop.f32.mrf.mxu0
    %v1001 = vadd.f32 %v593, %v1000
    %1002 = vmatmul.f32.gmra.mxu0 %v901
    %v1003 = vpop.f32.mrf.mxu0
    %v1004 = vadd.f32 %v595, %v1003
    %1005 = vmatmul.f32.gmra.mxu0 %v903
    %v1006 = vpop.f32.mrf.mxu0
    %v1007 = vadd.f32 %v597, %v1006
    %1008 = vmatmul.f32.gmra.mxu0 %v905
    %v1009 = vpop.f32.mrf.mxu0
    %v1010 = vadd.f32 %v599, %v1009
    %1011 = vmatmul.f32.gmra.mxu0 %v907
    %v1012 = vpop.f32.mrf.mxu0
    %v1013 = vadd.f32 %v601, %v1012
    %1014 = vmatmul.f32.gmra.mxu0 %v909
    %v1015 = vpop.f32.mrf.mxu0
    %v1016 = vadd.f32 %v603, %v1015
    %1017 = vmatmul.f32.gmra.mxu0 %v911
    %v1018 = vpop.f32.mrf.mxu0
    %v1019 = vadd.f32 %v605, %v1018
    %1020 = vmatmul.f32.gmra.mxu0 %v913
    %v1021 = vpop.f32.mrf.mxu0
    %v1022 = vadd.f32 %v607, %v1021
    %1023 = vmatmul.f32.gmra.mxu0 %v915
    %v1024 = vpop.f32.mrf.mxu0
    %v1025 = vadd.f32 %v609, %v1024
    %1026 = vmatmul.f32.gmra.mxu0 %v917
    %v1027 = vpop.f32.mrf.mxu0
    %v1028 = vadd.f32 %v611, %v1027
    %1029 = vmatmul.f32.gmra.mxu0 %v919
    %v1030 = vpop.f32.mrf.mxu0
    %v1031 = vadd.f32 %v613, %v1030
    %1032 = vmatmul.f32.gmra.mxu0 %v921
    %v1033 = vpop.f32.mrf.mxu0
    %v1034 = vadd.f32 %v615, %v1033
    %1035 = vmatmul.f32.gmra.mxu0 %v923
    %v1036 = vpop.f32.mrf.mxu0
    %v1037 = vadd.f32 %v617, %v1036
    %1038 = vmatmul.f32.gmra.mxu0 %v925
    %v1039 = vpop.f32.mrf.mxu0
    %v1040 = vadd.f32 %v619, %v1039
    %1041 = vmatmul.f32.gmra.mxu0 %v927
    %v1042 = vpop.f32.mrf.mxu0
    %v1043 = vadd.f32 %v621, %v1042
    %1044 = vmatmul.f32.gmra.mxu0 %v929
    %v1045 = vpop.f32.mrf.mxu0
    %v1046 = vadd.f32 %v623, %v1045
    %1047 = vdwg.mxu0
    %1048 = vmatpush.xpose.msra.mxu0 0.0
    %1049 = vmatpush.xpose.msra.mxu0 0.0
    %1050 = vmatpush.xpose.msra.mxu0 0.0
    %1051 = vmatpush.xpose.msra.mxu0 0.0
    %1052 = vmatpush.xpose.msra.mxu0 0.0
    %1053 = vmatpush.xpose.msra.mxu0 0.0
    %1054 = vmatpush.xpose.msra.mxu0 0.0
    %1055 = vmatpush.xpose.msra.mxu0 0.0
    %1056 = vmatpush.xpose.msra.mxu0 0.0
    %1057 = vmatpush.xpose.msra.mxu0 0.0
    %1058 = vmatpush.xpose.msra.mxu0 0.0
    %1059 = vmatpush.xpose.msra.mxu0 0.0
    %1060 = vmatpush.xpose.msra.mxu0 %v969
    %1061 = vmatpush.xpose.msra.mxu0 %v967
    %1062 = vmatpush.xpose.msra.mxu0 %v965
    %1063 = vmatpush.xpose.msra.mxu0 %v963
    %1064 = vmatmul.f32.gmra.mxu0 %v891
    %v1065 = vpop.f32.mrf.mxu0
    %v1066 = vadd.f32 %v586, %v1065
    %1067 = vmatmul.f32.gmra.mxu0 %v893
    %v1068 = vpop.f32.mrf.mxu0
    %v1069 = vadd.f32 %v588, %v1068
    %1070 = vmatmul.f32.gmra.mxu0 %v895
    %v1071 = vpop.f32.mrf.mxu0
    %v1072 = vadd.f32 %v590, %v1071
    %1073 = vmatmul.f32.gmra.mxu0 %v897
    %v1074 = vpop.f32.mrf.mxu0
    %v1075 = vadd.f32 %v592, %v1074
    %1076 = vmatmul.f32.gmra.mxu0 %v899
    %v1077 = vpop.f32.mrf.mxu0
    %v1078 = vadd.f32 %v594, %v1077
    %1079 = vmatmul.f32.gmra.mxu0 %v901
    %v1080 = vpop.f32.mrf.mxu0
    %v1081 = vadd.f32 %v596, %v1080
    %1082 = vmatmul.f32.gmra.mxu0 %v903
    %v1083 = vpop.f32.mrf.mxu0
    %v1084 = vadd.f32 %v598, %v1083
    %1085 = vmatmul.f32.gmra.mxu0 %v905
    %v1086 = vpop.f32.mrf.mxu0
    %v1087 = vadd.f32 %v600, %v1086
    %1088 = vmatmul.f32.gmra.mxu0 %v907
    %v1089 = vpop.f32.mrf.mxu0
    %v1090 = vadd.f32 %v602, %v1089
    %1091 = vmatmul.f32.gmra.mxu0 %v909
    %v1092 = vpop.f32.mrf.mxu0
    %v1093 = vadd.f32 %v604, %v1092
    %1094 = vmatmul.f32.gmra.mxu0 %v911
    %v1095 = vpop.f32.mrf.mxu0
    %v1096 = vadd.f32 %v606, %v1095
    %1097 = vmatmul.f32.gmra.mxu0 %v913
    %v1098 = vpop.f32.mrf.mxu0
    %v1099 = vadd.f32 %v608, %v1098
    %1100 = vmatmul.f32.gmra.mxu0 %v915
    %v1101 = vpop.f32.mrf.mxu0
    %v1102 = vadd.f32 %v610, %v1101
    %1103 = vmatmul.f32.gmra.mxu0 %v917
    %v1104 = vpop.f32.mrf.mxu0
    %v1105 = vadd.f32 %v612, %v1104
    %1106 = vmatmul.f32.gmra.mxu0 %v919
    %v1107 = vpop.f32.mrf.mxu0
    %v1108 = vadd.f32 %v614, %v1107
    %1109 = vmatmul.f32.gmra.mxu0 %v921
    %v1110 = vpop.f32.mrf.mxu0
    %v1111 = vadd.f32 %v616, %v1110
    %1112 = vmatmul.f32.gmra.mxu0 %v923
    %v1113 = vpop.f32.mrf.mxu0
    %v1114 = vadd.f32 %v618, %v1113
    %1115 = vmatmul.f32.gmra.mxu0 %v925
    %v1116 = vpop.f32.mrf.mxu0
    %v1117 = vadd.f32 %v620, %v1116
    %1118 = vmatmul.f32.gmra.mxu0 %v927
    %v1119 = vpop.f32.mrf.mxu0
    %v1120 = vadd.f32 %v622, %v1119
    %1121 = vmatmul.f32.gmra.mxu0 %v929
    %v1122 = vpop.f32.mrf.mxu0
    %v1123 = vadd.f32 %v624, %v1122
    %1124 = vdwg.mxu0
    %v1125 = vsel %vm633, %v1066, -inf
    %v1126 = vmax.f32 %v989, %v1125
    %1127 = vmax.xlane.f32.xlu0 %v1126
    %v1128 = vpop.xlane.xlu0 %1127
    %v1129 = vsel %vm633, %v1069, -inf
    %v1130 = vmax.f32 %v992, %v1129
    %1131 = vmax.xlane.f32.xlu0 %v1130
    %v1132 = vpop.xlane.xlu0 %1131
    %v1133 = vsel %vm633, %v1072, -inf
    %v1134 = vmax.f32 %v995, %v1133
    %1135 = vmax.xlane.f32.xlu0 %v1134
    %v1136 = vpop.xlane.xlu0 %1135
    %v1137 = vsel %vm633, %v1075, -inf
    %v1138 = vmax.f32 %v998, %v1137
    %1139 = vmax.xlane.f32.xlu0 %v1138
    %v1140 = vpop.xlane.xlu0 %1139
    %v1141 = vsel %vm633, %v1078, -inf
    %v1142 = vmax.f32 %v1001, %v1141
    %1143 = vmax.xlane.f32.xlu0 %v1142
    %v1144 = vpop.xlane.xlu0 %1143
    %v1145 = vsel %vm633, %v1081, -inf
    %v1146 = vmax.f32 %v1004, %v1145
    %1147 = vmax.xlane.f32.xlu0 %v1146
    %v1148 = vpop.xlane.xlu0 %1147
    %v1149 = vsel %vm633, %v1084, -inf
    %v1150 = vmax.f32 %v1007, %v1149
    %1151 = vmax.xlane.f32.xlu0 %v1150
    %v1152 = vpop.xlane.xlu0 %1151
    %v1153 = vsel %vm633, %v1087, -inf
    %v1154 = vmax.f32 %v1010, %v1153
    %1155 = vmax.xlane.f32.xlu0 %v1154
    %v1156 = vpop.xlane.xlu0 %1155
    %v1157 = vsel %vm633, %v1090, -inf
    %v1158 = vmax.f32 %v1013, %v1157
    %1159 = vmax.xlane.f32.xlu0 %v1158
    %v1160 = vpop.xlane.xlu0 %1159
    %v1161 = vsel %vm633, %v1093, -inf
    %v1162 = vmax.f32 %v1016, %v1161
    %1163 = vmax.xlane.f32.xlu0 %v1162
    %v1164 = vpop.xlane.xlu0 %1163
    %v1165 = vsel %vm633, %v1096, -inf
    %v1166 = vmax.f32 %v1019, %v1165
    %1167 = vmax.xlane.f32.xlu0 %v1166
    %v1168 = vpop.xlane.xlu0 %1167
    %v1169 = vsel %vm633, %v1099, -inf
    %v1170 = vmax.f32 %v1022, %v1169
    %1171 = vmax.xlane.f32.xlu0 %v1170
    %v1172 = vpop.xlane.xlu0 %1171
    %v1173 = vsel %vm633, %v1102, -inf
    %v1174 = vmax.f32 %v1025, %v1173
    %1175 = vmax.xlane.f32.xlu0 %v1174
    %v1176 = vpop.xlane.xlu0 %1175
    %v1177 = vsel %vm633, %v1105, -inf
    %v1178 = vmax.f32 %v1028, %v1177
    %1179 = vmax.xlane.f32.xlu0 %v1178
    %v1180 = vpop.xlane.xlu0 %1179
    %v1181 = vsel %vm633, %v1108, -inf
    %v1182 = vmax.f32 %v1031, %v1181
    %1183 = vmax.xlane.f32.xlu0 %v1182
    %v1184 = vpop.xlane.xlu0 %1183
    %v1185 = vsel %vm633, %v1111, -inf
    %v1186 = vmax.f32 %v1034, %v1185
    %1187 = vmax.xlane.f32.xlu0 %v1186
    %v1188 = vpop.xlane.xlu0 %1187
    %v1189 = vsel %vm633, %v1114, -inf
    %v1190 = vmax.f32 %v1037, %v1189
    %1191 = vmax.xlane.f32.xlu0 %v1190
    %v1192 = vpop.xlane.xlu0 %1191
    %v1193 = vsel %vm633, %v1117, -inf
    %v1194 = vmax.f32 %v1040, %v1193
    %1195 = vmax.xlane.f32.xlu0 %v1194
    %v1196 = vpop.xlane.xlu0 %1195
    %v1197 = vsel %vm633, %v1120, -inf
    %v1198 = vmax.f32 %v1043, %v1197
    %1199 = vmax.xlane.f32.xlu0 %v1198
    %v1200 = vpop.xlane.xlu0 %1199
    %v1201 = vsel %vm633, %v1123, -inf
    %v1202 = vmax.f32 %v1046, %v1201
    %1203 = vmax.xlane.f32.xlu0 %v1202
    %v1204 = vpop.xlane.xlu0 %1203
    %v1205 = vsub.f32 %v989, %v1128
    %v1206 = vsub.f32 %v1066, %v1128
    %v1207 = vsub.f32 %v992, %v1132
    %v1208 = vsub.f32 %v1069, %v1132
    %v1209 = vsub.f32 %v995, %v1136
    %v1210 = vsub.f32 %v1072, %v1136
    %v1211 = vsub.f32 %v998, %v1140
    %v1212 = vsub.f32 %v1075, %v1140
    %v1213 = vsub.f32 %v1001, %v1144
    %v1214 = vsub.f32 %v1078, %v1144
    %v1215 = vsub.f32 %v1004, %v1148
    %v1216 = vsub.f32 %v1081, %v1148
    %v1217 = vsub.f32 %v1007, %v1152
    %v1218 = vsub.f32 %v1084, %v1152
    %v1219 = vsub.f32 %v1010, %v1156
    %v1220 = vsub.f32 %v1087, %v1156
    %v1221 = vsub.f32 %v1013, %v1160
    %v1222 = vsub.f32 %v1090, %v1160
    %v1223 = vsub.f32 %v1016, %v1164
    %v1224 = vsub.f32 %v1093, %v1164
    %v1225 = vsub.f32 %v1019, %v1168
    %v1226 = vsub.f32 %v1096, %v1168
    %v1227 = vsub.f32 %v1022, %v1172
    %v1228 = vsub.f32 %v1099, %v1172
    %v1229 = vsub.f32 %v1025, %v1176
    %v1230 = vsub.f32 %v1102, %v1176
    %v1231 = vsub.f32 %v1028, %v1180
    %v1232 = vsub.f32 %v1105, %v1180
    %v1233 = vsub.f32 %v1031, %v1184
    %v1234 = vsub.f32 %v1108, %v1184
    %v1235 = vsub.f32 %v1034, %v1188
    %v1236 = vsub.f32 %v1111, %v1188
    %v1237 = vsub.f32 %v1037, %v1192
    %v1238 = vsub.f32 %v1114, %v1192
    %v1239 = vsub.f32 %v1040, %v1196
    %v1240 = vsub.f32 %v1117, %v1196
    %v1241 = vsub.f32 %v1043, %v1200
    %v1242 = vsub.f32 %v1120, %v1200
    %v1243 = vsub.f32 %v1046, %v1204
    %v1244 = vsub.f32 %v1123, %v1204
    %v1245 = vmul.f32 %v1205, 1.442695
    %v1246 = vpow.pop %v1245
    %v1247 = vmul.f32 %v1206, 1.442695
    %v1248 = vpow.pop %v1247
    %v1249 = vmul.f32 %v1207, 1.442695
    %v1250 = vpow.pop %v1249
    %v1251 = vmul.f32 %v1208, 1.442695
    %v1252 = vpow.pop %v1251
    %v1253 = vmul.f32 %v1209, 1.442695
    %v1254 = vpow.pop %v1253
    %v1255 = vmul.f32 %v1210, 1.442695
    %v1256 = vpow.pop %v1255
    %v1257 = vmul.f32 %v1211, 1.442695
    %v1258 = vpow.pop %v1257
    %v1259 = vmul.f32 %v1212, 1.442695
    %v1260 = vpow.pop %v1259
    %v1261 = vmul.f32 %v1213, 1.442695
    %v1262 = vpow.pop %v1261
    %v1263 = vmul.f32 %v1214, 1.442695
    %v1264 = vpow.pop %v1263
    %v1265 = vmul.f32 %v1215, 1.442695
    %v1266 = vpow.pop %v1265
    %v1267 = vmul.f32 %v1216, 1.442695
    %v1268 = vpow.pop %v1267
    %v1269 = vmul.f32 %v1217, 1.442695
    %v1270 = vpow.pop %v1269
    %v1271 = vmul.f32 %v1218, 1.442695
    %v1272 = vpow.pop %v1271
    %v1273 = vmul.f32 %v1219, 1.442695
    %v1274 = vpow.pop %v1273
    %v1275 = vmul.f32 %v1220, 1.442695
    %v1276 = vpow.pop %v1275
    %v1277 = vmul.f32 %v1221, 1.442695
    %v1278 = vpow.pop %v1277
    %v1279 = vmul.f32 %v1222, 1.442695
    %v1280 = vpow.pop %v1279
    %v1281 = vmul.f32 %v1223, 1.442695
    %v1282 = vpow.pop %v1281
    %v1283 = vmul.f32 %v1224, 1.442695
    %v1284 = vpow.pop %v1283
    %v1285 = vmul.f32 %v1225, 1.442695
    %v1286 = vpow.pop %v1285
    %v1287 = vmul.f32 %v1226, 1.442695
    %v1288 = vpow.pop %v1287
    %v1289 = vmul.f32 %v1227, 1.442695
    %v1290 = vpow.pop %v1289
    %v1291 = vmul.f32 %v1228, 1.442695
    %v1292 = vpow.pop %v1291
    %v1293 = vmul.f32 %v1229, 1.442695
    %v1294 = vpow.pop %v1293
    %v1295 = vmul.f32 %v1230, 1.442695
    %v1296 = vpow.pop %v1295
    %v1297 = vmul.f32 %v1231, 1.442695
    %v1298 = vpow.pop %v1297
    %v1299 = vmul.f32 %v1232, 1.442695
    %v1300 = vpow.pop %v1299
    %v1301 = vmul.f32 %v1233, 1.442695
    %v1302 = vpow.pop %v1301
    %v1303 = vmul.f32 %v1234, 1.442695
    %v1304 = vpow.pop %v1303
    %v1305 = vmul.f32 %v1235, 1.442695
    %v1306 = vpow.pop %v1305
    %v1307 = vmul.f32 %v1236, 1.442695
    %v1308 = vpow.pop %v1307
    %v1309 = vmul.f32 %v1237, 1.442695
    %v1310 = vpow.pop %v1309
    %v1311 = vmul.f32 %v1238, 1.442695
    %v1312 = vpow.pop %v1311
    %v1313 = vmul.f32 %v1239, 1.442695
    %v1314 = vpow.pop %v1313
    %v1315 = vmul.f32 %v1240, 1.442695
    %v1316 = vpow.pop %v1315
    %v1317 = vmul.f32 %v1241, 1.442695
    %v1318 = vpow.pop %v1317
    %v1319 = vmul.f32 %v1242, 1.442695
    %v1320 = vpow.pop %v1319
    %v1321 = vmul.f32 %v1243, 1.442695
    %v1322 = vpow.pop %v1321
    %v1323 = vmul.f32 %v1244, 1.442695
    %v1324 = vpow.pop %v1323
    %v1325 = vsel %vm633, %v1248, 0.0
    %v1326 = vadd.f32 %v1246, %v1325
    %1327 = vadd.xlane.f32.xlu0 %v1326
    %v1328 = vpop.xlane.xlu0 %1327
    %v1329 = vsel %vm633, %v1252, 0.0
    %v1330 = vadd.f32 %v1250, %v1329
    %1331 = vadd.xlane.f32.xlu0 %v1330
    %v1332 = vpop.xlane.xlu0 %1331
    %v1333 = vsel %vm633, %v1256, 0.0
    %v1334 = vadd.f32 %v1254, %v1333
    %1335 = vadd.xlane.f32.xlu0 %v1334
    %v1336 = vpop.xlane.xlu0 %1335
    %v1337 = vsel %vm633, %v1260, 0.0
    %v1338 = vadd.f32 %v1258, %v1337
    %1339 = vadd.xlane.f32.xlu0 %v1338
    %v1340 = vpop.xlane.xlu0 %1339
    %v1341 = vsel %vm633, %v1264, 0.0
    %v1342 = vadd.f32 %v1262, %v1341
    %1343 = vadd.xlane.f32.xlu0 %v1342
    %v1344 = vpop.xlane.xlu0 %1343
    %v1345 = vsel %vm633, %v1268, 0.0
    %v1346 = vadd.f32 %v1266, %v1345
    %1347 = vadd.xlane.f32.xlu0 %v1346
    %v1348 = vpop.xlane.xlu0 %1347
    %v1349 = vsel %vm633, %v1272, 0.0
    %v1350 = vadd.f32 %v1270, %v1349
    %1351 = vadd.xlane.f32.xlu0 %v1350
    %v1352 = vpop.xlane.xlu0 %1351
    %v1353 = vsel %vm633, %v1276, 0.0
    %v1354 = vadd.f32 %v1274, %v1353
    %1355 = vadd.xlane.f32.xlu0 %v1354
    %v1356 = vpop.xlane.xlu0 %1355
    %v1357 = vsel %vm633, %v1280, 0.0
    %v1358 = vadd.f32 %v1278, %v1357
    %1359 = vadd.xlane.f32.xlu0 %v1358
    %v1360 = vpop.xlane.xlu0 %1359
    %v1361 = vsel %vm633, %v1284, 0.0
    %v1362 = vadd.f32 %v1282, %v1361
    %1363 = vadd.xlane.f32.xlu0 %v1362
    %v1364 = vpop.xlane.xlu0 %1363
    %v1365 = vsel %vm633, %v1288, 0.0
    %v1366 = vadd.f32 %v1286, %v1365
    %1367 = vadd.xlane.f32.xlu0 %v1366
    %v1368 = vpop.xlane.xlu0 %1367
    %v1369 = vsel %vm633, %v1292, 0.0
    %v1370 = vadd.f32 %v1290, %v1369
    %1371 = vadd.xlane.f32.xlu0 %v1370
    %v1372 = vpop.xlane.xlu0 %1371
    %v1373 = vsel %vm633, %v1296, 0.0
    %v1374 = vadd.f32 %v1294, %v1373
    %1375 = vadd.xlane.f32.xlu0 %v1374
    %v1376 = vpop.xlane.xlu0 %1375
    %v1377 = vsel %vm633, %v1300, 0.0
    %v1378 = vadd.f32 %v1298, %v1377
    %1379 = vadd.xlane.f32.xlu0 %v1378
    %v1380 = vpop.xlane.xlu0 %1379
    %v1381 = vsel %vm633, %v1304, 0.0
    %v1382 = vadd.f32 %v1302, %v1381
    %1383 = vadd.xlane.f32.xlu0 %v1382
    %v1384 = vpop.xlane.xlu0 %1383
    %v1385 = vsel %vm633, %v1308, 0.0
    %v1386 = vadd.f32 %v1306, %v1385
    %1387 = vadd.xlane.f32.xlu0 %v1386
    %v1388 = vpop.xlane.xlu0 %1387
    %v1389 = vsel %vm633, %v1312, 0.0
    %v1390 = vadd.f32 %v1310, %v1389
    %1391 = vadd.xlane.f32.xlu0 %v1390
    %v1392 = vpop.xlane.xlu0 %1391
    %v1393 = vsel %vm633, %v1316, 0.0
    %v1394 = vadd.f32 %v1314, %v1393
    %1395 = vadd.xlane.f32.xlu0 %v1394
    %v1396 = vpop.xlane.xlu0 %1395
    %v1397 = vsel %vm633, %v1320, 0.0
    %v1398 = vadd.f32 %v1318, %v1397
    %1399 = vadd.xlane.f32.xlu0 %v1398
    %v1400 = vpop.xlane.xlu0 %1399
    %v1401 = vsel %vm633, %v1324, 0.0
    %v1402 = vadd.f32 %v1322, %v1401
    %1403 = vadd.xlane.f32.xlu0 %v1402
    %v1404 = vpop.xlane.xlu0 %1403
    %v1405 = vrcp.pop %v1328
    %v1406 = vrcp.pop %v1332
    %v1407 = vrcp.pop %v1336
    %v1408 = vrcp.pop %v1340
    %v1409 = vrcp.pop %v1344
    %v1410 = vrcp.pop %v1348
    %v1411 = vrcp.pop %v1352
    %v1412 = vrcp.pop %v1356
    %v1413 = vrcp.pop %v1360
    %v1414 = vrcp.pop %v1364
    %v1415 = vrcp.pop %v1368
    %v1416 = vrcp.pop %v1372
    %v1417 = vrcp.pop %v1376
    %v1418 = vrcp.pop %v1380
    %v1419 = vrcp.pop %v1384
    %v1420 = vrcp.pop %v1388
    %v1421 = vrcp.pop %v1392
    %v1422 = vrcp.pop %v1396
    %v1423 = vrcp.pop %v1400
    %v1424 = vrcp.pop %v1404
    %v1425 = vmul.f32 %v1246, %v1405
    %v1426 = vmul.f32 %v1248, %v1405
    %v1427 = vmul.f32 %v1250, %v1406
    %v1428 = vmul.f32 %v1252, %v1406
    %v1429 = vmul.f32 %v1254, %v1407
    %v1430 = vmul.f32 %v1256, %v1407
    %v1431 = vmul.f32 %v1258, %v1408
    %v1432 = vmul.f32 %v1260, %v1408
    %v1433 = vmul.f32 %v1262, %v1409
    %v1434 = vmul.f32 %v1264, %v1409
    %v1435 = vmul.f32 %v1266, %v1410
    %v1436 = vmul.f32 %v1268, %v1410
    %v1437 = vmul.f32 %v1270, %v1411
    %v1438 = vmul.f32 %v1272, %v1411
    %v1439 = vmul.f32 %v1274, %v1412
    %v1440 = vmul.f32 %v1276, %v1412
    %v1441 = vmul.f32 %v1278, %v1413
    %v1442 = vmul.f32 %v1280, %v1413
    %v1443 = vmul.f32 %v1282, %v1414
    %v1444 = vmul.f32 %v1284, %v1414
    %v1445 = vmul.f32 %v1286, %v1415
    %v1446 = vmul.f32 %v1288, %v1415
    %v1447 = vmul.f32 %v1290, %v1416
    %v1448 = vmul.f32 %v1292, %v1416
    %v1449 = vmul.f32 %v1294, %v1417
    %v1450 = vmul.f32 %v1296, %v1417
    %v1451 = vmul.f32 %v1298, %v1418
    %v1452 = vmul.f32 %v1300, %v1418
    %v1453 = vmul.f32 %v1302, %v1419
    %v1454 = vmul.f32 %v1304, %v1419
    %v1455 = vmul.f32 %v1306, %v1420
    %v1456 = vmul.f32 %v1308, %v1420
    %v1457 = vmul.f32 %v1310, %v1421
    %v1458 = vmul.f32 %v1312, %v1421
    %v1459 = vmul.f32 %v1314, %v1422
    %v1460 = vmul.f32 %v1316, %v1422
    %v1461 = vmul.f32 %v1318, %v1423
    %v1462 = vmul.f32 %v1320, %v1423
    %v1463 = vmul.f32 %v1322, %v1424
    %v1464 = vmul.f32 %v1324, %v1424
    %1465 = vrot.lane.b32.xlu0 %v801, 64
    %v1466 = vpop.permute.xlu0 %1465
    %1467 = vrot.lane.b32.xlu0 %v804, 64
    %v1468 = vpop.permute.xlu0 %1467
    %1469 = vrot.lane.b32.xlu0 %v807, 64
    %v1470 = vpop.permute.xlu0 %1469
    %1471 = vrot.lane.b32.xlu0 %v810, 64
    %v1472 = vpop.permute.xlu0 %1471
    %1473 = vrot.lane.b32.xlu0 %v813, 64
    %v1474 = vpop.permute.xlu0 %1473
    %1475 = vrot.lane.b32.xlu0 %v821, 64
    %v1476 = vpop.permute.xlu0 %1475
    %1477 = vrot.lane.b32.xlu0 %v823, 64
    %v1478 = vpop.permute.xlu0 %1477
    %1479 = vrot.lane.b32.xlu0 %v825, 64
    %v1480 = vpop.permute.xlu0 %1479
    %1481 = vrot.lane.b32.xlu0 %v827, 64
    %v1482 = vpop.permute.xlu0 %1481
    %1483 = vrot.lane.b32.xlu0 %v829, 64
    %v1484 = vpop.permute.xlu0 %1483
    %1485 = vrot.lane.b32.xlu0 %v831, 64
    %v1486 = vpop.permute.xlu0 %1485
    %1487 = vrot.lane.b32.xlu0 %v833, 64
    %v1488 = vpop.permute.xlu0 %1487
    %1489 = vrot.lane.b32.xlu0 %v835, 64
    %v1490 = vpop.permute.xlu0 %1489
    %1491 = vrot.lane.b32.xlu0 %v837, 64
    %v1492 = vpop.permute.xlu0 %1491
    %1493 = vrot.lane.b32.xlu0 %v839, 64
    %v1494 = vpop.permute.xlu0 %1493
    %1495 = vrot.lane.b32.xlu0 %v841, 64
    %v1496 = vpop.permute.xlu0 %1495
    %1497 = vrot.lane.b32.xlu0 %v843, 64
    %v1498 = vpop.permute.xlu0 %1497
    %1499 = vrot.lane.b32.xlu0 %v845, 64
    %v1500 = vpop.permute.xlu0 %1499
    %1501 = vrot.lane.b32.xlu0 %v847, 64
    %v1502 = vpop.permute.xlu0 %1501
    %1503 = vrot.lane.b32.xlu0 %v849, 64
    %v1504 = vpop.permute.xlu0 %1503
    %v1526 = vsel %vm633, %v1426, 0
    %v1529 = vsel %vm633, %v1428, 0
    %v1532 = vsel %vm633, %v1430, 0
    %v1535 = vsel %vm633, %v1432, 0
    %v1538 = vsel %vm633, %v1434, 0
    %v1541 = vsel %vm633, %v1436, 0
    %v1544 = vsel %vm633, %v1438, 0
    %v1547 = vsel %vm633, %v1440, 0
    %v1550 = vsel %vm633, %v1442, 0
    %v1553 = vsel %vm633, %v1444, 0
    %v1556 = vsel %vm633, %v1446, 0
    %v1559 = vsel %vm633, %v1448, 0
    %v1562 = vsel %vm633, %v1450, 0
    %v1565 = vsel %vm633, %v1452, 0
    %v1568 = vsel %vm633, %v1454, 0
    %v1571 = vsel %vm633, %v1456, 0
    %v1574 = vsel %vm633, %v1458, 0
    %v1577 = vsel %vm633, %v1460, 0
    %v1580 = vsel %vm633, %v1462, 0
    %v1583 = vsel %vm633, %v1464, 0
    %1585 = vmatpush.msra.mxu0 %v1496
    %1586 = vmatpush.msra.mxu0 %v1494
    %1587 = vmatpush.msra.mxu0 %v1492
    %1588 = vmatpush.msra.mxu0 %v1490
    %1589 = vmatpush.msra.mxu0 %v1488
    %1590 = vmatpush.msra.mxu0 %v1486
    %1591 = vmatpush.msra.mxu0 %v1484
    %1592 = vmatpush.msra.mxu0 %v1482
    %1593 = vmatpush.msra.mxu0 %v1480
    %1594 = vmatpush.msra.mxu0 %v1478
    %1595 = vmatpush.msra.mxu0 %v1476
    %1596 = vmatpush.msra.mxu0 %v1474
    %1597 = vmatpush.msra.mxu0 %v1472
    %1598 = vmatpush.msra.mxu0 %v1470
    %1599 = vmatpush.msra.mxu0 %v1468
    %1600 = vmatpush.msra.mxu0 %v1466
    %1601 = vmatmul.f32.gmra.mxu0 %v1425
    %v1602 = vpop.f32.mrf.mxu0
    %v1603 = vadd.f32 0.0, %v1602
    %1604 = vmatmul.f32.gmra.mxu0 %v1427
    %v1605 = vpop.f32.mrf.mxu0
    %v1606 = vadd.f32 0.0, %v1605
    %1607 = vmatmul.f32.gmra.mxu0 %v1429
    %v1608 = vpop.f32.mrf.mxu0
    %v1609 = vadd.f32 0.0, %v1608
    %1610 = vmatmul.f32.gmra.mxu0 %v1431
    %v1611 = vpop.f32.mrf.mxu0
    %v1612 = vadd.f32 0.0, %v1611
    %1613 = vmatmul.f32.gmra.mxu0 %v1433
    %v1614 = vpop.f32.mrf.mxu0
    %v1615 = vadd.f32 0.0, %v1614
    %1616 = vmatmul.f32.gmra.mxu0 %v1435
    %v1617 = vpop.f32.mrf.mxu0
    %v1618 = vadd.f32 0.0, %v1617
    %1619 = vmatmul.f32.gmra.mxu0 %v1437
    %v1620 = vpop.f32.mrf.mxu0
    %v1621 = vadd.f32 0.0, %v1620
    %1622 = vmatmul.f32.gmra.mxu0 %v1439
    %v1623 = vpop.f32.mrf.mxu0
    %v1624 = vadd.f32 0.0, %v1623
    %1625 = vmatmul.f32.gmra.mxu0 %v1441
    %v1626 = vpop.f32.mrf.mxu0
    %v1627 = vadd.f32 0.0, %v1626
    %1628 = vmatmul.f32.gmra.mxu0 %v1443
    %v1629 = vpop.f32.mrf.mxu0
    %v1630 = vadd.f32 0.0, %v1629
    %1631 = vmatmul.f32.gmra.mxu0 %v1445
    %v1632 = vpop.f32.mrf.mxu0
    %v1633 = vadd.f32 0.0, %v1632
    %1634 = vmatmul.f32.gmra.mxu0 %v1447
    %v1635 = vpop.f32.mrf.mxu0
    %v1636 = vadd.f32 0.0, %v1635
    %1637 = vmatmul.f32.gmra.mxu0 %v1449
    %v1638 = vpop.f32.mrf.mxu0
    %v1639 = vadd.f32 0.0, %v1638
    %1640 = vmatmul.f32.gmra.mxu0 %v1451
    %v1641 = vpop.f32.mrf.mxu0
    %v1642 = vadd.f32 0.0, %v1641
    %1643 = vmatmul.f32.gmra.mxu0 %v1453
    %v1644 = vpop.f32.mrf.mxu0
    %v1645 = vadd.f32 0.0, %v1644
    %1646 = vmatmul.f32.gmra.mxu0 %v1455
    %v1647 = vpop.f32.mrf.mxu0
    %v1648 = vadd.f32 0.0, %v1647
    %1649 = vmatmul.f32.gmra.mxu0 %v1457
    %v1650 = vpop.f32.mrf.mxu0
    %v1651 = vadd.f32 0.0, %v1650
    %1652 = vmatmul.f32.gmra.mxu0 %v1459
    %v1653 = vpop.f32.mrf.mxu0
    %v1654 = vadd.f32 0.0, %v1653
    %1655 = vmatmul.f32.gmra.mxu0 %v1461
    %v1656 = vpop.f32.mrf.mxu0
    %v1657 = vadd.f32 0.0, %v1656
    %1658 = vmatmul.f32.gmra.mxu0 %v1463
    %v1659 = vpop.f32.mrf.mxu0
    %v1660 = vadd.f32 0.0, %v1659
    %1661 = vdwg.mxu0
    %1662 = vmatpush.msra.mxu0 0.0
    %1663 = vmatpush.msra.mxu0 0.0
    %1664 = vmatpush.msra.mxu0 0.0
    %1665 = vmatpush.msra.mxu0 0.0
    %1666 = vmatpush.msra.mxu0 0.0
    %1667 = vmatpush.msra.mxu0 0.0
    %1668 = vmatpush.msra.mxu0 0.0
    %1669 = vmatpush.msra.mxu0 0.0
    %1670 = vmatpush.msra.mxu0 0.0
    %1671 = vmatpush.msra.mxu0 0.0
    %1672 = vmatpush.msra.mxu0 0.0
    %1673 = vmatpush.msra.mxu0 0.0
    %1674 = vmatpush.msra.mxu0 %v1504
    %1675 = vmatpush.msra.mxu0 %v1502
    %1676 = vmatpush.msra.mxu0 %v1500
    %1677 = vmatpush.msra.mxu0 %v1498
    %1678 = vmatmul.f32.gmra.mxu0 %v1526
    %v1679 = vpop.f32.mrf.mxu0
    %v1680 = vadd.f32 %v1603, %v1679
    %1681 = vmatmul.f32.gmra.mxu0 %v1529
    %v1682 = vpop.f32.mrf.mxu0
    %v1683 = vadd.f32 %v1606, %v1682
    %1684 = vmatmul.f32.gmra.mxu0 %v1532
    %v1685 = vpop.f32.mrf.mxu0
    %v1686 = vadd.f32 %v1609, %v1685
    %1687 = vmatmul.f32.gmra.mxu0 %v1535
    %v1688 = vpop.f32.mrf.mxu0
    %v1689 = vadd.f32 %v1612, %v1688
    %1690 = vmatmul.f32.gmra.mxu0 %v1538
    %v1691 = vpop.f32.mrf.mxu0
    %v1692 = vadd.f32 %v1615, %v1691
    %1693 = vmatmul.f32.gmra.mxu0 %v1541
    %v1694 = vpop.f32.mrf.mxu0
    %v1695 = vadd.f32 %v1618, %v1694
    %1696 = vmatmul.f32.gmra.mxu0 %v1544
    %v1697 = vpop.f32.mrf.mxu0
    %v1698 = vadd.f32 %v1621, %v1697
    %1699 = vmatmul.f32.gmra.mxu0 %v1547
    %v1700 = vpop.f32.mrf.mxu0
    %v1701 = vadd.f32 %v1624, %v1700
    %1702 = vmatmul.f32.gmra.mxu0 %v1550
    %v1703 = vpop.f32.mrf.mxu0
    %v1704 = vadd.f32 %v1627, %v1703
    %1705 = vmatmul.f32.gmra.mxu0 %v1553
    %v1706 = vpop.f32.mrf.mxu0
    %v1707 = vadd.f32 %v1630, %v1706
    %1708 = vmatmul.f32.gmra.mxu0 %v1556
    %v1709 = vpop.f32.mrf.mxu0
    %v1710 = vadd.f32 %v1633, %v1709
    %1711 = vmatmul.f32.gmra.mxu0 %v1559
    %v1712 = vpop.f32.mrf.mxu0
    %v1713 = vadd.f32 %v1636, %v1712
    %1714 = vmatmul.f32.gmra.mxu0 %v1562
    %v1715 = vpop.f32.mrf.mxu0
    %v1716 = vadd.f32 %v1639, %v1715
    %1717 = vmatmul.f32.gmra.mxu0 %v1565
    %v1718 = vpop.f32.mrf.mxu0
    %v1719 = vadd.f32 %v1642, %v1718
    %1720 = vmatmul.f32.gmra.mxu0 %v1568
    %v1721 = vpop.f32.mrf.mxu0
    %v1722 = vadd.f32 %v1645, %v1721
    %1723 = vmatmul.f32.gmra.mxu0 %v1571
    %v1724 = vpop.f32.mrf.mxu0
    %v1725 = vadd.f32 %v1648, %v1724
    %1726 = vmatmul.f32.gmra.mxu0 %v1574
    %v1727 = vpop.f32.mrf.mxu0
    %v1728 = vadd.f32 %v1651, %v1727
    %1729 = vmatmul.f32.gmra.mxu0 %v1577
    %v1730 = vpop.f32.mrf.mxu0
    %v1731 = vadd.f32 %v1654, %v1730
    %1732 = vmatmul.f32.gmra.mxu0 %v1580
    %v1733 = vpop.f32.mrf.mxu0
    %v1734 = vadd.f32 %v1657, %v1733
    %1735 = vmatmul.f32.gmra.mxu0 %v1583
    %v1736 = vpop.f32.mrf.mxu0
    %v1737 = vadd.f32 %v1660, %v1736
    %1738 = vdwg.mxu0
    %v1739 = vld [vmem:[#allocation4 + $0xd8] sm:$0xff]
    %v1741 = vsel %vm890, %v1680, 0
    %v1744 = vsel %vm890, %v1683, 0
    %v1747 = vsel %vm890, %v1686, 0
    %v1750 = vsel %vm890, %v1689, 0
    %v1753 = vsel %vm890, %v1692, 0
    %1755 = vmatpush.msra.mxu0 0.0
    %1756 = vmatpush.msra.mxu0 0.0
    %1757 = vmatpush.msra.mxu0 0.0
    %1758 = vmatpush.msra.mxu0 0.0
    %1759 = vmatpush.msra.mxu0 0.0
    %1760 = vmatpush.msra.mxu0 0.0
    %1761 = vmatpush.msra.mxu0 0.0
    %1762 = vmatpush.msra.mxu0 0.0
    %1763 = vmatpush.msra.mxu0 0.0
    %1764 = vmatpush.msra.mxu0 0.0
    %1765 = vmatpush.msra.mxu0 0.0
    %1766 = vmatpush.msra.mxu0 0.0
    %1767 = vmatpush.msra.mxu0 0.0
    %1768 = vmatpush.msra.mxu0 0.0
    %1769 = vmatpush.msra.mxu0 0.0
    %1770 = vmatpush.msra.mxu0 %v1739
    %1771 = vmatmul.f32.gmra.mxu0 %v1741
    %v1772 = vpop.f32.mrf.mxu0
    %v1773 = vadd.f32 0.0, %v1772
    %1774 = vmatmul.f32.gmra.mxu0 %v1744
    %v1775 = vpop.f32.mrf.mxu0
    %v1776 = vadd.f32 0.0, %v1775
    %1777 = vmatmul.f32.gmra.mxu0 %v1747
    %v1778 = vpop.f32.mrf.mxu0
    %v1779 = vadd.f32 0.0, %v1778
    %1780 = vmatmul.f32.gmra.mxu0 %v1750
    %v1781 = vpop.f32.mrf.mxu0
    %v1782 = vadd.f32 0.0, %v1781
    %1783 = vmatmul.f32.gmra.mxu0 %v1753
    %v1784 = vpop.f32.mrf.mxu0
    %v1785 = vadd.f32 0.0, %v1784
    %1786 = vdwg.mxu0
    %v1787 = vperm.slane %v628, 0
    %v1788 = vadd.f32 %v1787, %v1773
    %v1789 = vadd.f32 %v1787, %v1776
    %v1790 = vadd.f32 %v1787, %v1779
    %v1791 = vadd.f32 %v1787, %v1782
    %v1792 = vadd.f32 %v1787, %v1785
    %v1793 = vld [vmem:[#allocation4 + $0xe0] sm:$0xff]
    %v1795 = vsel %vm890, %v1695, 0
    %v1798 = vsel %vm890, %v1698, 0
    %v1801 = vsel %vm890, %v1701, 0
    %v1804 = vsel %vm890, %v1704, 0
    %v1807 = vsel %vm890, %v1707, 0
    %1809 = vmatpush.msra.mxu0 0.0
    %1810 = vmatpush.msra.mxu0 0.0
    %1811 = vmatpush.msra.mxu0 0.0
    %1812 = vmatpush.msra.mxu0 0.0
    %1813 = vmatpush.msra.mxu0 0.0
    %1814 = vmatpush.msra.mxu0 0.0
    %1815 = vmatpush.msra.mxu0 0.0
    %1816 = vmatpush.msra.mxu0 0.0
    %1817 = vmatpush.msra.mxu0 0.0
    %1818 = vmatpush.msra.mxu0 0.0
    %1819 = vmatpush.msra.mxu0 0.0
    %1820 = vmatpush.msra.mxu0 0.0
    %1821 = vmatpush.msra.mxu0 0.0
    %1822 = vmatpush.msra.mxu0 0.0
    %1823 = vmatpush.msra.mxu0 0.0
    %1824 = vmatpush.msra.mxu0 %v1793
    %1825 = vmatmul.f32.gmra.mxu0 %v1795
    %v1826 = vpop.f32.mrf.mxu0
    %v1827 = vadd.f32 0.0, %v1826
    %1828 = vmatmul.f32.gmra.mxu0 %v1798
    %v1829 = vpop.f32.mrf.mxu0
    %v1830 = vadd.f32 0.0, %v1829
    %1831 = vmatmul.f32.gmra.mxu0 %v1801
    %v1832 = vpop.f32.mrf.mxu0
    %v1833 = vadd.f32 0.0, %v1832
    %1834 = vmatmul.f32.gmra.mxu0 %v1804
    %v1835 = vpop.f32.mrf.mxu0
    %v1836 = vadd.f32 0.0, %v1835
    %1837 = vmatmul.f32.gmra.mxu0 %v1807
    %v1838 = vpop.f32.mrf.mxu0
    %v1839 = vadd.f32 0.0, %v1838
    %1840 = vdwg.mxu0
    %v1841 = vadd.f32 %v1788, %v1827
    %v1842 = vadd.f32 %v1789, %v1830
    %v1843 = vadd.f32 %v1790, %v1833
    %v1844 = vadd.f32 %v1791, %v1836
    %v1845 = vadd.f32 %v1792, %v1839
    %v1846 = vld [vmem:[#allocation4 + $0xe8] sm:$0xff]
    %v1848 = vsel %vm890, %v1710, 0
    %v1851 = vsel %vm890, %v1713, 0
    %v1854 = vsel %vm890, %v1716, 0
    %v1857 = vsel %vm890, %v1719, 0
    %v1860 = vsel %vm890, %v1722, 0
    %1862 = vmatpush.msra.mxu0 0.0
    %1863 = vmatpush.msra.mxu0 0.0
    %1864 = vmatpush.msra.mxu0 0.0
    %1865 = vmatpush.msra.mxu0 0.0
    %1866 = vmatpush.msra.mxu0 0.0
    %1867 = vmatpush.msra.mxu0 0.0
    %1868 = vmatpush.msra.mxu0 0.0
    %1869 = vmatpush.msra.mxu0 0.0
    %1870 = vmatpush.msra.mxu0 0.0
    %1871 = vmatpush.msra.mxu0 0.0
    %1872 = vmatpush.msra.mxu0 0.0
    %1873 = vmatpush.msra.mxu0 0.0
    %1874 = vmatpush.msra.mxu0 0.0
    %1875 = vmatpush.msra.mxu0 0.0
    %1876 = vmatpush.msra.mxu0 0.0
    %1877 = vmatpush.msra.mxu0 %v1846
    %1878 = vmatmul.f32.gmra.mxu0 %v1848
    %v1879 = vpop.f32.mrf.mxu0
    %v1880 = vadd.f32 0.0, %v1879
    %1881 = vmatmul.f32.gmra.mxu0 %v1851
    %v1882 = vpop.f32.mrf.mxu0
    %v1883 = vadd.f32 0.0, %v1882
    %1884 = vmatmul.f32.gmra.mxu0 %v1854
    %v1885 = vpop.f32.mrf.mxu0
    %v1886 = vadd.f32 0.0, %v1885
    %1887 = vmatmul.f32.gmra.mxu0 %v1857
    %v1888 = vpop.f32.mrf.mxu0
    %v1889 = vadd.f32 0.0, %v1888
    %1890 = vmatmul.f32.gmra.mxu0 %v1860
    %v1891 = vpop.f32.mrf.mxu0
    %v1892 = vadd.f32 0.0, %v1891
    %1893 = vdwg.mxu0
    %v1894 = vadd.f32 %v1841, %v1880
    %v1895 = vadd.f32 %v1842, %v1883
    %v1896 = vadd.f32 %v1843, %v1886
    %v1897 = vadd.f32 %v1844, %v1889
    %v1898 = vadd.f32 %v1845, %v1892
    %v1899 = vld [vmem:[#allocation4 + $0xf0] sm:$0xff]
    %v1901 = vsel %vm890, %v1725, 0
    %v1904 = vsel %vm890, %v1728, 0
    %v1907 = vsel %vm890, %v1731, 0
    %v1910 = vsel %vm890, %v1734, 0
    %v1913 = vsel %vm890, %v1737, 0
    %1915 = vmatpush.msra.mxu0 0.0
    %1916 = vmatpush.msra.mxu0 0.0
    %1917 = vmatpush.msra.mxu0 0.0
    %1918 = vmatpush.msra.mxu0 0.0
    %1919 = vmatpush.msra.mxu0 0.0
    %1920 = vmatpush.msra.mxu0 0.0
    %1921 = vmatpush.msra.mxu0 0.0
    %1922 = vmatpush.msra.mxu0 0.0
    %1923 = vmatpush.msra.mxu0 0.0
    %1924 = vmatpush.msra.mxu0 0.0
    %1925 = vmatpush.msra.mxu0 0.0
    %1926 = vmatpush.msra.mxu0 0.0
    %1927 = vmatpush.msra.mxu0 0.0
    %1928 = vmatpush.msra.mxu0 0.0
    %1929 = vmatpush.msra.mxu0 0.0
    %1930 = vmatpush.msra.mxu0 %v1899
    %1931 = vmatmul.f32.gmra.mxu0 %v1901
    %v1932 = vpop.f32.mrf.mxu0
    %v1933 = vadd.f32 0.0, %v1932
    %1934 = vmatmul.f32.gmra.mxu0 %v1904
    %v1935 = vpop.f32.mrf.mxu0
    %v1936 = vadd.f32 0.0, %v1935
    %1937 = vmatmul.f32.gmra.mxu0 %v1907
    %v1938 = vpop.f32.mrf.mxu0
    %v1939 = vadd.f32 0.0, %v1938
    %1940 = vmatmul.f32.gmra.mxu0 %v1910
    %v1941 = vpop.f32.mrf.mxu0
    %v1942 = vadd.f32 0.0, %v1941
    %1943 = vmatmul.f32.gmra.mxu0 %v1913
    %v1944 = vpop.f32.mrf.mxu0
    %v1945 = vadd.f32 0.0, %v1944
    %1946 = vdwg.mxu0
    %v1947 = vadd.f32 %v1894, %v1933
    %v1948 = vadd.f32 %v1895, %v1936
    %v1949 = vadd.f32 %v1896, %v1939
    %v1950 = vadd.f32 %v1897, %v1942
    %v1951 = vadd.f32 %v1898, %v1945
    %v1952 = vadd.f32 %v98, %v1947
    %v1953 = vadd.f32 %v99, %v1948
    %v1954 = vadd.f32 %v100, %v1949
    %v1955 = vadd.f32 %v101, %v1950
    %v1956 = vadd.f32 %v102, %v1951
    %v1957 = vsel %vm633, %v1952, 0.0
    %1958 = vadd.xlane.f32.xlu0 %v1957
    %v1959 = vpop.xlane.xlu0 %1958
    %v1960 = vsel %vm633, %v1953, 0.0
    %1961 = vadd.xlane.f32.xlu0 %v1960
    %v1962 = vpop.xlane.xlu0 %1961
    %v1963 = vsel %vm633, %v1954, 0.0
    %1964 = vadd.xlane.f32.xlu0 %v1963
    %v1965 = vpop.xlane.xlu0 %1964
    %v1966 = vsel %vm633, %v1955, 0.0
    %1967 = vadd.xlane.f32.xlu0 %v1966
    %v1968 = vpop.xlane.xlu0 %1967
    %v1969 = vsel %vm633, %v1956, 0.0
    %1970 = vadd.xlane.f32.xlu0 %v1969
    %v1971 = vpop.xlane.xlu0 %1970
    %v1972 = vmul.f32 %v1959, %v655
    %v1973 = vmul.f32 %v1962, %v655
    %v1974 = vmul.f32 %v1965, %v655
    %v1975 = vmul.f32 %v1968, %v655
    %v1976 = vmul.f32 %v1971, %v655
    %v1977 = vsub.f32 %v1952, %v1972
    %v1978 = vsub.f32 %v1953, %v1973
    %v1979 = vsub.f32 %v1954, %v1974
    %v1980 = vsub.f32 %v1955, %v1975
    %v1981 = vsub.f32 %v1956, %v1976
    %v1982 = vmul.f32 %v1977, %v1977
    %v1983 = vmul.f32 %v1978, %v1978
    %v1984 = vmul.f32 %v1979, %v1979
    %v1985 = vmul.f32 %v1980, %v1980
    %v1986 = vmul.f32 %v1981, %v1981
    %v1987 = vsel %vm633, %v1982, 0.0
    %1988 = vadd.xlane.f32.xlu0 %v1987
    %v1989 = vpop.xlane.xlu0 %1988
    %v1990 = vsel %vm633, %v1983, 0.0
    %1991 = vadd.xlane.f32.xlu0 %v1990
    %v1992 = vpop.xlane.xlu0 %1991
    %v1993 = vsel %vm633, %v1984, 0.0
    %1994 = vadd.xlane.f32.xlu0 %v1993
    %v1995 = vpop.xlane.xlu0 %1994
    %v1996 = vsel %vm633, %v1985, 0.0
    %1997 = vadd.xlane.f32.xlu0 %v1996
    %v1998 = vpop.xlane.xlu0 %1997
    %v1999 = vsel %vm633, %v1986, 0.0
    %2000 = vadd.xlane.f32.xlu0 %v1999
    %v2001 = vpop.xlane.xlu0 %2000
    %v2002 = vmul.f32 %v1989, %v655
    %v2003 = vmul.f32 %v1992, %v655
    %v2004 = vmul.f32 %v1995, %v655
    %v2005 = vmul.f32 %v1998, %v655
    %v2006 = vmul.f32 %v2001, %v655
    %v2007 = vadd.f32 %v2002, 1e-12
    %v2008 = vadd.f32 %v2003, 1e-12
    %v2009 = vadd.f32 %v2004, 1e-12
    %v2010 = vadd.f32 %v2005, 1e-12
    %v2011 = vadd.f32 %v2006, 1e-12
    %v2012 = vrsqrt.pop %v2007
    %v2013 = vmul.f32 %v2012, %v2007
    %v2014 = vmul.f32 %v2013, %v2012
    %v2015 = vmul.f32 0.5, %v2014
    %v2016 = vsub.f32 1.5, %v2015
    %v2017 = vmul.f32 %v2012, %v2016
    %vm2018 = vweird.f32 %v2007
    %vm2019 = vweird.f32 %v2012
    %vm2020 = vmor %vm2018, %vm2019
    %v2021 = vsel %vm2020, %v2012, %v2017
    %v2022 = vrsqrt.pop %v2008
    %v2023 = vmul.f32 %v2022, %v2008
    %v2024 = vmul.f32 %v2023, %v2022
    %v2025 = vmul.f32 0.5, %v2024
    %v2026 = vsub.f32 1.5, %v2025
    %v2027 = vmul.f32 %v2022, %v2026
    %vm2028 = vweird.f32 %v2008
    %vm2029 = vweird.f32 %v2022
    %vm2030 = vmor %vm2028, %vm2029
    %v2031 = vsel %vm2030, %v2022, %v2027
    %v2032 = vrsqrt.pop %v2009
    %v2033 = vmul.f32 %v2032, %v2009
    %v2034 = vmul.f32 %v2033, %v2032
    %v2035 = vmul.f32 0.5, %v2034
    %v2036 = vsub.f32 1.5, %v2035
    %v2037 = vmul.f32 %v2032, %v2036
    %vm2038 = vweird.f32 %v2009
    %vm2039 = vweird.f32 %v2032
    %vm2040 = vmor %vm2038, %vm2039
    %v2041 = vsel %vm2040, %v2032, %v2037
    %v2042 = vrsqrt.pop %v2010
    %v2043 = vmul.f32 %v2042, %v2010
    %v2044 = vmul.f32 %v2043, %v2042
    %v2045 = vmul.f32 0.5, %v2044
    %v2046 = vsub.f32 1.5, %v2045
    %v2047 = vmul.f32 %v2042, %v2046
    %vm2048 = vweird.f32 %v2010
    %vm2049 = vweird.f32 %v2042
    %vm2050 = vmor %vm2048, %vm2049
    %v2051 = vsel %vm2050, %v2042, %v2047
    %v2052 = vrsqrt.pop %v2011
    %v2053 = vmul.f32 %v2052, %v2011
    %v2054 = vmul.f32 %v2053, %v2052
    %v2055 = vmul.f32 0.5, %v2054
    %v2056 = vsub.f32 1.5, %v2055
    %v2057 = vmul.f32 %v2052, %v2056
    %vm2058 = vweird.f32 %v2011
    %vm2059 = vweird.f32 %v2052
    %vm2060 = vmor %vm2058, %vm2059
    %v2061 = vsel %vm2060, %v2052, %v2057
    %v2062 = vmul.f32 %v1977, %v2021
    %v2063 = vmul.f32 %v1978, %v2031
    %v2064 = vmul.f32 %v1979, %v2041
    %v2065 = vmul.f32 %v1980, %v2051
    %v2066 = vmul.f32 %v1981, %v2061
    %v2067 = vperm.slane %v629, 0
    %v2068 = vmul.f32 %v2062, %v2067
    %v2069 = vmul.f32 %v2063, %v2067
    %v2070 = vmul.f32 %v2064, %v2067
    %v2071 = vmul.f32 %v2065, %v2067
    %v2072 = vmul.f32 %v2066, %v2067
    %v2073 = vperm.slane %v630, 0
    %v2074 = vadd.f32 %v2068, %v2073
    %v2075 = vadd.f32 %v2069, %v2073
    %v2076 = vadd.f32 %v2070, %v2073
    %v2077 = vadd.f32 %v2071, %v2073
    %v2078 = vadd.f32 %v2072, %v2073
    %v2079 = vld [vmem:[#allocation4 + $0xf8] sm:$0xff]
    %v2080 = vld [vmem:[#allocation4 + $0x100] sm:$0xff]
    %v2081 = vld [vmem:[#allocation4 + $0x108] sm:$0xff]
    %v2082 = vld [vmem:[#allocation4 + $0x110] sm:$0xff]
    %v2083 = vperm.slane %v631, 0
    %v2085 = vsel %vm633, %v2074, 0
    %v2088 = vsel %vm633, %v2075, 0
    %v2091 = vsel %vm633, %v2076, 0
    %v2094 = vsel %vm633, %v2077, 0
    %v2097 = vsel %vm633, %v2078, 0
    %2099 = vmatpush.msra.mxu0 0.0
    %2100 = vmatpush.msra.mxu0 0.0
    %2101 = vmatpush.msra.mxu0 0.0
    %2102 = vmatpush.msra.mxu0 0.0
    %2103 = vmatpush.msra.mxu0 0.0
    %2104 = vmatpush.msra.mxu0 0.0
    %2105 = vmatpush.msra.mxu0 0.0
    %2106 = vmatpush.msra.mxu0 0.0
    %2107 = vmatpush.msra.mxu0 0.0
    %2108 = vmatpush.msra.mxu0 0.0
    %2109 = vmatpush.msra.mxu0 0.0
    %2110 = vmatpush.msra.mxu0 0.0
    %2111 = vmatpush.msra.mxu0 %v2082
    %2112 = vmatpush.msra.mxu0 %v2081
    %2113 = vmatpush.msra.mxu0 %v2080
    %2114 = vmatpush.msra.mxu0 %v2079
    %2115 = vmatmul.f32.gmra.mxu0 %v2085
    %v2116 = vpop.f32.mrf.mxu0
    %v2117 = vadd.f32 %v2083, %v2116
    %2118 = vmatmul.f32.gmra.mxu0 %v2088
    %v2119 = vpop.f32.mrf.mxu0
    %v2120 = vadd.f32 %v2083, %v2119
    %2121 = vmatmul.f32.gmra.mxu0 %v2091
    %v2122 = vpop.f32.mrf.mxu0
    %v2123 = vadd.f32 %v2083, %v2122
    %2124 = vmatmul.f32.gmra.mxu0 %v2094
    %v2125 = vpop.f32.mrf.mxu0
    %v2126 = vadd.f32 %v2083, %v2125
    %2127 = vmatmul.f32.gmra.mxu0 %v2097
    %v2128 = vpop.f32.mrf.mxu0
    %v2129 = vadd.f32 %v2083, %v2128
    %2130 = vdwg.mxu0
    %v2131 = vmul.f32 %v2117, %v2117
    %v2132 = vmul.f32 %v2120, %v2120
    %v2133 = vmul.f32 %v2123, %v2123
    %v2134 = vmul.f32 %v2126, %v2126
    %v2135 = vmul.f32 %v2129, %v2129
    %v2136 = vmul.f32 %v2117, %v2131
    %v2137 = vmul.f32 %v2120, %v2132
    %v2138 = vmul.f32 %v2123, %v2133
    %v2139 = vmul.f32 %v2126, %v2134
    %v2140 = vmul.f32 %v2129, %v2135
    %v2141 = vmul.f32 %v2136, 0.044715
    %v2142 = vmul.f32 %v2137, 0.044715
    %v2143 = vmul.f32 %v2138, 0.044715
    %v2144 = vmul.f32 %v2139, 0.044715
    %v2145 = vmul.f32 %v2140, 0.044715
    %v2146 = vadd.f32 %v2117, %v2141
    %v2147 = vadd.f32 %v2120, %v2142
    %v2148 = vadd.f32 %v2123, %v2143
    %v2149 = vadd.f32 %v2126, %v2144
    %v2150 = vadd.f32 %v2129, %v2145
    %v2151 = vmul.f32 %v2146, 0.7978846
    %v2152 = vmul.f32 %v2147, 0.7978846
    %v2153 = vmul.f32 %v2148, 0.7978846
    %v2154 = vmul.f32 %v2149, 0.7978846
    %v2155 = vmul.f32 %v2150, 0.7978846
    %v2156 = vtanh.pop %v2151
    %v2157 = vtanh.pop %v2152
    %v2158 = vtanh.pop %v2153
    %v2159 = vtanh.pop %v2154
    %v2160 = vtanh.pop %v2155
    %v2161 = vadd.f32 %v2156, 1.0
    %v2162 = vadd.f32 %v2157, 1.0
    %v2163 = vadd.f32 %v2158, 1.0
    %v2164 = vadd.f32 %v2159, 1.0
    %v2165 = vadd.f32 %v2160, 1.0
    %v2166 = vmul.f32 %v2161, 0.5
    %v2167 = vmul.f32 %v2162, 0.5
    %v2168 = vmul.f32 %v2163, 0.5
    %v2169 = vmul.f32 %v2164, 0.5
    %v2170 = vmul.f32 %v2165, 0.5
    %v2171 = vmul.f32 %v2117, %v2166
    %v2172 = vmul.f32 %v2120, %v2167
    %v2173 = vmul.f32 %v2123, %v2168
    %v2174 = vmul.f32 %v2126, %v2169
    %v2175 = vmul.f32 %v2129, %v2170
    %v2176 = vld [vmem:[#allocation4 + $0x118] sm:$0xff]
    %v2177 = vld [vmem:[#allocation4 + $0x120] sm:$0xff]
    %v2178 = vld [vmem:[#allocation4 + $0x128] sm:$0xff]
    %v2179 = vld [vmem:[#allocation4 + $0x130] sm:$0xff]
    %v2180 = vld [vmem:[#allocation4 + $0x138] sm:$0xff]
    %v2181 = vld [vmem:[#allocation4 + $0x140] sm:$0xff]
    %v2182 = vld [vmem:[#allocation4 + $0x148] sm:$0xff]
    %v2183 = vld [vmem:[#allocation4 + $0x150] sm:$0xff]
    %vm2184 = vcmask 523264
    %v2186 = vsel %vm2184, %v2171, 0
    %v2189 = vsel %vm2184, %v2172, 0
    %v2192 = vsel %vm2184, %v2173, 0
    %v2195 = vsel %vm2184, %v2174, 0
    %v2198 = vsel %vm2184, %v2175, 0
    %2200 = vmatpush.msra.mxu0 0.0
    %2201 = vmatpush.msra.mxu0 0.0
    %2202 = vmatpush.msra.mxu0 0.0
    %2203 = vmatpush.msra.mxu0 0.0
    %2204 = vmatpush.msra.mxu0 0.0
    %2205 = vmatpush.msra.mxu0 0.0
    %2206 = vmatpush.msra.mxu0 0.0
    %2207 = vmatpush.msra.mxu0 0.0
    %2208 = vmatpush.msra.mxu0 %v2183
    %2209 = vmatpush.msra.mxu0 %v2182
    %2210 = vmatpush.msra.mxu0 %v2181
    %2211 = vmatpush.msra.mxu0 %v2180
    %2212 = vmatpush.msra.mxu0 %v2179
    %2213 = vmatpush.msra.mxu0 %v2178
    %2214 = vmatpush.msra.mxu0 %v2177
    %2215 = vmatpush.msra.mxu0 %v2176
    %2216 = vmatmul.f32.gmra.mxu0 %v2186
    %v2217 = vpop.f32.mrf.mxu0
    %v2218 = vadd.f32 0.0, %v2217
    %2219 = vmatmul.f32.gmra.mxu0 %v2189
    %v2220 = vpop.f32.mrf.mxu0
    %v2221 = vadd.f32 0.0, %v2220
    %2222 = vmatmul.f32.gmra.mxu0 %v2192
    %v2223 = vpop.f32.mrf.mxu0
    %v2224 = vadd.f32 0.0, %v2223
    %2225 = vmatmul.f32.gmra.mxu0 %v2195
    %v2226 = vpop.f32.mrf.mxu0
    %v2227 = vadd.f32 0.0, %v2226
    %2228 = vmatmul.f32.gmra.mxu0 %v2198
    %v2229 = vpop.f32.mrf.mxu0
    %v2230 = vadd.f32 0.0, %v2229
    %2231 = vdwg.mxu0
    %v2232 = vadd.f32 %v1952, %v2218
    %v2233 = vadd.f32 %v1953, %v2221
    %v2234 = vadd.f32 %v1954, %v2224
    %v2235 = vadd.f32 %v1955, %v2227
    %v2236 = vadd.f32 %v1956, %v2230
    %v2237 = vperm.slane %v632, 0
    %v2238 = vadd.f32 %v2232, %v2237
    %v2239 = vadd.f32 %v2233, %v2237
    %v2240 = vadd.f32 %v2234, %v2237
    %v2241 = vadd.f32 %v2235, %v2237
    %v2242 = vadd.f32 %v2236, %v2237
    %v2243 = vld [vmem:[#allocation4 + $0x158] sm:$0x1]
    %v2244 = vld [vmem:[#allocation4 + $0x159] sm:$0x1]
    %v2245 = vld [vmem:[#allocation4 + $0x15a] sm:$0x1]
    %v2246 = vld [vmem:[#allocation4 + $0x15b] sm:$0x1]
    %v2247 = vld [vmem:[#allocation4 + $0x15c] sm:$0x1]
    %v2248 = vld [vmem:[#allocation4 + $0x15d] sm:$0x1]
    %v2249 = vld [vmem:[#allocation4 + $0x15e] sm:$0x1]
    %v2250 = vld [vmem:[#allocation4 + $0x15f] sm:$0x1]
    %v2251 = vsel %vm633, %v2238, 0.0
    %2252 = vadd.xlane.f32.xlu0 %v2251
    %v2253 = vpop.xlane.xlu0 %2252
    %v2254 = vsel %vm633, %v2239, 0.0
    %2255 = vadd.xlane.f32.xlu0 %v2254
    %v2256 = vpop.xlane.xlu0 %2255
    %v2257 = vsel %vm633, %v2240, 0.0
    %2258 = vadd.xlane.f32.xlu0 %v2257
    %v2259 = vpop.xlane.xlu0 %2258
    %v2260 = vsel %vm633, %v2241, 0.0
    %2261 = vadd.xlane.f32.xlu0 %v2260
    %v2262 = vpop.xlane.xlu0 %2261
    %v2263 = vsel %vm633, %v2242, 0.0
    %2264 = vadd.xlane.f32.xlu0 %v2263
    %v2265 = vpop.xlane.xlu0 %2264
    %v2266 = vmul.f32 %v2253, %v655
    %v2267 = vmul.f32 %v2256, %v655
    %v2268 = vmul.f32 %v2259, %v655
    %v2269 = vmul.f32 %v2262, %v655
    %v2270 = vmul.f32 %v2265, %v655
    %v2271 = vsub.f32 %v2238, %v2266
    %v2272 = vsub.f32 %v2239, %v2267
    %v2273 = vsub.f32 %v2240, %v2268
    %v2274 = vsub.f32 %v2241, %v2269
    %v2275 = vsub.f32 %v2242, %v2270
    %v2276 = vmul.f32 %v2271, %v2271
    %v2277 = vmul.f32 %v2272, %v2272
    %v2278 = vmul.f32 %v2273, %v2273
    %v2279 = vmul.f32 %v2274, %v2274
    %v2280 = vmul.f32 %v2275, %v2275
    %v2281 = vsel %vm633, %v2276, 0.0
    %2282 = vadd.xlane.f32.xlu0 %v2281
    %v2283 = vpop.xlane.xlu0 %2282
    %v2284 = vsel %vm633, %v2277, 0.0
    %2285 = vadd.xlane.f32.xlu0 %v2284
    %v2286 = vpop.xlane.xlu0 %2285
    %v2287 = vsel %vm633, %v2278, 0.0
    %2288 = vadd.xlane.f32.xlu0 %v2287
    %v2289 = vpop.xlane.xlu0 %2288
    %v2290 = vsel %vm633, %v2279, 0.0
    %2291 = vadd.xlane.f32.xlu0 %v2290
    %v2292 = vpop.xlane.xlu0 %2291
    %v2293 = vsel %vm633, %v2280, 0.0
    %2294 = vadd.xlane.f32.xlu0 %v2293
    %v2295 = vpop.xlane.xlu0 %2294
    %v2296 = vmul.f32 %v2283, %v655
    %v2297 = vmul.f32 %v2286, %v655
    %v2298 = vmul.f32 %v2289, %v655
    %v2299 = vmul.f32 %v2292, %v655
    %v2300 = vmul.f32 %v2295, %v655
    %v2301 = vadd.f32 %v2296, 1e-12
    %v2302 = vadd.f32 %v2297, 1e-12
    %v2303 = vadd.f32 %v2298, 1e-12
    %v2304 = vadd.f32 %v2299, 1e-12
    %v2305 = vadd.f32 %v2300, 1e-12
    %v2306 = vrsqrt.pop %v2301
    %v2307 = vmul.f32 %v2306, %v2301
    %v2308 = vmul.f32 %v2307, %v2306
    %v2309 = vmul.f32 0.5, %v2308
    %v2310 = vsub.f32 1.5, %v2309
    %v2311 = vmul.f32 %v2306, %v2310
    %vm2312 = vweird.f32 %v2301
    %vm2313 = vweird.f32 %v2306
    %vm2314 = vmor %vm2312, %vm2313
    %v2315 = vsel %vm2314, %v2306, %v2311
    %v2316 = vrsqrt.pop %v2302
    %v2317 = vmul.f32 %v2316, %v2302
    %v2318 = vmul.f32 %v2317, %v2316
    %v2319 = vmul.f32 0.5, %v2318
    %v2320 = vsub.f32 1.5, %v2319
    %v2321 = vmul.f32 %v2316, %v2320
    %vm2322 = vweird.f32 %v2302
    %vm2323 = vweird.f32 %v2316
    %vm2324 = vmor %vm2322, %vm2323
    %v2325 = vsel %vm2324, %v2316, %v2321
    %v2326 = vrsqrt.pop %v2303
    %v2327 = vmul.f32 %v2326, %v2303
    %v2328 = vmul.f32 %v2327, %v2326
    %v2329 = vmul.f32 0.5, %v2328
    %v2330 = vsub.f32 1.5, %v2329
    %v2331 = vmul.f32 %v2326, %v2330
    %vm2332 = vweird.f32 %v2303
    %vm2333 = vweird.f32 %v2326
    %vm2334 = vmor %vm2332, %vm2333
    %v2335 = vsel %vm2334, %v2326, %v2331
    %v2336 = vrsqrt.pop %v2304
    %v2337 = vmul.f32 %v2336, %v2304
    %v2338 = vmul.f32 %v2337, %v2336
    %v2339 = vmul.f32 0.5, %v2338
    %v2340 = vsub.f32 1.5, %v2339
    %v2341 = vmul.f32 %v2336, %v2340
    %vm2342 = vweird.f32 %v2304
    %vm2343 = vweird.f32 %v2336
    %vm2344 = vmor %vm2342, %vm2343
    %v2345 = vsel %vm2344, %v2336, %v2341
    %v2346 = vrsqrt.pop %v2305
    %v2347 = vmul.f32 %v2346, %v2305
    %v2348 = vmul.f32 %v2347, %v2346
    %v2349 = vmul.f32 0.5, %v2348
    %v2350 = vsub.f32 1.5, %v2349
    %v2351 = vmul.f32 %v2346, %v2350
    %vm2352 = vweird.f32 %v2305
    %vm2353 = vweird.f32 %v2346
    %vm2354 = vmor %vm2352, %vm2353
    %v2355 = vsel %vm2354, %v2346, %v2351
    %v2356 = vmul.f32 %v2271, %v2315
    %v2357 = vmul.f32 %v2272, %v2325
    %v2358 = vmul.f32 %v2273, %v2335
    %v2359 = vmul.f32 %v2274, %v2345
    %v2360 = vmul.f32 %v2275, %v2355
    %v2361 = vperm.slane %v2243, 0
    %v2362 = vmul.f32 %v2356, %v2361
    %v2363 = vmul.f32 %v2357, %v2361
    %v2364 = vmul.f32 %v2358, %v2361
    %v2365 = vmul.f32 %v2359, %v2361
    %v2366 = vmul.f32 %v2360, %v2361
    %v2367 = vperm.slane %v2244, 0
    %v2368 = vadd.f32 %v2362, %v2367
    %v2369 = vadd.f32 %v2363, %v2367
    %v2370 = vadd.f32 %v2364, %v2367
    %v2371 = vadd.f32 %v2365, %v2367
    %v2372 = vadd.f32 %v2366, %v2367
    %v2373 = vld [vmem:[#allocation4 + $0x160] sm:$0xff]
    %v2374 = vld [vmem:[#allocation4 + $0x168] sm:$0xff]
    %v2375 = vld [vmem:[#allocation4 + $0x170] sm:$0xff]
    %v2376 = vld [vmem:[#allocation4 + $0x178] sm:$0xff]
    %v2377 = vperm.slane %v2245, 0
    %v2379 = vsel %vm633, %v2368, 0
    %v2382 = vsel %vm633, %v2369, 0
    %v2385 = vsel %vm633, %v2370, 0
    %v2388 = vsel %vm633, %v2371, 0
    %v2391 = vsel %vm633, %v2372, 0
    %2393 = vmatpush.msra.mxu0 0.0
    %2394 = vmatpush.msra.mxu0 0.0
    %2395 = vmatpush.msra.mxu0 0.0
    %2396 = vmatpush.msra.mxu0 0.0
    %2397 = vmatpush.msra.mxu0 0.0
    %2398 = vmatpush.msra.mxu0 0.0
    %2399 = vmatpush.msra.mxu0 0.0
    %2400 = vmatpush.msra.mxu0 0.0
    %2401 = vmatpush.msra.mxu0 0.0
    %2402 = vmatpush.msra.mxu0 0.0
    %2403 = vmatpush.msra.mxu0 0.0
    %2404 = vmatpush.msra.mxu0 0.0
    %2405 = vmatpush.msra.mxu0 %v2376
    %2406 = vmatpush.msra.mxu0 %v2375
    %2407 = vmatpush.msra.mxu0 %v2374
    %2408 = vmatpush.msra.mxu0 %v2373
    %2409 = vmatmul.f32.gmra.mxu0 %v2379
    %v2410 = vpop.f32.mrf.mxu0
    %v2411 = vadd.f32 %v2377, %v2410
    %2412 = vmatmul.f32.gmra.mxu0 %v2382
    %v2413 = vpop.f32.mrf.mxu0
    %v2414 = vadd.f32 %v2377, %v2413
    %2415 = vmatmul.f32.gmra.mxu0 %v2385
    %v2416 = vpop.f32.mrf.mxu0
    %v2417 = vadd.f32 %v2377, %v2416
    %2418 = vmatmul.f32.gmra.mxu0 %v2388
    %v2419 = vpop.f32.mrf.mxu0
    %v2420 = vadd.f32 %v2377, %v2419
    %2421 = vmatmul.f32.gmra.mxu0 %v2391
    %v2422 = vpop.f32.mrf.mxu0
    %v2423 = vadd.f32 %v2377, %v2422
    %2424 = vdwg.mxu0
    %2430 = vrot.lane.b32.xlu0 %v2411, 120
    %v2431 = vpop.permute.xlu0 %2430
    %2432 = vrot.lane.b32.xlu0 %v2414, 120
    %v2433 = vpop.permute.xlu0 %2432
    %2434 = vrot.lane.b32.xlu0 %v2417, 120
    %v2435 = vpop.permute.xlu0 %2434
    %2436 = vrot.lane.b32.xlu0 %v2420, 120
    %v2437 = vpop.permute.xlu0 %2436
    %2438 = vrot.lane.b32.xlu0 %v2423, 120
    %v2439 = vpop.permute.xlu0 %2438
    %2440 = vrot.lane.b32.xlu0 %v2411, 112
    %v2441 = vpop.permute.xlu0 %2440
    %2442 = vrot.lane.b32.xlu0 %v2414, 112
    %v2443 = vpop.permute.xlu0 %2442
    %2444 = vrot.lane.b32.xlu0 %v2417, 112
    %v2445 = vpop.permute.xlu0 %2444
    %2446 = vrot.lane.b32.xlu0 %v2420, 112
    %v2447 = vpop.permute.xlu0 %2446
    %2448 = vrot.lane.b32.xlu0 %v2423, 112
    %v2449 = vpop.permute.xlu0 %2448
    %2450 = vrot.lane.b32.xlu0 %v2411, 104
    %v2451 = vpop.permute.xlu0 %2450
    %2452 = vrot.lane.b32.xlu0 %v2414, 104
    %v2453 = vpop.permute.xlu0 %2452
    %2454 = vrot.lane.b32.xlu0 %v2417, 104
    %v2455 = vpop.permute.xlu0 %2454
    %2456 = vrot.lane.b32.xlu0 %v2420, 104
    %v2457 = vpop.permute.xlu0 %2456
    %2458 = vrot.lane.b32.xlu0 %v2423, 104
    %v2459 = vpop.permute.xlu0 %2458
    %2460 = vrot.lane.b32.xlu0 %v2411, 96
    %v2461 = vpop.permute.xlu0 %2460
    %2462 = vrot.lane.b32.xlu0 %v2414, 96
    %v2463 = vpop.permute.xlu0 %2462
    %2464 = vrot.lane.b32.xlu0 %v2417, 96
    %v2465 = vpop.permute.xlu0 %2464
    %2466 = vrot.lane.b32.xlu0 %v2420, 96
    %v2467 = vpop.permute.xlu0 %2466
    %2468 = vrot.lane.b32.xlu0 %v2423, 96
    %v2469 = vpop.permute.xlu0 %2468
    %2470 = vrot.lane.b32.xlu0 %v2431, 96
    %v2471 = vpop.permute.xlu0 %2470
    %2472 = vrot.lane.b32.xlu0 %v2433, 96
    %v2473 = vpop.permute.xlu0 %2472
    %2474 = vrot.lane.b32.xlu0 %v2435, 96
    %v2475 = vpop.permute.xlu0 %2474
    %2476 = vrot.lane.b32.xlu0 %v2437, 96
    %v2477 = vpop.permute.xlu0 %2476
    %2478 = vrot.lane.b32.xlu0 %v2439, 96
    %v2479 = vpop.permute.xlu0 %2478
    %2480 = vrot.lane.b32.xlu0 %v2441, 96
    %v2481 = vpop.permute.xlu0 %2480
    %2482 = vrot.lane.b32.xlu0 %v2443, 96
    %v2483 = vpop.permute.xlu0 %2482
    %2484 = vrot.lane.b32.xlu0 %v2445, 96
    %v2485 = vpop.permute.xlu0 %2484
    %2486 = vrot.lane.b32.xlu0 %v2447, 96
    %v2487 = vpop.permute.xlu0 %2486
    %2488 = vrot.lane.b32.xlu0 %v2449, 96
    %v2489 = vpop.permute.xlu0 %2488
    %2490 = vrot.lane.b32.xlu0 %v2451, 96
    %v2491 = vpop.permute.xlu0 %2490
    %2492 = vrot.lane.b32.xlu0 %v2453, 96
    %v2493 = vpop.permute.xlu0 %2492
    %2494 = vrot.lane.b32.xlu0 %v2455, 96
    %v2495 = vpop.permute.xlu0 %2494
    %2496 = vrot.lane.b32.xlu0 %v2457, 96
    %v2497 = vpop.permute.xlu0 %2496
    %2498 = vrot.lane.b32.xlu0 %v2459, 96
    %v2499 = vpop.permute.xlu0 %2498
    %v2500 = vsel %vm890, %v2411, 0
    %v2502 = vsel %vm890, %v2414, 0
    %v2504 = vsel %vm890, %v2417, 0
    %v2506 = vsel %vm890, %v2420, 0
    %v2508 = vsel %vm890, %v2423, 0
    %v2510 = vsel %vm890, %v2431, 0
    %v2512 = vsel %vm890, %v2433, 0
    %v2514 = vsel %vm890, %v2435, 0
    %v2516 = vsel %vm890, %v2437, 0
    %v2518 = vsel %vm890, %v2439, 0
    %v2520 = vsel %vm890, %v2441, 0
    %v2522 = vsel %vm890, %v2443, 0
    %v2524 = vsel %vm890, %v2445, 0
    %v2526 = vsel %vm890, %v2447, 0
    %v2528 = vsel %vm890, %v2449, 0
    %v2530 = vsel %vm890, %v2451, 0
    %v2532 = vsel %vm890, %v2453, 0
    %v2534 = vsel %vm890, %v2455, 0
    %v2536 = vsel %vm890, %v2457, 0
    %v2538 = vsel %vm890, %v2459, 0
    %v2540 = vsel %vm890, %v2461, 0
    %v2542 = vsel %vm890, %v2463, 0
    %v2544 = vsel %vm890, %v2465, 0
    %v2546 = vsel %vm890, %v2467, 0
    %v2548 = vsel %vm890, %v2469, 0
    %v2550 = vsel %vm890, %v2471, 0
    %v2552 = vsel %vm890, %v2473, 0
    %v2554 = vsel %vm890, %v2475, 0
    %v2556 = vsel %vm890, %v2477, 0
    %v2558 = vsel %vm890, %v2479, 0
    %v2560 = vsel %vm890, %v2481, 0
    %v2562 = vsel %vm890, %v2483, 0
    %v2564 = vsel %vm890, %v2485, 0
    %v2566 = vsel %vm890, %v2487, 0
    %v2568 = vsel %vm890, %v2489, 0
    %v2570 = vsel %vm890, %v2491, 0
    %v2572 = vsel %vm890, %v2493, 0
    %v2574 = vsel %vm890, %v2495, 0
    %v2576 = vsel %vm890, %v2497, 0
    %v2578 = vsel %vm890, %v2499, 0
    %2580 = vmatpush.xpose.msra.mxu0 %v2570
    %2581 = vmatpush.xpose.msra.mxu0 %v2568
    %2582 = vmatpush.xpose.msra.mxu0 %v2566
    %2583 = vmatpush.xpose.msra.mxu0 %v2564
    %2584 = vmatpush.xpose.msra.mxu0 %v2562
    %2585 = vmatpush.xpose.msra.mxu0 %v2560
    %2586 = vmatpush.xpose.msra.mxu0 %v2558
    %2587 = vmatpush.xpose.msra.mxu0 %v2556
    %2588 = vmatpush.xpose.msra.mxu0 %v2554
    %2589 = vmatpush.xpose.msra.mxu0 %v2552
    %2590 = vmatpush.xpose.msra.mxu0 %v2550
    %2591 = vmatpush.xpose.msra.mxu0 %v2548
    %2592 = vmatpush.xpose.msra.mxu0 %v2546
    %2593 = vmatpush.xpose.msra.mxu0 %v2544
    %2594 = vmatpush.xpose.msra.mxu0 %v2542
    %2595 = vmatpush.xpose.msra.mxu0 %v2540
    %2596 = vmatmul.f32.gmra.mxu0 %v2500
    %v2597 = vpop.f32.mrf.mxu0
    %v2598 = vadd.f32 %v585, %v2597
    %2599 = vmatmul.f32.gmra.mxu0 %v2502
    %v2600 = vpop.f32.mrf.mxu0
    %v2601 = vadd.f32 %v587, %v2600
    %2602 = vmatmul.f32.gmra.mxu0 %v2504
    %v2603 = vpop.f32.mrf.mxu0
    %v2604 = vadd.f32 %v589, %v2603
    %2605 = vmatmul.f32.gmra.mxu0 %v2506
    %v2606 = vpop.f32.mrf.mxu0
    %v2607 = vadd.f32 %v591, %v2606
    %2608 = vmatmul.f32.gmra.mxu0 %v2508
    %v2609 = vpop.f32.mrf.mxu0
    %v2610 = vadd.f32 %v593, %v2609
    %2611 = vmatmul.f32.gmra.mxu0 %v2510
    %v2612 = vpop.f32.mrf.mxu0
    %v2613 = vadd.f32 %v595, %v2612
    %2614 = vmatmul.f32.gmra.mxu0 %v2512
    %v2615 = vpop.f32.mrf.mxu0
    %v2616 = vadd.f32 %v597, %v2615
    %2617 = vmatmul.f32.gmra.mxu0 %v2514
    %v2618 = vpop.f32.mrf.mxu0
    %v2619 = vadd.f32 %v599, %v2618
    %2620 = vmatmul.f32.gmra.mxu0 %v2516
    %v2621 = vpop.f32.mrf.mxu0
    %v2622 = vadd.f32 %v601, %v2621
    %2623 = vmatmul.f32.gmra.mxu0 %v2518
    %v2624 = vpop.f32.mrf.mxu0
    %v2625 = vadd.f32 %v603, %v2624
    %2626 = vmatmul.f32.gmra.mxu0 %v2520
    %v2627 = vpop.f32.mrf.mxu0
    %v2628 = vadd.f32 %v605, %v2627
    %2629 = vmatmul.f32.gmra.mxu0 %v2522
    %v2630 = vpop.f32.mrf.mxu0
    %v2631 = vadd.f32 %v607, %v2630
    %2632 = vmatmul.f32.gmra.mxu0 %v2524
    %v2633 = vpop.f32.mrf.mxu0
    %v2634 = vadd.f32 %v609, %v2633
    %2635 = vmatmul.f32.gmra.mxu0 %v2526
    %v2636 = vpop.f32.mrf.mxu0
    %v2637 = vadd.f32 %v611, %v2636
    %2638 = vmatmul.f32.gmra.mxu0 %v2528
    %v2639 = vpop.f32.mrf.mxu0
    %v2640 = vadd.f32 %v613, %v2639
    %2641 = vmatmul.f32.gmra.mxu0 %v2530
    %v2642 = vpop.f32.mrf.mxu0
    %v2643 = vadd.f32 %v615, %v2642
    %2644 = vmatmul.f32.gmra.mxu0 %v2532
    %v2645 = vpop.f32.mrf.mxu0
    %v2646 = vadd.f32 %v617, %v2645
    %2647 = vmatmul.f32.gmra.mxu0 %v2534
    %v2648 = vpop.f32.mrf.mxu0
    %v2649 = vadd.f32 %v619, %v2648
    %2650 = vmatmul.f32.gmra.mxu0 %v2536
    %v2651 = vpop.f32.mrf.mxu0
    %v2652 = vadd.f32 %v621, %v2651
    %2653 = vmatmul.f32.gmra.mxu0 %v2538
    %v2654 = vpop.f32.mrf.mxu0
    %v2655 = vadd.f32 %v623, %v2654
    %2656 = vdwg.mxu0
    %2657 = vmatpush.xpose.msra.mxu0 0.0
    %2658 = vmatpush.xpose.msra.mxu0 0.0
    %2659 = vmatpush.xpose.msra.mxu0 0.0
    %2660 = vmatpush.xpose.msra.mxu0 0.0
    %2661 = vmatpush.xpose.msra.mxu0 0.0
    %2662 = vmatpush.xpose.msra.mxu0 0.0
    %2663 = vmatpush.xpose.msra.mxu0 0.0
    %2664 = vmatpush.xpose.msra.mxu0 0.0
    %2665 = vmatpush.xpose.msra.mxu0 0.0
    %2666 = vmatpush.xpose.msra.mxu0 0.0
    %2667 = vmatpush.xpose.msra.mxu0 0.0
    %2668 = vmatpush.xpose.msra.mxu0 0.0
    %2669 = vmatpush.xpose.msra.mxu0 %v2578
    %2670 = vmatpush.xpose.msra.mxu0 %v2576
    %2671 = vmatpush.xpose.msra.mxu0 %v2574
    %2672 = vmatpush.xpose.msra.mxu0 %v2572
    %2673 = vmatmul.f32.gmra.mxu0 %v2500
    %v2674 = vpop.f32.mrf.mxu0
    %v2675 = vadd.f32 %v586, %v2674
    %2676 = vmatmul.f32.gmra.mxu0 %v2502
    %v2677 = vpop.f32.mrf.mxu0
    %v2678 = vadd.f32 %v588, %v2677
    %2679 = vmatmul.f32.gmra.mxu0 %v2504
    %v2680 = vpop.f32.mrf.mxu0
    %v2681 = vadd.f32 %v590, %v2680
    %2682 = vmatmul.f32.gmra.mxu0 %v2506
    %v2683 = vpop.f32.mrf.mxu0
    %v2684 = vadd.f32 %v592, %v2683
    %2685 = vmatmul.f32.gmra.mxu0 %v2508
    %v2686 = vpop.f32.mrf.mxu0
    %v2687 = vadd.f32 %v594, %v2686
    %2688 = vmatmul.f32.gmra.mxu0 %v2510
    %v2689 = vpop.f32.mrf.mxu0
    %v2690 = vadd.f32 %v596, %v2689
    %2691 = vmatmul.f32.gmra.mxu0 %v2512
    %v2692 = vpop.f32.mrf.mxu0
    %v2693 = vadd.f32 %v598, %v2692
    %2694 = vmatmul.f32.gmra.mxu0 %v2514
    %v2695 = vpop.f32.mrf.mxu0
    %v2696 = vadd.f32 %v600, %v2695
    %2697 = vmatmul.f32.gmra.mxu0 %v2516
    %v2698 = vpop.f32.mrf.mxu0
    %v2699 = vadd.f32 %v602, %v2698
    %2700 = vmatmul.f32.gmra.mxu0 %v2518
    %v2701 = vpop.f32.mrf.mxu0
    %v2702 = vadd.f32 %v604, %v2701
    %2703 = vmatmul.f32.gmra.mxu0 %v2520
    %v2704 = vpop.f32.mrf.mxu0
    %v2705 = vadd.f32 %v606, %v2704
    %2706 = vmatmul.f32.gmra.mxu0 %v2522
    %v2707 = vpop.f32.mrf.mxu0
    %v2708 = vadd.f32 %v608, %v2707
    %2709 = vmatmul.f32.gmra.mxu0 %v2524
    %v2710 = vpop.f32.mrf.mxu0
    %v2711 = vadd.f32 %v610, %v2710
    %2712 = vmatmul.f32.gmra.mxu0 %v2526
    %v2713 = vpop.f32.mrf.mxu0
    %v2714 = vadd.f32 %v612, %v2713
    %2715 = vmatmul.f32.gmra.mxu0 %v2528
    %v2716 = vpop.f32.mrf.mxu0
    %v2717 = vadd.f32 %v614, %v2716
    %2718 = vmatmul.f32.gmra.mxu0 %v2530
    %v2719 = vpop.f32.mrf.mxu0
    %v2720 = vadd.f32 %v616, %v2719
    %2721 = vmatmul.f32.gmra.mxu0 %v2532
    %v2722 = vpop.f32.mrf.mxu0
    %v2723 = vadd.f32 %v618, %v2722
    %2724 = vmatmul.f32.gmra.mxu0 %v2534
    %v2725 = vpop.f32.mrf.mxu0
    %v2726 = vadd.f32 %v620, %v2725
    %2727 = vmatmul.f32.gmra.mxu0 %v2536
    %v2728 = vpop.f32.mrf.mxu0
    %v2729 = vadd.f32 %v622, %v2728
    %2730 = vmatmul.f32.gmra.mxu0 %v2538
    %v2731 = vpop.f32.mrf.mxu0
    %v2732 = vadd.f32 %v624, %v2731
    %2733 = vdwg.mxu0
    %v2734 = vsel %vm633, %v2675, -inf
    %v2735 = vmax.f32 %v2598, %v2734
    %2736 = vmax.xlane.f32.xlu0 %v2735
    %v2737 = vpop.xlane.xlu0 %2736
    %v2738 = vsel %vm633, %v2678, -inf
    %v2739 = vmax.f32 %v2601, %v2738
    %2740 = vmax.xlane.f32.xlu0 %v2739
    %v2741 = vpop.xlane.xlu0 %2740
    %v2742 = vsel %vm633, %v2681, -inf
    %v2743 = vmax.f32 %v2604, %v2742
    %2744 = vmax.xlane.f32.xlu0 %v2743
    %v2745 = vpop.xlane.xlu0 %2744
    %v2746 = vsel %vm633, %v2684, -inf
    %v2747 = vmax.f32 %v2607, %v2746
    %2748 = vmax.xlane.f32.xlu0 %v2747
    %v2749 = vpop.xlane.xlu0 %2748
    %v2750 = vsel %vm633, %v2687, -inf
    %v2751 = vmax.f32 %v2610, %v2750
    %2752 = vmax.xlane.f32.xlu0 %v2751
    %v2753 = vpop.xlane.xlu0 %2752
    %v2754 = vsel %vm633, %v2690, -inf
    %v2755 = vmax.f32 %v2613, %v2754
    %2756 = vmax.xlane.f32.xlu0 %v2755
    %v2757 = vpop.xlane.xlu0 %2756
    %v2758 = vsel %vm633, %v2693, -inf
    %v2759 = vmax.f32 %v2616, %v2758
    %2760 = vmax.xlane.f32.xlu0 %v2759
    %v2761 = vpop.xlane.xlu0 %2760
    %v2762 = vsel %vm633, %v2696, -inf
    %v2763 = vmax.f32 %v2619, %v2762
    %2764 = vmax.xlane.f32.xlu0 %v2763
    %v2765 = vpop.xlane.xlu0 %2764
    %v2766 = vsel %vm633, %v2699, -inf
    %v2767 = vmax.f32 %v2622, %v2766
    %2768 = vmax.xlane.f32.xlu0 %v2767
    %v2769 = vpop.xlane.xlu0 %2768
    %v2770 = vsel %vm633, %v2702, -inf
    %v2771 = vmax.f32 %v2625, %v2770
    %2772 = vmax.xlane.f32.xlu0 %v2771
    %v2773 = vpop.xlane.xlu0 %2772
    %v2774 = vsel %vm633, %v2705, -inf
    %v2775 = vmax.f32 %v2628, %v2774
    %2776 = vmax.xlane.f32.xlu0 %v2775
    %v2777 = vpop.xlane.xlu0 %2776
    %v2778 = vsel %vm633, %v2708, -inf
    %v2779 = vmax.f32 %v2631, %v2778
    %2780 = vmax.xlane.f32.xlu0 %v2779
    %v2781 = vpop.xlane.xlu0 %2780
    %v2782 = vsel %vm633, %v2711, -inf
    %v2783 = vmax.f32 %v2634, %v2782
    %2784 = vmax.xlane.f32.xlu0 %v2783
    %v2785 = vpop.xlane.xlu0 %2784
    %v2786 = vsel %vm633, %v2714, -inf
    %v2787 = vmax.f32 %v2637, %v2786
    %2788 = vmax.xlane.f32.xlu0 %v2787
    %v2789 = vpop.xlane.xlu0 %2788
    %v2790 = vsel %vm633, %v2717, -inf
    %v2791 = vmax.f32 %v2640, %v2790
    %2792 = vmax.xlane.f32.xlu0 %v2791
    %v2793 = vpop.xlane.xlu0 %2792
    %v2794 = vsel %vm633, %v2720, -inf
    %v2795 = vmax.f32 %v2643, %v2794
    %2796 = vmax.xlane.f32.xlu0 %v2795
    %v2797 = vpop.xlane.xlu0 %2796
    %v2798 = vsel %vm633, %v2723, -inf
    %v2799 = vmax.f32 %v2646, %v2798
    %2800 = vmax.xlane.f32.xlu0 %v2799
    %v2801 = vpop.xlane.xlu0 %2800
    %v2802 = vsel %vm633, %v2726, -inf
    %v2803 = vmax.f32 %v2649, %v2802
    %2804 = vmax.xlane.f32.xlu0 %v2803
    %v2805 = vpop.xlane.xlu0 %2804
    %v2806 = vsel %vm633, %v2729, -inf
    %v2807 = vmax.f32 %v2652, %v2806
    %2808 = vmax.xlane.f32.xlu0 %v2807
    %v2809 = vpop.xlane.xlu0 %2808
    %v2810 = vsel %vm633, %v2732, -inf
    %v2811 = vmax.f32 %v2655, %v2810
    %2812 = vmax.xlane.f32.xlu0 %v2811
    %v2813 = vpop.xlane.xlu0 %2812
    %v2814 = vsub.f32 %v2598, %v2737
    %v2815 = vsub.f32 %v2675, %v2737
    %v2816 = vsub.f32 %v2601, %v2741
    %v2817 = vsub.f32 %v2678, %v2741
    %v2818 = vsub.f32 %v2604, %v2745
    %v2819 = vsub.f32 %v2681, %v2745
    %v2820 = vsub.f32 %v2607, %v2749
    %v2821 = vsub.f32 %v2684, %v2749
    %v2822 = vsub.f32 %v2610, %v2753
    %v2823 = vsub.f32 %v2687, %v2753
    %v2824 = vsub.f32 %v2613, %v2757
    %v2825 = vsub.f32 %v2690, %v2757
    %v2826 = vsub.f32 %v2616, %v2761
    %v2827 = vsub.f32 %v2693, %v2761
    %v2828 = vsub.f32 %v2619, %v2765
    %v2829 = vsub.f32 %v2696, %v2765
    %v2830 = vsub.f32 %v2622, %v2769
    %v2831 = vsub.f32 %v2699, %v2769
    %v2832 = vsub.f32 %v2625, %v2773
    %v2833 = vsub.f32 %v2702, %v2773
    %v2834 = vsub.f32 %v2628, %v2777
    %v2835 = vsub.f32 %v2705, %v2777
    %v2836 = vsub.f32 %v2631, %v2781
    %v2837 = vsub.f32 %v2708, %v2781
    %v2838 = vsub.f32 %v2634, %v2785
    %v2839 = vsub.f32 %v2711, %v2785
    %v2840 = vsub.f32 %v2637, %v2789
    %v2841 = vsub.f32 %v2714, %v2789
    %v2842 = vsub.f32 %v2640, %v2793
    %v2843 = vsub.f32 %v2717, %v2793
    %v2844 = vsub.f32 %v2643, %v2797
    %v2845 = vsub.f32 %v2720, %v2797
    %v2846 = vsub.f32 %v2646, %v2801
    %v2847 = vsub.f32 %v2723, %v2801
    %v2848 = vsub.f32 %v2649, %v2805
    %v2849 = vsub.f32 %v2726, %v2805
    %v2850 = vsub.f32 %v2652, %v2809
    %v2851 = vsub.f32 %v2729, %v2809
    %v2852 = vsub.f32 %v2655, %v2813
    %v2853 = vsub.f32 %v2732, %v2813
    %v2854 = vmul.f32 %v2814, 1.442695
    %v2855 = vpow.pop %v2854
    %v2856 = vmul.f32 %v2815, 1.442695
    %v2857 = vpow.pop %v2856
    %v2858 = vmul.f32 %v2816, 1.442695
    %v2859 = vpow.pop %v2858
    %v2860 = vmul.f32 %v2817, 1.442695
    %v2861 = vpow.pop %v2860
    %v2862 = vmul.f32 %v2818, 1.442695
    %v2863 = vpow.pop %v2862
    %v2864 = vmul.f32 %v2819, 1.442695
    %v2865 = vpow.pop %v2864
    %v2866 = vmul.f32 %v2820, 1.442695
    %v2867 = vpow.pop %v2866
    %v2868 = vmul.f32 %v2821, 1.442695
    %v2869 = vpow.pop %v2868
    %v2870 = vmul.f32 %v2822, 1.442695
    %v2871 = vpow.pop %v2870
    %v2872 = vmul.f32 %v2823, 1.442695
    %v2873 = vpow.pop %v2872
    %v2874 = vmul.f32 %v2824, 1.442695
    %v2875 = vpow.pop %v2874
    %v2876 = vmul.f32 %v2825, 1.442695
    %v2877 = vpow.pop %v2876
    %v2878 = vmul.f32 %v2826, 1.442695
    %v2879 = vpow.pop %v2878
    %v2880 = vmul.f32 %v2827, 1.442695
    %v2881 = vpow.pop %v2880
    %v2882 = vmul.f32 %v2828, 1.442695
    %v2883 = vpow.pop %v2882
    %v2884 = vmul.f32 %v2829, 1.442695
    %v2885 = vpow.pop %v2884
    %v2886 = vmul.f32 %v2830, 1.442695
    %v2887 = vpow.pop %v2886
    %v2888 = vmul.f32 %v2831, 1.442695
    %v2889 = vpow.pop %v2888
    %v2890 = vmul.f32 %v2832, 1.442695
    %v2891 = vpow.pop %v2890
    %v2892 = vmul.f32 %v2833, 1.442695
    %v2893 = vpow.pop %v2892
    %v2894 = vmul.f32 %v2834, 1.442695
    %v2895 = vpow.pop %v2894
    %v2896 = vmul.f32 %v2835, 1.442695
    %v2897 = vpow.pop %v2896
    %v2898 = vmul.f32 %v2836, 1.442695
    %v2899 = vpow.pop %v2898
    %v2900 = vmul.f32 %v2837, 1.442695
    %v2901 = vpow.pop %v2900
    %v2902 = vmul.f32 %v2838, 1.442695
    %v2903 = vpow.pop %v2902
    %v2904 = vmul.f32 %v2839, 1.442695
    %v2905 = vpow.pop %v2904
    %v2906 = vmul.f32 %v2840, 1.442695
    %v2907 = vpow.pop %v2906
    %v2908 = vmul.f32 %v2841, 1.442695
    %v2909 = vpow.pop %v2908
    %v2910 = vmul.f32 %v2842, 1.442695
    %v2911 = vpow.pop %v2910
    %v2912 = vmul.f32 %v2843, 1.442695
    %v2913 = vpow.pop %v2912
    %v2914 = vmul.f32 %v2844, 1.442695
    %v2915 = vpow.pop %v2914
    %v2916 = vmul.f32 %v2845, 1.442695
    %v2917 = vpow.pop %v2916
    %v2918 = vmul.f32 %v2846, 1.442695
    %v2919 = vpow.pop %v2918
    %v2920 = vmul.f32 %v2847, 1.442695
    %v2921 = vpow.pop %v2920
    %v2922 = vmul.f32 %v2848, 1.442695
    %v2923 = vpow.pop %v2922
    %v2924 = vmul.f32 %v2849, 1.442695
    %v2925 = vpow.pop %v2924
    %v2926 = vmul.f32 %v2850, 1.442695
    %v2927 = vpow.pop %v2926
    %v2928 = vmul.f32 %v2851, 1.442695
    %v2929 = vpow.pop %v2928
    %v2930 = vmul.f32 %v2852, 1.442695
    %v2931 = vpow.pop %v2930
    %v2932 = vmul.f32 %v2853, 1.442695
    %v2933 = vpow.pop %v2932
    %v2934 = vsel %vm633, %v2857, 0.0
    %v2935 = vadd.f32 %v2855, %v2934
    %2936 = vadd.xlane.f32.xlu0 %v2935
    %v2937 = vpop.xlane.xlu0 %2936
    %v2938 = vsel %vm633, %v2861, 0.0
    %v2939 = vadd.f32 %v2859, %v2938
    %2940 = vadd.xlane.f32.xlu0 %v2939
    %v2941 = vpop.xlane.xlu0 %2940
    %v2942 = vsel %vm633, %v2865, 0.0
    %v2943 = vadd.f32 %v2863, %v2942
    %2944 = vadd.xlane.f32.xlu0 %v2943
    %v2945 = vpop.xlane.xlu0 %2944
    %v2946 = vsel %vm633, %v2869, 0.0
    %v2947 = vadd.f32 %v2867, %v2946
    %2948 = vadd.xlane.f32.xlu0 %v2947
    %v2949 = vpop.xlane.xlu0 %2948
    %v2950 = vsel %vm633, %v2873, 0.0
    %v2951 = vadd.f32 %v2871, %v2950
    %2952 = vadd.xlane.f32.xlu0 %v2951
    %v2953 = vpop.xlane.xlu0 %2952
    %v2954 = vsel %vm633, %v2877, 0.0
    %v2955 = vadd.f32 %v2875, %v2954
    %2956 = vadd.xlane.f32.xlu0 %v2955
    %v2957 = vpop.xlane.xlu0 %2956
    %v2958 = vsel %vm633, %v2881, 0.0
    %v2959 = vadd.f32 %v2879, %v2958
    %2960 = vadd.xlane.f32.xlu0 %v2959
    %v2961 = vpop.xlane.xlu0 %2960
    %v2962 = vsel %vm633, %v2885, 0.0
    %v2963 = vadd.f32 %v2883, %v2962
    %2964 = vadd.xlane.f32.xlu0 %v2963
    %v2965 = vpop.xlane.xlu0 %2964
    %v2966 = vsel %vm633, %v2889, 0.0
    %v2967 = vadd.f32 %v2887, %v2966
    %2968 = vadd.xlane.f32.xlu0 %v2967
    %v2969 = vpop.xlane.xlu0 %2968
    %v2970 = vsel %vm633, %v2893, 0.0
    %v2971 = vadd.f32 %v2891, %v2970
    %2972 = vadd.xlane.f32.xlu0 %v2971
    %v2973 = vpop.xlane.xlu0 %2972
    %v2974 = vsel %vm633, %v2897, 0.0
    %v2975 = vadd.f32 %v2895, %v2974
    %2976 = vadd.xlane.f32.xlu0 %v2975
    %v2977 = vpop.xlane.xlu0 %2976
    %v2978 = vsel %vm633, %v2901, 0.0
    %v2979 = vadd.f32 %v2899, %v2978
    %2980 = vadd.xlane.f32.xlu0 %v2979
    %v2981 = vpop.xlane.xlu0 %2980
    %v2982 = vsel %vm633, %v2905, 0.0
    %v2983 = vadd.f32 %v2903, %v2982
    %2984 = vadd.xlane.f32.xlu0 %v2983
    %v2985 = vpop.xlane.xlu0 %2984
    %v2986 = vsel %vm633, %v2909, 0.0
    %v2987 = vadd.f32 %v2907, %v2986
    %2988 = vadd.xlane.f32.xlu0 %v2987
    %v2989 = vpop.xlane.xlu0 %2988
    %v2990 = vsel %vm633, %v2913, 0.0
    %v2991 = vadd.f32 %v2911, %v2990
    %2992 = vadd.xlane.f32.xlu0 %v2991
    %v2993 = vpop.xlane.xlu0 %2992
    %v2994 = vsel %vm633, %v2917, 0.0
    %v2995 = vadd.f32 %v2915, %v2994
    %2996 = vadd.xlane.f32.xlu0 %v2995
    %v2997 = vpop.xlane.xlu0 %2996
    %v2998 = vsel %vm633, %v2921, 0.0
    %v2999 = vadd.f32 %v2919, %v2998
    %3000 = vadd.xlane.f32.xlu0 %v2999
    %v3001 = vpop.xlane.xlu0 %3000
    %v3002 = vsel %vm633, %v2925, 0.0
    %v3003 = vadd.f32 %v2923, %v3002
    %3004 = vadd.xlane.f32.xlu0 %v3003
    %v3005 = vpop.xlane.xlu0 %3004
    %v3006 = vsel %vm633, %v2929, 0.0
    %v3007 = vadd.f32 %v2927, %v3006
    %3008 = vadd.xlane.f32.xlu0 %v3007
    %v3009 = vpop.xlane.xlu0 %3008
    %v3010 = vsel %vm633, %v2933, 0.0
    %v3011 = vadd.f32 %v2931, %v3010
    %3012 = vadd.xlane.f32.xlu0 %v3011
    %v3013 = vpop.xlane.xlu0 %3012
    %v3014 = vrcp.pop %v2937
    %v3015 = vrcp.pop %v2941
    %v3016 = vrcp.pop %v2945
    %v3017 = vrcp.pop %v2949
    %v3018 = vrcp.pop %v2953
    %v3019 = vrcp.pop %v2957
    %v3020 = vrcp.pop %v2961
    %v3021 = vrcp.pop %v2965
    %v3022 = vrcp.pop %v2969
    %v3023 = vrcp.pop %v2973
    %v3024 = vrcp.pop %v2977
    %v3025 = vrcp.pop %v2981
    %v3026 = vrcp.pop %v2985
    %v3027 = vrcp.pop %v2989
    %v3028 = vrcp.pop %v2993
    %v3029 = vrcp.pop %v2997
    %v3030 = vrcp.pop %v3001
    %v3031 = vrcp.pop %v3005
    %v3032 = vrcp.pop %v3009
    %v3033 = vrcp.pop %v3013
    %v3034 = vmul.f32 %v2855, %v3014
    %v3035 = vmul.f32 %v2857, %v3014
    %v3036 = vmul.f32 %v2859, %v3015
    %v3037 = vmul.f32 %v2861, %v3015
    %v3038 = vmul.f32 %v2863, %v3016
    %v3039 = vmul.f32 %v2865, %v3016
    %v3040 = vmul.f32 %v2867, %v3017
    %v3041 = vmul.f32 %v2869, %v3017
    %v3042 = vmul.f32 %v2871, %v3018
    %v3043 = vmul.f32 %v2873, %v3018
    %v3044 = vmul.f32 %v2875, %v3019
    %v3045 = vmul.f32 %v2877, %v3019
    %v3046 = vmul.f32 %v2879, %v3020
    %v3047 = vmul.f32 %v2881, %v3020
    %v3048 = vmul.f32 %v2883, %v3021
    %v3049 = vmul.f32 %v2885, %v3021
    %v3050 = vmul.f32 %v2887, %v3022
    %v3051 = vmul.f32 %v2889, %v3022
    %v3052 = vmul.f32 %v2891, %v3023
    %v3053 = vmul.f32 %v2893, %v3023
    %v3054 = vmul.f32 %v2895, %v3024
    %v3055 = vmul.f32 %v2897, %v3024
    %v3056 = vmul.f32 %v2899, %v3025
    %v3057 = vmul.f32 %v2901, %v3025
    %v3058 = vmul.f32 %v2903, %v3026
    %v3059 = vmul.f32 %v2905, %v3026
    %v3060 = vmul.f32 %v2907, %v3027
    %v3061 = vmul.f32 %v2909, %v3027
    %v3062 = vmul.f32 %v2911, %v3028
    %v3063 = vmul.f32 %v2913, %v3028
    %v3064 = vmul.f32 %v2915, %v3029
    %v3065 = vmul.f32 %v2917, %v3029
    %v3066 = vmul.f32 %v2919, %v3030
    %v3067 = vmul.f32 %v2921, %v3030
    %v3068 = vmul.f32 %v2923, %v3031
    %v3069 = vmul.f32 %v2925, %v3031
    %v3070 = vmul.f32 %v2927, %v3032
    %v3071 = vmul.f32 %v2929, %v3032
    %v3072 = vmul.f32 %v2931, %v3033
    %v3073 = vmul.f32 %v2933, %v3033
    %3074 = vrot.lane.b32.xlu0 %v2411, 64
    %v3075 = vpop.permute.xlu0 %3074
    %3076 = vrot.lane.b32.xlu0 %v2414, 64
    %v3077 = vpop.permute.xlu0 %3076
    %3078 = vrot.lane.b32.xlu0 %v2417, 64
    %v3079 = vpop.permute.xlu0 %3078
    %3080 = vrot.lane.b32.xlu0 %v2420, 64
    %v3081 = vpop.permute.xlu0 %3080
    %3082 = vrot.lane.b32.xlu0 %v2423, 64
    %v3083 = vpop.permute.xlu0 %3082
    %3084 = vrot.lane.b32.xlu0 %v2431, 64
    %v3085 = vpop.permute.xlu0 %3084
    %3086 = vrot.lane.b32.xlu0 %v2433, 64
    %v3087 = vpop.permute.xlu0 %3086
    %3088 = vrot.lane.b32.xlu0 %v2435, 64
    %v3089 = vpop.permute.xlu0 %3088
    %3090 = vrot.lane.b32.xlu0 %v2437, 64
    %v3091 = vpop.permute.xlu0 %3090
    %3092 = vrot.lane.b32.xlu0 %v2439, 64
    %v3093 = vpop.permute.xlu0 %3092
    %3094 = vrot.lane.b32.xlu0 %v2441, 64
    %v3095 = vpop.permute.xlu0 %3094
    %3096 = vrot.lane.b32.xlu0 %v2443, 64
    %v3097 = vpop.permute.xlu0 %3096
    %3098 = vrot.lane.b32.xlu0 %v2445, 64
    %v3099 = vpop.permute.xlu0 %3098
    %3100 = vrot.lane.b32.xlu0 %v2447, 64
    %v3101 = vpop.permute.xlu0 %3100
    %3102 = vrot.lane.b32.xlu0 %v2449, 64
    %v3103 = vpop.permute.xlu0 %3102
    %3104 = vrot.lane.b32.xlu0 %v2451, 64
    %v3105 = vpop.permute.xlu0 %3104
    %3106 = vrot.lane.b32.xlu0 %v2453, 64
    %v3107 = vpop.permute.xlu0 %3106
    %3108 = vrot.lane.b32.xlu0 %v2455, 64
    %v3109 = vpop.permute.xlu0 %3108
    %3110 = vrot.lane.b32.xlu0 %v2457, 64
    %v3111 = vpop.permute.xlu0 %3110
    %3112 = vrot.lane.b32.xlu0 %v2459, 64
    %v3113 = vpop.permute.xlu0 %3112
    %v3135 = vsel %vm633, %v3035, 0
    %v3138 = vsel %vm633, %v3037, 0
    %v3141 = vsel %vm633, %v3039, 0
    %v3144 = vsel %vm633, %v3041, 0
    %v3147 = vsel %vm633, %v3043, 0
    %v3150 = vsel %vm633, %v3045, 0
    %v3153 = vsel %vm633, %v3047, 0
    %v3156 = vsel %vm633, %v3049, 0
    %v3159 = vsel %vm633, %v3051, 0
    %v3162 = vsel %vm633, %v3053, 0
    %v3165 = vsel %vm633, %v3055, 0
    %v3168 = vsel %vm633, %v3057, 0
    %v3171 = vsel %vm633, %v3059, 0
    %v3174 = vsel %vm633, %v3061, 0
    %v3177 = vsel %vm633, %v3063, 0
    %v3180 = vsel %vm633, %v3065, 0
    %v3183 = vsel %vm633, %v3067, 0
    %v3186 = vsel %vm633, %v3069, 0
    %v3189 = vsel %vm633, %v3071, 0
    %v3192 = vsel %vm633, %v3073, 0
    %3194 = vmatpush.msra.mxu0 %v3105
    %3195 = vmatpush.msra.mxu0 %v3103
    %3196 = vmatpush.msra.mxu0 %v3101
    %3197 = vmatpush.msra.mxu0 %v3099
    %3198 = vmatpush.msra.mxu0 %v3097
    %3199 = vmatpush.msra.mxu0 %v3095
    %3200 = vmatpush.msra.mxu0 %v3093
    %3201 = vmatpush.msra.mxu0 %v3091
    %3202 = vmatpush.msra.mxu0 %v3089
    %3203 = vmatpush.msra.mxu0 %v3087
    %3204 = vmatpush.msra.mxu0 %v3085
    %3205 = vmatpush.msra.mxu0 %v3083
    %3206 = vmatpush.msra.mxu0 %v3081
    %3207 = vmatpush.msra.mxu0 %v3079
    %3208 = vmatpush.msra.mxu0 %v3077
    %3209 = vmatpush.msra.mxu0 %v3075
    %3210 = vmatmul.f32.gmra.mxu0 %v3034
    %v3211 = vpop.f32.mrf.mxu0
    %v3212 = vadd.f32 0.0, %v3211
    %3213 = vmatmul.f32.gmra.mxu0 %v3036
    %v3214 = vpop.f32.mrf.mxu0
    %v3215 = vadd.f32 0.0, %v3214
    %3216 = vmatmul.f32.gmra.mxu0 %v3038
    %v3217 = vpop.f32.mrf.mxu0
    %v3218 = vadd.f32 0.0, %v3217
    %3219 = vmatmul.f32.gmra.mxu0 %v3040
    %v3220 = vpop.f32.mrf.mxu0
    %v3221 = vadd.f32 0.0, %v3220
    %3222 = vmatmul.f32.gmra.mxu0 %v3042
    %v3223 = vpop.f32.mrf.mxu0
    %v3224 = vadd.f32 0.0, %v3223
    %3225 = vmatmul.f32.gmra.mxu0 %v3044
    %v3226 = vpop.f32.mrf.mxu0
    %v3227 = vadd.f32 0.0, %v3226
    %3228 = vmatmul.f32.gmra.mxu0 %v3046
    %v3229 = vpop.f32.mrf.mxu0
    %v3230 = vadd.f32 0.0, %v3229
    %3231 = vmatmul.f32.gmra.mxu0 %v3048
    %v3232 = vpop.f32.mrf.mxu0
    %v3233 = vadd.f32 0.0, %v3232
    %3234 = vmatmul.f32.gmra.mxu0 %v3050
    %v3235 = vpop.f32.mrf.mxu0
    %v3236 = vadd.f32 0.0, %v3235
    %3237 = vmatmul.f32.gmra.mxu0 %v3052
    %v3238 = vpop.f32.mrf.mxu0
    %v3239 = vadd.f32 0.0, %v3238
    %3240 = vmatmul.f32.gmra.mxu0 %v3054
    %v3241 = vpop.f32.mrf.mxu0
    %v3242 = vadd.f32 0.0, %v3241
    %3243 = vmatmul.f32.gmra.mxu0 %v3056
    %v3244 = vpop.f32.mrf.mxu0
    %v3245 = vadd.f32 0.0, %v3244
    %3246 = vmatmul.f32.gmra.mxu0 %v3058
    %v3247 = vpop.f32.mrf.mxu0
    %v3248 = vadd.f32 0.0, %v3247
    %3249 = vmatmul.f32.gmra.mxu0 %v3060
    %v3250 = vpop.f32.mrf.mxu0
    %v3251 = vadd.f32 0.0, %v3250
    %3252 = vmatmul.f32.gmra.mxu0 %v3062
    %v3253 = vpop.f32.mrf.mxu0
    %v3254 = vadd.f32 0.0, %v3253
    %3255 = vmatmul.f32.gmra.mxu0 %v3064
    %v3256 = vpop.f32.mrf.mxu0
    %v3257 = vadd.f32 0.0, %v3256
    %3258 = vmatmul.f32.gmra.mxu0 %v3066
    %v3259 = vpop.f32.mrf.mxu0
    %v3260 = vadd.f32 0.0, %v3259
    %3261 = vmatmul.f32.gmra.mxu0 %v3068
    %v3262 = vpop.f32.mrf.mxu0
    %v3263 = vadd.f32 0.0, %v3262
    %3264 = vmatmul.f32.gmra.mxu0 %v3070
    %v3265 = vpop.f32.mrf.mxu0
    %v3266 = vadd.f32 0.0, %v3265
    %3267 = vmatmul.f32.gmra.mxu0 %v3072
    %v3268 = vpop.f32.mrf.mxu0
    %v3269 = vadd.f32 0.0, %v3268
    %3270 = vdwg.mxu0
    %3271 = vmatpush.msra.mxu0 0.0
    %3272 = vmatpush.msra.mxu0 0.0
    %3273 = vmatpush.msra.mxu0 0.0
    %3274 = vmatpush.msra.mxu0 0.0
    %3275 = vmatpush.msra.mxu0 0.0
    %3276 = vmatpush.msra.mxu0 0.0
    %3277 = vmatpush.msra.mxu0 0.0
    %3278 = vmatpush.msra.mxu0 0.0
    %3279 = vmatpush.msra.mxu0 0.0
    %3280 = vmatpush.msra.mxu0 0.0
    %3281 = vmatpush.msra.mxu0 0.0
    %3282 = vmatpush.msra.mxu0 0.0
    %3283 = vmatpush.msra.mxu0 %v3113
    %3284 = vmatpush.msra.mxu0 %v3111
    %3285 = vmatpush.msra.mxu0 %v3109
    %3286 = vmatpush.msra.mxu0 %v3107
    %3287 = vmatmul.f32.gmra.mxu0 %v3135
    %v3288 = vpop.f32.mrf.mxu0
    %v3289 = vadd.f32 %v3212, %v3288
    %3290 = vmatmul.f32.gmra.mxu0 %v3138
    %v3291 = vpop.f32.mrf.mxu0
    %v3292 = vadd.f32 %v3215, %v3291
    %3293 = vmatmul.f32.gmra.mxu0 %v3141
    %v3294 = vpop.f32.mrf.mxu0
    %v3295 = vadd.f32 %v3218, %v3294
    %3296 = vmatmul.f32.gmra.mxu0 %v3144
    %v3297 = vpop.f32.mrf.mxu0
    %v3298 = vadd.f32 %v3221, %v3297
    %3299 = vmatmul.f32.gmra.mxu0 %v3147
    %v3300 = vpop.f32.mrf.mxu0
    %v3301 = vadd.f32 %v3224, %v3300
    %3302 = vmatmul.f32.gmra.mxu0 %v3150
    %v3303 = vpop.f32.mrf.mxu0
    %v3304 = vadd.f32 %v3227, %v3303
    %3305 = vmatmul.f32.gmra.mxu0 %v3153
    %v3306 = vpop.f32.mrf.mxu0
    %v3307 = vadd.f32 %v3230, %v3306
    %3308 = vmatmul.f32.gmra.mxu0 %v3156
    %v3309 = vpop.f32.mrf.mxu0
    %v3310 = vadd.f32 %v3233, %v3309
    %3311 = vmatmul.f32.gmra.mxu0 %v3159
    %v3312 = vpop.f32.mrf.mxu0
    %v3313 = vadd.f32 %v3236, %v3312
    %3314 = vmatmul.f32.gmra.mxu0 %v3162
    %v3315 = vpop.f32.mrf.mxu0
    %v3316 = vadd.f32 %v3239, %v3315
    %3317 = vmatmul.f32.gmra.mxu0 %v3165
    %v3318 = vpop.f32.mrf.mxu0
    %v3319 = vadd.f32 %v3242, %v3318
    %3320 = vmatmul.f32.gmra.mxu0 %v3168
    %v3321 = vpop.f32.mrf.mxu0
    %v3322 = vadd.f32 %v3245, %v3321
    %3323 = vmatmul.f32.gmra.mxu0 %v3171
    %v3324 = vpop.f32.mrf.mxu0
    %v3325 = vadd.f32 %v3248, %v3324
    %3326 = vmatmul.f32.gmra.mxu0 %v3174
    %v3327 = vpop.f32.mrf.mxu0
    %v3328 = vadd.f32 %v3251, %v3327
    %3329 = vmatmul.f32.gmra.mxu0 %v3177
    %v3330 = vpop.f32.mrf.mxu0
    %v3331 = vadd.f32 %v3254, %v3330
    %3332 = vmatmul.f32.gmra.mxu0 %v3180
    %v3333 = vpop.f32.mrf.mxu0
    %v3334 = vadd.f32 %v3257, %v3333
    %3335 = vmatmul.f32.gmra.mxu0 %v3183
    %v3336 = vpop.f32.mrf.mxu0
    %v3337 = vadd.f32 %v3260, %v3336
    %3338 = vmatmul.f32.gmra.mxu0 %v3186
    %v3339 = vpop.f32.mrf.mxu0
    %v3340 = vadd.f32 %v3263, %v3339
    %3341 = vmatmul.f32.gmra.mxu0 %v3189
    %v3342 = vpop.f32.mrf.mxu0
    %v3343 = vadd.f32 %v3266, %v3342
    %3344 = vmatmul.f32.gmra.mxu0 %v3192
    %v3345 = vpop.f32.mrf.mxu0
    %v3346 = vadd.f32 %v3269, %v3345
    %3347 = vdwg.mxu0
    %v3348 = vld [vmem:[#allocation4 + $0x180] sm:$0xff]
    %v3350 = vsel %vm890, %v3289, 0
    %v3353 = vsel %vm890, %v3292, 0
    %v3356 = vsel %vm890, %v3295, 0
    %v3359 = vsel %vm890, %v3298, 0
    %v3362 = vsel %vm890, %v3301, 0
    %3364 = vmatpush.msra.mxu0 0.0
    %3365 = vmatpush.msra.mxu0 0.0
    %3366 = vmatpush.msra.mxu0 0.0
    %3367 = vmatpush.msra.mxu0 0.0
    %3368 = vmatpush.msra.mxu0 0.0
    %3369 = vmatpush.msra.mxu0 0.0
    %3370 = vmatpush.msra.mxu0 0.0
    %3371 = vmatpush.msra.mxu0 0.0
    %3372 = vmatpush.msra.mxu0 0.0
    %3373 = vmatpush.msra.mxu0 0.0
    %3374 = vmatpush.msra.mxu0 0.0
    %3375 = vmatpush.msra.mxu0 0.0
    %3376 = vmatpush.msra.mxu0 0.0
    %3377 = vmatpush.msra.mxu0 0.0
    %3378 = vmatpush.msra.mxu0 0.0
    %3379 = vmatpush.msra.mxu0 %v3348
    %3380 = vmatmul.f32.gmra.mxu0 %v3350
    %v3381 = vpop.f32.mrf.mxu0
    %v3382 = vadd.f32 0.0, %v3381
    %3383 = vmatmul.f32.gmra.mxu0 %v3353
    %v3384 = vpop.f32.mrf.mxu0
    %v3385 = vadd.f32 0.0, %v3384
    %3386 = vmatmul.f32.gmra.mxu0 %v3356
    %v3387 = vpop.f32.mrf.mxu0
    %v3388 = vadd.f32 0.0, %v3387
    %3389 = vmatmul.f32.gmra.mxu0 %v3359
    %v3390 = vpop.f32.mrf.mxu0
    %v3391 = vadd.f32 0.0, %v3390
    %3392 = vmatmul.f32.gmra.mxu0 %v3362
    %v3393 = vpop.f32.mrf.mxu0
    %v3394 = vadd.f32 0.0, %v3393
    %3395 = vdwg.mxu0
    %v3396 = vperm.slane %v2246, 0
    %v3397 = vadd.f32 %v3396, %v3382
    %v3398 = vadd.f32 %v3396, %v3385
    %v3399 = vadd.f32 %v3396, %v3388
    %v3400 = vadd.f32 %v3396, %v3391
    %v3401 = vadd.f32 %v3396, %v3394
    %v3402 = vld [vmem:[#allocation4 + $0x188] sm:$0xff]
    %v3404 = vsel %vm890, %v3304, 0
    %v3407 = vsel %vm890, %v3307, 0
    %v3410 = vsel %vm890, %v3310, 0
    %v3413 = vsel %vm890, %v3313, 0
    %v3416 = vsel %vm890, %v3316, 0
    %3418 = vmatpush.msra.mxu0 0.0
    %3419 = vmatpush.msra.mxu0 0.0
    %3420 = vmatpush.msra.mxu0 0.0
    %3421 = vmatpush.msra.mxu0 0.0
    %3422 = vmatpush.msra.mxu0 0.0
    %3423 = vmatpush.msra.mxu0 0.0
    %3424 = vmatpush.msra.mxu0 0.0
    %3425 = vmatpush.msra.mxu0 0.0
    %3426 = vmatpush.msra.mxu0 0.0
    %3427 = vmatpush.msra.mxu0 0.0
    %3428 = vmatpush.msra.mxu0 0.0
    %3429 = vmatpush.msra.mxu0 0.0
    %3430 = vmatpush.msra.mxu0 0.0
    %3431 = vmatpush.msra.mxu0 0.0
    %3432 = vmatpush.msra.mxu0 0.0
    %3433 = vmatpush.msra.mxu0 %v3402
    %3434 = vmatmul.f32.gmra.mxu0 %v3404
    %v3435 = vpop.f32.mrf.mxu0
    %v3436 = vadd.f32 0.0, %v3435
    %3437 = vmatmul.f32.gmra.mxu0 %v3407
    %v3438 = vpop.f32.mrf.mxu0
    %v3439 = vadd.f32 0.0, %v3438
    %3440 = vmatmul.f32.gmra.mxu0 %v3410
    %v3441 = vpop.f32.mrf.mxu0
    %v3442 = vadd.f32 0.0, %v3441
    %3443 = vmatmul.f32.gmra.mxu0 %v3413
    %v3444 = vpop.f32.mrf.mxu0
    %v3445 = vadd.f32 0.0, %v3444
    %3446 = vmatmul.f32.gmra.mxu0 %v3416
    %v3447 = vpop.f32.mrf.mxu0
    %v3448 = vadd.f32 0.0, %v3447
    %3449 = vdwg.mxu0
    %v3450 = vadd.f32 %v3397, %v3436
    %v3451 = vadd.f32 %v3398, %v3439
    %v3452 = vadd.f32 %v3399, %v3442
    %v3453 = vadd.f32 %v3400, %v3445
    %v3454 = vadd.f32 %v3401, %v3448
    %v3455 = vld [vmem:[#allocation4 + $0x190] sm:$0xff]
    %v3457 = vsel %vm890, %v3319, 0
    %v3460 = vsel %vm890, %v3322, 0
    %v3463 = vsel %vm890, %v3325, 0
    %v3466 = vsel %vm890, %v3328, 0
    %v3469 = vsel %vm890, %v3331, 0
    %3471 = vmatpush.msra.mxu0 0.0
    %3472 = vmatpush.msra.mxu0 0.0
    %3473 = vmatpush.msra.mxu0 0.0
    %3474 = vmatpush.msra.mxu0 0.0
    %3475 = vmatpush.msra.mxu0 0.0
    %3476 = vmatpush.msra.mxu0 0.0
    %3477 = vmatpush.msra.mxu0 0.0
    %3478 = vmatpush.msra.mxu0 0.0
    %3479 = vmatpush.msra.mxu0 0.0
    %3480 = vmatpush.msra.mxu0 0.0
    %3481 = vmatpush.msra.mxu0 0.0
    %3482 = vmatpush.msra.mxu0 0.0
    %3483 = vmatpush.msra.mxu0 0.0
    %3484 = vmatpush.msra.mxu0 0.0
    %3485 = vmatpush.msra.mxu0 0.0
    %3486 = vmatpush.msra.mxu0 %v3455
    %3487 = vmatmul.f32.gmra.mxu0 %v3457
    %v3488 = vpop.f32.mrf.mxu0
    %v3489 = vadd.f32 0.0, %v3488
    %3490 = vmatmul.f32.gmra.mxu0 %v3460
    %v3491 = vpop.f32.mrf.mxu0
    %v3492 = vadd.f32 0.0, %v3491
    %3493 = vmatmul.f32.gmra.mxu0 %v3463
    %v3494 = vpop.f32.mrf.mxu0
    %v3495 = vadd.f32 0.0, %v3494
    %3496 = vmatmul.f32.gmra.mxu0 %v3466
    %v3497 = vpop.f32.mrf.mxu0
    %v3498 = vadd.f32 0.0, %v3497
    %3499 = vmatmul.f32.gmra.mxu0 %v3469
    %v3500 = vpop.f32.mrf.mxu0
    %v3501 = vadd.f32 0.0, %v3500
    %3502 = vdwg.mxu0
    %v3503 = vadd.f32 %v3450, %v3489
    %v3504 = vadd.f32 %v3451, %v3492
    %v3505 = vadd.f32 %v3452, %v3495
    %v3506 = vadd.f32 %v3453, %v3498
    %v3507 = vadd.f32 %v3454, %v3501
    %v3508 = vld [vmem:[#allocation4 + $0x198] sm:$0xff]
    %v3510 = vsel %vm890, %v3334, 0
    %v3513 = vsel %vm890, %v3337, 0
    %v3516 = vsel %vm890, %v3340, 0
    %v3519 = vsel %vm890, %v3343, 0
    %v3522 = vsel %vm890, %v3346, 0
    %3524 = vmatpush.msra.mxu0 0.0
    %3525 = vmatpush.msra.mxu0 0.0
    %3526 = vmatpush.msra.mxu0 0.0
    %3527 = vmatpush.msra.mxu0 0.0
    %3528 = vmatpush.msra.mxu0 0.0
    %3529 = vmatpush.msra.mxu0 0.0
    %3530 = vmatpush.msra.mxu0 0.0
    %3531 = vmatpush.msra.mxu0 0.0
    %3532 = vmatpush.msra.mxu0 0.0
    %3533 = vmatpush.msra.mxu0 0.0
    %3534 = vmatpush.msra.mxu0 0.0
    %3535 = vmatpush.msra.mxu0 0.0
    %3536 = vmatpush.msra.mxu0 0.0
    %3537 = vmatpush.msra.mxu0 0.0
    %3538 = vmatpush.msra.mxu0 0.0
    %3539 = vmatpush.msra.mxu0 %v3508
    %3540 = vmatmul.f32.gmra.mxu0 %v3510
    %v3541 = vpop.f32.mrf.mxu0
    %v3542 = vadd.f32 0.0, %v3541
    %3543 = vmatmul.f32.gmra.mxu0 %v3513
    %v3544 = vpop.f32.mrf.mxu0
    %v3545 = vadd.f32 0.0, %v3544
    %3546 = vmatmul.f32.gmra.mxu0 %v3516
    %v3547 = vpop.f32.mrf.mxu0
    %v3548 = vadd.f32 0.0, %v3547
    %3549 = vmatmul.f32.gmra.mxu0 %v3519
    %v3550 = vpop.f32.mrf.mxu0
    %v3551 = vadd.f32 0.0, %v3550
    %3552 = vmatmul.f32.gmra.mxu0 %v3522
    %v3553 = vpop.f32.mrf.mxu0
    %v3554 = vadd.f32 0.0, %v3553
    %3555 = vdwg.mxu0
    %v3556 = vadd.f32 %v3503, %v3542
    %v3557 = vadd.f32 %v3504, %v3545
    %v3558 = vadd.f32 %v3505, %v3548
    %v3559 = vadd.f32 %v3506, %v3551
    %v3560 = vadd.f32 %v3507, %v3554
    %v3561 = vadd.f32 %v2238, %v3556
    %v3562 = vadd.f32 %v2239, %v3557
    %v3563 = vadd.f32 %v2240, %v3558
    %v3564 = vadd.f32 %v2241, %v3559
    %v3565 = vadd.f32 %v2242, %v3560
    %v3566 = vsel %vm633, %v3561, 0.0
    %3567 = vadd.xlane.f32.xlu0 %v3566
    %v3568 = vpop.xlane.xlu0 %3567
    %v3569 = vsel %vm633, %v3562, 0.0
    %3570 = vadd.xlane.f32.xlu0 %v3569
    %v3571 = vpop.xlane.xlu0 %3570
    %v3572 = vsel %vm633, %v3563, 0.0
    %3573 = vadd.xlane.f32.xlu0 %v3572
    %v3574 = vpop.xlane.xlu0 %3573
    %v3575 = vsel %vm633, %v3564, 0.0
    %3576 = vadd.xlane.f32.xlu0 %v3575
    %v3577 = vpop.xlane.xlu0 %3576
    %v3578 = vsel %vm633, %v3565, 0.0
    %3579 = vadd.xlane.f32.xlu0 %v3578
    %v3580 = vpop.xlane.xlu0 %3579
    %v3581 = vmul.f32 %v3568, %v655
    %v3582 = vmul.f32 %v3571, %v655
    %v3583 = vmul.f32 %v3574, %v655
    %v3584 = vmul.f32 %v3577, %v655
    %v3585 = vmul.f32 %v3580, %v655
    %v3586 = vsub.f32 %v3561, %v3581
    %v3587 = vsub.f32 %v3562, %v3582
    %v3588 = vsub.f32 %v3563, %v3583
    %v3589 = vsub.f32 %v3564, %v3584
    %v3590 = vsub.f32 %v3565, %v3585
    %v3591 = vmul.f32 %v3586, %v3586
    %v3592 = vmul.f32 %v3587, %v3587
    %v3593 = vmul.f32 %v3588, %v3588
    %v3594 = vmul.f32 %v3589, %v3589
    %v3595 = vmul.f32 %v3590, %v3590
    %v3596 = vsel %vm633, %v3591, 0.0
    %3597 = vadd.xlane.f32.xlu0 %v3596
    %v3598 = vpop.xlane.xlu0 %3597
    %v3599 = vsel %vm633, %v3592, 0.0
    %3600 = vadd.xlane.f32.xlu0 %v3599
    %v3601 = vpop.xlane.xlu0 %3600
    %v3602 = vsel %vm633, %v3593, 0.0
    %3603 = vadd.xlane.f32.xlu0 %v3602
    %v3604 = vpop.xlane.xlu0 %3603
    %v3605 = vsel %vm633, %v3594, 0.0
    %3606 = vadd.xlane.f32.xlu0 %v3605
    %v3607 = vpop.xlane.xlu0 %3606
    %v3608 = vsel %vm633, %v3595, 0.0
    %3609 = vadd.xlane.f32.xlu0 %v3608
    %v3610 = vpop.xlane.xlu0 %3609
    %v3611 = vmul.f32 %v3598, %v655
    %v3612 = vmul.f32 %v3601, %v655
    %v3613 = vmul.f32 %v3604, %v655
    %v3614 = vmul.f32 %v3607, %v655
    %v3615 = vmul.f32 %v3610, %v655
    %v3616 = vadd.f32 %v3611, 1e-12
    %v3617 = vadd.f32 %v3612, 1e-12
    %v3618 = vadd.f32 %v3613, 1e-12
    %v3619 = vadd.f32 %v3614, 1e-12
    %v3620 = vadd.f32 %v3615, 1e-12
    %v3621 = vrsqrt.pop %v3616
    %v3622 = vmul.f32 %v3621, %v3616
    %v3623 = vmul.f32 %v3622, %v3621
    %v3624 = vmul.f32 0.5, %v3623
    %v3625 = vsub.f32 1.5, %v3624
    %v3626 = vmul.f32 %v3621, %v3625
    %vm3627 = vweird.f32 %v3616
    %vm3628 = vweird.f32 %v3621
    %vm3629 = vmor %vm3627, %vm3628
    %v3630 = vsel %vm3629, %v3621, %v3626
    %v3631 = vrsqrt.pop %v3617
    %v3632 = vmul.f32 %v3631, %v3617
    %v3633 = vmul.f32 %v3632, %v3631
    %v3634 = vmul.f32 0.5, %v3633
    %v3635 = vsub.f32 1.5, %v3634
    %v3636 = vmul.f32 %v3631, %v3635
    %vm3637 = vweird.f32 %v3617
    %vm3638 = vweird.f32 %v3631
    %vm3639 = vmor %vm3637, %vm3638
    %v3640 = vsel %vm3639, %v3631, %v3636
    %v3641 = vrsqrt.pop %v3618
    %v3642 = vmul.f32 %v3641, %v3618
    %v3643 = vmul.f32 %v3642, %v3641
    %v3644 = vmul.f32 0.5, %v3643
    %v3645 = vsub.f32 1.5, %v3644
    %v3646 = vmul.f32 %v3641, %v3645
    %vm3647 = vweird.f32 %v3618
    %vm3648 = vweird.f32 %v3641
    %vm3649 = vmor %vm3647, %vm3648
    %v3650 = vsel %vm3649, %v3641, %v3646
    %v3651 = vrsqrt.pop %v3619
    %v3652 = vmul.f32 %v3651, %v3619
    %v3653 = vmul.f32 %v3652, %v3651
    %v3654 = vmul.f32 0.5, %v3653
    %v3655 = vsub.f32 1.5, %v3654
    %v3656 = vmul.f32 %v3651, %v3655
    %vm3657 = vweird.f32 %v3619
    %vm3658 = vweird.f32 %v3651
    %vm3659 = vmor %vm3657, %vm3658
    %v3660 = vsel %vm3659, %v3651, %v3656
    %v3661 = vrsqrt.pop %v3620
    %v3662 = vmul.f32 %v3661, %v3620
    %v3663 = vmul.f32 %v3662, %v3661
    %v3664 = vmul.f32 0.5, %v3663
    %v3665 = vsub.f32 1.5, %v3664
    %v3666 = vmul.f32 %v3661, %v3665
    %vm3667 = vweird.f32 %v3620
    %vm3668 = vweird.f32 %v3661
    %vm3669 = vmor %vm3667, %vm3668
    %v3670 = vsel %vm3669, %v3661, %v3666
    %v3671 = vmul.f32 %v3586, %v3630
    %v3672 = vmul.f32 %v3587, %v3640
    %v3673 = vmul.f32 %v3588, %v3650
    %v3674 = vmul.f32 %v3589, %v3660
    %v3675 = vmul.f32 %v3590, %v3670
    %v3676 = vperm.slane %v2247, 0
    %v3677 = vmul.f32 %v3671, %v3676
    %v3678 = vmul.f32 %v3672, %v3676
    %v3679 = vmul.f32 %v3673, %v3676
    %v3680 = vmul.f32 %v3674, %v3676
    %v3681 = vmul.f32 %v3675, %v3676
    %v3682 = vperm.slane %v2248, 0
    %v3683 = vadd.f32 %v3677, %v3682
    %v3684 = vadd.f32 %v3678, %v3682
    %v3685 = vadd.f32 %v3679, %v3682
    %v3686 = vadd.f32 %v3680, %v3682
    %v3687 = vadd.f32 %v3681, %v3682
    %v3688 = vld [vmem:[#allocation4 + $0x1a0] sm:$0xff]
    %v3689 = vld [vmem:[#allocation4 + $0x1a8] sm:$0xff]
    %v3690 = vld [vmem:[#allocation4 + $0x1b0] sm:$0xff]
    %v3691 = vld [vmem:[#allocation4 + $0x1b8] sm:$0xff]
    %v3692 = vperm.slane %v2249, 0
    %v3694 = vsel %vm633, %v3683, 0
    %v3697 = vsel %vm633, %v3684, 0
    %v3700 = vsel %vm633, %v3685, 0
    %v3703 = vsel %vm633, %v3686, 0
    %v3706 = vsel %vm633, %v3687, 0
    %3708 = vmatpush.msra.mxu0 0.0
    %3709 = vmatpush.msra.mxu0 0.0
    %3710 = vmatpush.msra.mxu0 0.0
    %3711 = vmatpush.msra.mxu0 0.0
    %3712 = vmatpush.msra.mxu0 0.0
    %3713 = vmatpush.msra.mxu0 0.0
    %3714 = vmatpush.msra.mxu0 0.0
    %3715 = vmatpush.msra.mxu0 0.0
    %3716 = vmatpush.msra.mxu0 0.0
    %3717 = vmatpush.msra.mxu0 0.0
    %3718 = vmatpush.msra.mxu0 0.0
    %3719 = vmatpush.msra.mxu0 0.0
    %3720 = vmatpush.msra.mxu0 %v3691
    %3721 = vmatpush.msra.mxu0 %v3690
    %3722 = vmatpush.msra.mxu0 %v3689
    %3723 = vmatpush.msra.mxu0 %v3688
    %3724 = vmatmul.f32.gmra.mxu0 %v3694
    %v3725 = vpop.f32.mrf.mxu0
    %v3726 = vadd.f32 %v3692, %v3725
    %3727 = vmatmul.f32.gmra.mxu0 %v3697
    %v3728 = vpop.f32.mrf.mxu0
    %v3729 = vadd.f32 %v3692, %v3728
    %3730 = vmatmul.f32.gmra.mxu0 %v3700
    %v3731 = vpop.f32.mrf.mxu0
    %v3732 = vadd.f32 %v3692, %v3731
    %3733 = vmatmul.f32.gmra.mxu0 %v3703
    %v3734 = vpop.f32.mrf.mxu0
    %v3735 = vadd.f32 %v3692, %v3734
    %3736 = vmatmul.f32.gmra.mxu0 %v3706
    %v3737 = vpop.f32.mrf.mxu0
    %v3738 = vadd.f32 %v3692, %v3737
    %3739 = vdwg.mxu0
    %v3740 = vmul.f32 %v3726, %v3726
    %v3741 = vmul.f32 %v3729, %v3729
    %v3742 = vmul.f32 %v3732, %v3732
    %v3743 = vmul.f32 %v3735, %v3735
    %v3744 = vmul.f32 %v3738, %v3738
    %v3745 = vmul.f32 %v3726, %v3740
    %v3746 = vmul.f32 %v3729, %v3741
    %v3747 = vmul.f32 %v3732, %v3742
    %v3748 = vmul.f32 %v3735, %v3743
    %v3749 = vmul.f32 %v3738, %v3744
    %v3750 = vmul.f32 %v3745, 0.044715
    %v3751 = vmul.f32 %v3746, 0.044715
    %v3752 = vmul.f32 %v3747, 0.044715
    %v3753 = vmul.f32 %v3748, 0.044715
    %v3754 = vmul.f32 %v3749, 0.044715
    %v3755 = vadd.f32 %v3726, %v3750
    %v3756 = vadd.f32 %v3729, %v3751
    %v3757 = vadd.f32 %v3732, %v3752
    %v3758 = vadd.f32 %v3735, %v3753
    %v3759 = vadd.f32 %v3738, %v3754
    %v3760 = vmul.f32 %v3755, 0.7978846
    %v3761 = vmul.f32 %v3756, 0.7978846
    %v3762 = vmul.f32 %v3757, 0.7978846
    %v3763 = vmul.f32 %v3758, 0.7978846
    %v3764 = vmul.f32 %v3759, 0.7978846
    %v3765 = vtanh.pop %v3760
    %v3766 = vtanh.pop %v3761
    %v3767 = vtanh.pop %v3762
    %v3768 = vtanh.pop %v3763
    %v3769 = vtanh.pop %v3764
    %v3770 = vadd.f32 %v3765, 1.0
    %v3771 = vadd.f32 %v3766, 1.0
    %v3772 = vadd.f32 %v3767, 1.0
    %v3773 = vadd.f32 %v3768, 1.0
    %v3774 = vadd.f32 %v3769, 1.0
    %v3775 = vmul.f32 %v3770, 0.5
    %v3776 = vmul.f32 %v3771, 0.5
    %v3777 = vmul.f32 %v3772, 0.5
    %v3778 = vmul.f32 %v3773, 0.5
    %v3779 = vmul.f32 %v3774, 0.5
    %v3780 = vmul.f32 %v3726, %v3775
    %v3781 = vmul.f32 %v3729, %v3776
    %v3782 = vmul.f32 %v3732, %v3777
    %v3783 = vmul.f32 %v3735, %v3778
    %v3784 = vmul.f32 %v3738, %v3779
    %v3785 = vld [vmem:[#allocation4 + $0x1c0] sm:$0xff]
    %v3786 = vld [vmem:[#allocation4 + $0x1c8] sm:$0xff]
    %v3787 = vld [vmem:[#allocation4 + $0x1d0] sm:$0xff]
    %v3788 = vld [vmem:[#allocation4 + $0x1d8] sm:$0xff]
    %v3789 = vld [vmem:[#allocation4 + $0x1e0] sm:$0xff]
    %v3790 = vld [vmem:[#allocation4 + $0x1e8] sm:$0xff]
    %v3791 = vld [vmem:[#allocation4 + $0x1f0] sm:$0xff]
    %v3792 = vld [vmem:[#allocation4 + $0x1f8] sm:$0xff]
    %v3794 = vsel %vm2184, %v3780, 0
    %v3797 = vsel %vm2184, %v3781, 0
    %v3800 = vsel %vm2184, %v3782, 0
    %v3803 = vsel %vm2184, %v3783, 0
    %v3806 = vsel %vm2184, %v3784, 0
    %3808 = vmatpush.msra.mxu0 0.0
    %3809 = vmatpush.msra.mxu0 0.0
    %3810 = vmatpush.msra.mxu0 0.0
    %3811 = vmatpush.msra.mxu0 0.0
    %3812 = vmatpush.msra.mxu0 0.0
    %3813 = vmatpush.msra.mxu0 0.0
    %3814 = vmatpush.msra.mxu0 0.0
    %3815 = vmatpush.msra.mxu0 0.0
    %3816 = vmatpush.msra.mxu0 %v3792
    %3817 = vmatpush.msra.mxu0 %v3791
    %3818 = vmatpush.msra.mxu0 %v3790
    %3819 = vmatpush.msra.mxu0 %v3789
    %3820 = vmatpush.msra.mxu0 %v3788
    %3821 = vmatpush.msra.mxu0 %v3787
    %3822 = vmatpush.msra.mxu0 %v3786
    %3823 = vmatpush.msra.mxu0 %v3785
    %3824 = vmatmul.f32.gmra.mxu0 %v3794
    %v3825 = vpop.f32.mrf.mxu0
    %v3826 = vadd.f32 0.0, %v3825
    %3827 = vmatmul.f32.gmra.mxu0 %v3797
    %v3828 = vpop.f32.mrf.mxu0
    %v3829 = vadd.f32 0.0, %v3828
    %3830 = vmatmul.f32.gmra.mxu0 %v3800
    %v3831 = vpop.f32.mrf.mxu0
    %v3832 = vadd.f32 0.0, %v3831
    %3833 = vmatmul.f32.gmra.mxu0 %v3803
    %v3834 = vpop.f32.mrf.mxu0
    %v3835 = vadd.f32 0.0, %v3834
    %3836 = vmatmul.f32.gmra.mxu0 %v3806
    %v3837 = vpop.f32.mrf.mxu0
    %v3838 = vadd.f32 0.0, %v3837
    %3839 = vdwg.mxu0
    %v3840 = vadd.f32 %v3561, %v3826
    %v3841 = vadd.f32 %v3562, %v3829
    %v3842 = vadd.f32 %v3563, %v3832
    %v3843 = vadd.f32 %v3564, %v3835
    %v3844 = vadd.f32 %v3565, %v3838
    %v3845 = vperm.slane %v2250, 0
    %v3846 = vadd.f32 %v3840, %v3845
    %v3847 = vadd.f32 %v3841, %v3845
    %v3848 = vadd.f32 %v3842, %v3845
    %v3849 = vadd.f32 %v3843, %v3845
    %v3850 = vadd.f32 %v3844, %v3845
    %v3851 = vld [vmem:[#allocation4 + $0x81] sm:$0x1]
    %v3852 = vld [vmem:[#allocation4 + $0x82] sm:$0x1]
    %v3853 = vsel %vm633, %v3846, 0.0
    %3854 = vadd.xlane.f32.xlu0 %v3853
    %v3855 = vpop.xlane.xlu0 %3854
    %v3856 = vsel %vm633, %v3847, 0.0
    %3857 = vadd.xlane.f32.xlu0 %v3856
    %v3858 = vpop.xlane.xlu0 %3857
    %v3859 = vsel %vm633, %v3848, 0.0
    %3860 = vadd.xlane.f32.xlu0 %v3859
    %v3861 = vpop.xlane.xlu0 %3860
    %v3862 = vsel %vm633, %v3849, 0.0
    %3863 = vadd.xlane.f32.xlu0 %v3862
    %v3864 = vpop.xlane.xlu0 %3863
    %v3865 = vsel %vm633, %v3850, 0.0
    %3866 = vadd.xlane.f32.xlu0 %v3865
    %v3867 = vpop.xlane.xlu0 %3866
    %v3868 = vmul.f32 %v3855, %v655
    %v3869 = vmul.f32 %v3858, %v655
    %v3870 = vmul.f32 %v3861, %v655
    %v3871 = vmul.f32 %v3864, %v655
    %v3872 = vmul.f32 %v3867, %v655
    %v3873 = vsub.f32 %v3846, %v3868
    %v3874 = vsub.f32 %v3847, %v3869
    %v3875 = vsub.f32 %v3848, %v3870
    %v3876 = vsub.f32 %v3849, %v3871
    %v3877 = vsub.f32 %v3850, %v3872
    %v3878 = vmul.f32 %v3873, %v3873
    %v3879 = vmul.f32 %v3874, %v3874
    %v3880 = vmul.f32 %v3875, %v3875
    %v3881 = vmul.f32 %v3876, %v3876
    %v3882 = vmul.f32 %v3877, %v3877
    %v3883 = vsel %vm633, %v3878, 0.0
    %3884 = vadd.xlane.f32.xlu0 %v3883
    %v3885 = vpop.xlane.xlu0 %3884
    %v3886 = vsel %vm633, %v3879, 0.0
    %3887 = vadd.xlane.f32.xlu0 %v3886
    %v3888 = vpop.xlane.xlu0 %3887
    %v3889 = vsel %vm633, %v3880, 0.0
    %3890 = vadd.xlane.f32.xlu0 %v3889
    %v3891 = vpop.xlane.xlu0 %3890
    %v3892 = vsel %vm633, %v3881, 0.0
    %3893 = vadd.xlane.f32.xlu0 %v3892
    %v3894 = vpop.xlane.xlu0 %3893
    %v3895 = vsel %vm633, %v3882, 0.0
    %3896 = vadd.xlane.f32.xlu0 %v3895
    %v3897 = vpop.xlane.xlu0 %3896
    %v3898 = vmul.f32 %v3885, %v655
    %v3899 = vmul.f32 %v3888, %v655
    %v3900 = vmul.f32 %v3891, %v655
    %v3901 = vmul.f32 %v3894, %v655
    %v3902 = vmul.f32 %v3897, %v655
    %v3903 = vadd.f32 %v3898, 1e-12
    %v3904 = vadd.f32 %v3899, 1e-12
    %v3905 = vadd.f32 %v3900, 1e-12
    %v3906 = vadd.f32 %v3901, 1e-12
    %v3907 = vadd.f32 %v3902, 1e-12
    %v3908 = vrsqrt.pop %v3903
    %v3909 = vmul.f32 %v3908, %v3903
    %v3910 = vmul.f32 %v3909, %v3908
    %v3911 = vmul.f32 0.5, %v3910
    %v3912 = vsub.f32 1.5, %v3911
    %v3913 = vmul.f32 %v3908, %v3912
    %vm3914 = vweird.f32 %v3903
    %vm3915 = vweird.f32 %v3908
    %vm3916 = vmor %vm3914, %vm3915
    %v3917 = vsel %vm3916, %v3908, %v3913
    %v3918 = vrsqrt.pop %v3904
    %v3919 = vmul.f32 %v3918, %v3904
    %v3920 = vmul.f32 %v3919, %v3918
    %v3921 = vmul.f32 0.5, %v3920
    %v3922 = vsub.f32 1.5, %v3921
    %v3923 = vmul.f32 %v3918, %v3922
    %vm3924 = vweird.f32 %v3904
    %vm3925 = vweird.f32 %v3918
    %vm3926 = vmor %vm3924, %vm3925
    %v3927 = vsel %vm3926, %v3918, %v3923
    %v3928 = vrsqrt.pop %v3905
    %v3929 = vmul.f32 %v3928, %v3905
    %v3930 = vmul.f32 %v3929, %v3928
    %v3931 = vmul.f32 0.5, %v3930
    %v3932 = vsub.f32 1.5, %v3931
    %v3933 = vmul.f32 %v3928, %v3932
    %vm3934 = vweird.f32 %v3905
    %vm3935 = vweird.f32 %v3928
    %vm3936 = vmor %vm3934, %vm3935
    %v3937 = vsel %vm3936, %v3928, %v3933
    %v3938 = vrsqrt.pop %v3906
    %v3939 = vmul.f32 %v3938, %v3906
    %v3940 = vmul.f32 %v3939, %v3938
    %v3941 = vmul.f32 0.5, %v3940
    %v3942 = vsub.f32 1.5, %v3941
    %v3943 = vmul.f32 %v3938, %v3942
    %vm3944 = vweird.f32 %v3906
    %vm3945 = vweird.f32 %v3938
    %vm3946 = vmor %vm3944, %vm3945
    %v3947 = vsel %vm3946, %v3938, %v3943
    %v3948 = vrsqrt.pop %v3907
    %v3949 = vmul.f32 %v3948, %v3907
    %v3950 = vmul.f32 %v3949, %v3948
    %v3951 = vmul.f32 0.5, %v3950
    %v3952 = vsub.f32 1.5, %v3951
    %v3953 = vmul.f32 %v3948, %v3952
    %vm3954 = vweird.f32 %v3907
    %vm3955 = vweird.f32 %v3948
    %vm3956 = vmor %vm3954, %vm3955
    %v3957 = vsel %vm3956, %v3948, %v3953
    %v3958 = vmul.f32 %v3873, %v3917
    %v3959 = vmul.f32 %v3874, %v3927
    %v3960 = vmul.f32 %v3875, %v3937
    %v3961 = vmul.f32 %v3876, %v3947
    %v3962 = vmul.f32 %v3877, %v3957
    %v3963 = vperm.slane %v3851, 0
    %v3964 = vmul.f32 %v3958, %v3963
    %v3965 = vmul.f32 %v3959, %v3963
    %v3966 = vmul.f32 %v3960, %v3963
    %v3967 = vmul.f32 %v3961, %v3963
    %v3968 = vmul.f32 %v3962, %v3963
    %v3969 = vperm.slane %v3852, 0
    %v3970 = vadd.f32 %v3964, %v3969
    %v3971 = vadd.f32 %v3965, %v3969
    %v3972 = vadd.f32 %v3966, %v3969
    %v3973 = vadd.f32 %v3967, %v3969
    %v3974 = vadd.f32 %v3968, %v3969
    %3975 = vst.msk [vmem:[%s2] sm:$0xff] %vm633, %v3970
    %3976 = vst.msk [vmem:[%s2 + $0x8] sm:$0xff] %vm633, %v3971
    %3977 = vst.msk [vmem:[%s2 + $0x10] sm:$0xff] %vm633, %v3972
    %3978 = vst.msk [vmem:[%s2 + $0x18] sm:$0xff] %vm633, %v3973
    %3979 = vst.msk [vmem:[%s2 + $0x20] sm:$0xff] %vm633, %v3974
    // Predicated region
    $region18: #{tpu_custom_call.1} parent=1 // pred_check
      _
    $region19: #{tpu_custom_call.1} parent=1 // pred_check_branch
      %3981 = sbr.rel (0) target = $region21
    $region20: #{tpu_custom_call.1} parent=1 // pred_region
      _
    $region21: #{tpu_custom_call.1} parent=1 // pred_fallthru
      _
    // Predicated region
    $region22: #{tpu_custom_call.1} parent=1 // pred_check
      _
    $region23: #{tpu_custom_call.1} parent=1 // pred_check_branch
      %3983 = sbr.rel (0) target = $region25
    $region24: #{tpu_custom_call.1} parent=1 // pred_region
      _
    $region25: #{tpu_custom_call.1} parent=1 // pred_fallthru
      _
    %3984 = vsyncpa [#allocation3], 1
    %3985 = vsyncpa [#allocation5], 1

</llo_original>
